<compile_context>
chip_gen: v7x
topology: tpu7x:2x2x1
jax: 0.10.0
libtpu: 0.0.40
codegen_flags: <defaults>
</compile_context>

<pallas_src>
import jax
import jax.numpy as jnp
import numpy as np
from jax import lax
from jax.experimental import pallas as pl
from jax.experimental.pallas import tpu as pltpu

BN_EPS = 1e-5


# ----------------------------- kernel ----------------------------------------

def _residual_block_kernel(xp_ref, w1_ref, b1_ref, w2_ref, b2_ref,
                           out_ref, ypad_ref):
    """BB images per grid step; everything VMEM resident.

    xp_ref   : (BB, H+2, W*C) f32   H-halo-padded input slab (NHWC, W*C lanes)
    w*_ref   : (3, W*C, W*C)  bf16  block-Toeplitz conv weights (BN folded in),
                                    one (W*C, W*C) slab per kernel row dy
    b*_ref   : (1, W*C)       f32   conv bias (BN folded in), tiled over W
    out_ref  : (BB, H, W*C)   f32   output slab (lane-dense last dim)
    ypad_ref : (BB, H+2, W*C) f32   scratch: H-halo-padded intermediate
    """
    BB, HP, WC = xp_ref.shape
    H = HP - 2
    M = BB * H

    def conv3x3(slab_ref, w_ref):
        # 3 lane-dense matmuls (one per kernel row); width halo lives in the
        # Toeplitz weight zeros, so no lane slicing / concatenation is needed.
        acc = None
        for dy in range(3):
            lhs = slab_ref[:, dy:dy + H, :].reshape(M, WC).astype(jnp.bfloat16)
            part = jnp.dot(lhs, w_ref[dy], preferred_element_type=jnp.float32)
            acc = part if acc is None else acc + part
        return acc                                           # (M, WC) f32

    # ---- conv1 + bn1 (folded) + relu ----
    y = jnp.maximum(conv3x3(xp_ref, w1_ref) + b1_ref[...], 0.0)

    # ---- H-halo-padded intermediate for conv2 ----
    # Zero only the two halo row planes every step (the interior is fully
    # overwritten; this stays correct even when megacore splits the grid and
    # a pl.when(pid == 0) init would never run on the second core).
    zero_row = jnp.zeros((BB, 1, WC), dtype=ypad_ref.dtype)
    ypad_ref[:, 0:1, :] = zero_row
    ypad_ref[:, H + 1:H + 2, :] = zero_row
    ypad_ref[:, 1:H + 1, :] = y.reshape(BB, H, WC)

    # ---- conv2 + bn2 (folded) ----
    z = conv3x3(ypad_ref, w2_ref) + b2_ref[...]

    # ---- residual add (exact f32, lane-aligned interior read) + relu ----
    residual = xp_ref[:, 1:H + 1, :].reshape(M, WC)
    out = jnp.maximum(z + residual, 0.0)
    out_ref[...] = out.reshape(BB, H, WC).astype(out_ref.dtype)


# ----------------------------- parameter prep --------------------------------

def _fold_bn(w_hwio, b, bn, eps=BN_EPS):
    """Fold eval-mode BatchNorm into conv weight (HWIO) and bias."""
    gamma, beta, mean, var = bn
    scale = gamma * lax.rsqrt(var + eps)                      # (C,)
    w_f = w_hwio * scale.reshape(1, 1, 1, -1)                 # scale out-chan
    b_f = b * scale + (beta - mean * scale)
    return w_f, b_f


def _toeplitz_weight(w_hwio, W):
    """Block-Toeplitz weight (3, W*C, W*C): width halo baked in as zeros."""
    w = np.asarray(w_hwio, dtype=np.float32)                  # (3, 3, C, C)
    C = w.shape[2]
    T = np.zeros((3, W * C, W * C), np.float32)
    for dy in range(3):
        for wo in range(W):
            for kw in range(3):
                wi = wo + kw - 1
                if 0 <= wi < W:
                    T[dy, wi * C:(wi + 1) * C, wo * C:(wo + 1) * C] = w[dy, kw]
    return jnp.asarray(T, dtype=jnp.bfloat16)


def build_params(w1, b1, bn1, w2, b2, bn2, W, eps=BN_EPS):
    """Returns kernel params (w1T, b1v, w2T, b2v) and folded HWIO weights."""
    w1f, b1f = _fold_bn(w1, b1, bn1, eps)
    w2f, b2f = _fold_bn(w2, b2, bn2, eps)
    params = (_toeplitz_weight(w1f, W),
              jnp.tile(b1f, W).reshape(1, -1).astype(jnp.float32),
              _toeplitz_weight(w2f, W),
              jnp.tile(b2f, W).reshape(1, -1).astype(jnp.float32))
    return params, (w1f, b1f, w2f, b2f)


# ----------------------------- wrapper ----------------------------------------

def residual_block_nchw(x_nchw, params, *, block_batch=32):
    """Matches ResidualBlock.forward: NCHW in, NCHW out (inference-mode BN)."""
    w1t, b1v, w2t, b2v = params
    B, C, H, W = x_nchw.shape
    WC = W * C

    # One fused copy: NCHW -> (B, H, W*C) lane-flat slab with a 1-row H halo.
    x_slab = jnp.transpose(x_nchw, (0, 2, 3, 1)).reshape(B, H, WC)
    xp = jnp.pad(x_slab, ((0, 0), (1, 1), (0, 0)))

    BB = min(block_batch, B)
    Bp = ((B + BB - 1) // BB) * BB
    if Bp != B:
        xp = jnp.pad(xp, ((0, Bp - B), (0, 0), (0, 0)))

    grid_spec = pltpu.PrefetchScalarGridSpec(
        num_scalar_prefetch=0,
        grid=(Bp // BB,),
        in_specs=[
            pl.BlockSpec((BB, H + 2, WC), lambda b: (b, 0, 0)),
            pl.BlockSpec((3, WC, WC), lambda b: (0, 0, 0)),
            pl.BlockSpec((1, WC), lambda b: (0, 0)),
            pl.BlockSpec((3, WC, WC), lambda b: (0, 0, 0)),
            pl.BlockSpec((1, WC), lambda b: (0, 0)),
        ],
        out_specs=pl.BlockSpec((BB, H, WC), lambda b: (b, 0, 0)),
        scratch_shapes=[pltpu.VMEM((BB, H + 2, WC), jnp.float32)],
    )

    out = pl.pallas_call(
        _residual_block_kernel,
        out_shape=jax.ShapeDtypeStruct((Bp, H, WC), x_nchw.dtype),
        grid_spec=grid_spec,
        compiler_params=pltpu.CompilerParams(
            dimension_semantics=("parallel",),
            vmem_limit_bytes=32 * 1024 * 1024),
    )(xp, w1t, b1v, w2t, b2v)

    out = out[:B].reshape(B, H, W, C)
    return jnp.transpose(out, (0, 3, 1, 2))


# ----------------------------- references -------------------------------------

def reference_exact_nchw(x_nchw, raw_params, eps=BN_EPS):
    """Pure-f32 lax-conv reference with explicit eval-mode BatchNorm."""
    w1, b1, bn1, w2, b2, bn2 = raw_params
    x = jnp.transpose(x_nchw, (0, 2, 3, 1))
    dn = lax.conv_dimension_numbers(x.shape, w1.shape, ('NHWC', 'HWIO', 'NHWC'))

    def bn(t, p):
        gamma, beta, mean, var = p
        return (t - mean) * lax.rsqrt(var + eps) * gamma + beta

    y = lax.conv_general_dilated(x, w1, (1, 1), 'SAME', dimension_numbers=dn) + b1
    y = jnp.maximum(bn(y, bn1), 0.0)
    z = lax.conv_general_dilated(y, w2, (1, 1), 'SAME', dimension_numbers=dn) + b2
    z = bn(z, bn2)
    out = jnp.maximum(z + x, 0.0)
    return jnp.transpose(out, (0, 3, 1, 2))


def reference_matched_nchw(x_nchw, folded_hwio):
    """Reference matching the kernel's bf16-MXU-operand / f32-accumulate math."""
    w1f, b1f, w2f, b2f = folded_hwio
    x = jnp.transpose(x_nchw, (0, 2, 3, 1)).astype(jnp.float32)
    dn = lax.conv_dimension_numbers(x.shape, w1f.shape, ('NHWC', 'HWIO', 'NHWC'))

    w1q = w1f.astype(jnp.bfloat16).astype(jnp.float32)
    w2q = w2f.astype(jnp.bfloat16).astype(jnp.float32)
    xq = x.astype(jnp.bfloat16).astype(jnp.float32)
    y = lax.conv_general_dilated(xq, w1q, (1, 1), 'SAME', dimension_numbers=dn)
    y = jnp.maximum(y + b1f, 0.0)
    yq = y.astype(jnp.bfloat16).astype(jnp.float32)
    z = lax.conv_general_dilated(yq, w2q, (1, 1), 'SAME', dimension_numbers=dn)
    z = z + b2f
    out = jnp.maximum(z + x, 0.0)                      # residual is exact f32
    return jnp.transpose(out, (0, 3, 1, 2))


# ------------------------------- demo ------------------------------------------

if __name__ == "__main__":
    B, C, H, W = 64, 32, 8, 8          # NCHW, like the PyTorch module's input
    key = jax.random.PRNGKey(0)
    ks = jax.random.split(key, 13)

    x_nchw = jax.random.normal(ks[0], (B, C, H, W), dtype=jnp.float32)

    def conv_w(k):                     # HWIO
        return (0.1 * jax.random.normal(k, (3, 3, C, C))).astype(jnp.float32)

    def vec(k, scale=0.1, offset=0.0):
        return (offset + scale * jax.random.normal(k, (C,))).astype(jnp.float32)

    w1, b1 = conv_w(ks[1]), vec(ks[2])
    w2, b2 = conv_w(ks[3]), vec(ks[4])
    bn1 = (vec(ks[5], 0.1, 1.0), vec(ks[6]), vec(ks[7], 0.05),
           jnp.abs(vec(ks[8])) + 1.0)
    bn2 = (vec(ks[9], 0.1, 1.0), vec(ks[10]), vec(ks[11], 0.05),
           jnp.abs(vec(ks[12])) + 1.0)

    params, folded_hwio = build_params(w1, b1, bn1, w2, b2, bn2, W)

    fn = jax.jit(lambda x, p: residual_block_nchw(x, p, block_batch=32))
    out_nchw = jax.block_until_ready(fn(x_nchw, params))

    # Correctness checks against pure-JAX references.
    ref_matched = reference_matched_nchw(x_nchw, folded_hwio)
    ref_exact = reference_exact_nchw(x_nchw, (w1, b1, bn1, w2, b2, bn2))

    np.testing.assert_allclose(np.asarray(out_nchw), np.asarray(ref_matched),
                               rtol=2e-2, atol=2e-2)
    np.testing.assert_allclose(np.asarray(out_nchw), np.asarray(ref_exact),
                               rtol=1e-1, atol=1e-1)

    print("KERNEL_OK")
</pallas_src>

<mosaic_0001>
module attributes {stable_mosaic.version = 11 : i64} {
  func.func @_residual_block_kernel(%arg0: i32, %arg1: memref<32x10x256xf32, #tpu.memory_space<vmem>>, %arg2: memref<3x256x256xbf16, #tpu.memory_space<vmem>>, %arg3: memref<1x256xf32, #tpu.memory_space<vmem>>, %arg4: memref<3x256x256xbf16, #tpu.memory_space<vmem>>, %arg5: memref<1x256xf32, #tpu.memory_space<vmem>>, %arg6: memref<32x8x256xf32, #tpu.memory_space<vmem>>, %arg7: memref<32x10x256xf32, #tpu.memory_space<vmem>>) attributes {dimension_semantics = [#tpu.dimension_semantics<parallel>], iteration_bounds = array<i64: 2>, scalar_prefetch = 0 : i64, scratch_operands = 1 : i64, tpu.core_type = #tpu.core_type<tc>, window_params = [{transform_indices = @transform_0, window_bounds = array<i64: 32, 10, 256>}, {pipeline_mode = #tpu.pipeline_mode<synchronous>, transform_indices = @transform_1, window_bounds = array<i64: 3, 256, 256>}, {pipeline_mode = #tpu.pipeline_mode<synchronous>, transform_indices = @transform_2, window_bounds = array<i64: 1, 256>}, {pipeline_mode = #tpu.pipeline_mode<synchronous>, transform_indices = @transform_3, window_bounds = array<i64: 3, 256, 256>}, {pipeline_mode = #tpu.pipeline_mode<synchronous>, transform_indices = @transform_4, window_bounds = array<i64: 1, 256>}, {transform_indices = @transform_5, window_bounds = array<i64: 32, 8, 256>}]} {
    %c0 = arith.constant 0 : index
    %c0_0 = arith.constant 0 : index
    %c0_1 = arith.constant 0 : index
    %0 = vector.load %arg1[%c0, %c0_0, %c0_1] : memref<32x10x256xf32, #tpu.memory_space<vmem>>, vector<32x8x256xf32>
    %1 = vector.shape_cast %0 : vector<32x8x256xf32> to vector<256x256xf32>
    %2 = arith.truncf %1 : vector<256x256xf32> to vector<256x256xbf16>
    %c0_2 = arith.constant 0 : index
    %c0_3 = arith.constant 0 : index
    %c0_4 = arith.constant 0 : index
    %3 = vector.load %arg2[%c0_2, %c0_3, %c0_4] : memref<3x256x256xbf16, #tpu.memory_space<vmem>>, vector<1x256x256xbf16>
    %4 = vector.shape_cast %3 : vector<1x256x256xbf16> to vector<256x256xbf16>
    %cst = arith.constant dense<0.000000e+00> : vector<256x256xf32>
    %5 = tpu.matmul %2, %4, %cst {dimension_numbers = #tpu.dot_dimension_numbers<[1], [0], [0], [1], [0, 0, 1, 1], [], []>} : vector<256x256xbf16>, vector<256x256xbf16>, vector<256x256xf32> -> vector<256x256xf32>
    %c0_5 = arith.constant 0 : index
    %c1 = arith.constant 1 : index
    %c0_6 = arith.constant 0 : index
    %6 = vector.load %arg1[%c0_5, %c1, %c0_6] : memref<32x10x256xf32, #tpu.memory_space<vmem>>, vector<32x8x256xf32>
    %7 = vector.shape_cast %6 : vector<32x8x256xf32> to vector<256x256xf32>
    %8 = arith.truncf %7 : vector<256x256xf32> to vector<256x256xbf16>
    %c1_7 = arith.constant 1 : index
    %c0_8 = arith.constant 0 : index
    %c0_9 = arith.constant 0 : index
    %9 = vector.load %arg2[%c1_7, %c0_8, %c0_9] : memref<3x256x256xbf16, #tpu.memory_space<vmem>>, vector<1x256x256xbf16>
    %10 = vector.shape_cast %9 : vector<1x256x256xbf16> to vector<256x256xbf16>
    %cst_10 = arith.constant dense<0.000000e+00> : vector<256x256xf32>
    %11 = tpu.matmul %8, %10, %cst_10 {dimension_numbers = #tpu.dot_dimension_numbers<[1], [0], [0], [1], [0, 0, 1, 1], [], []>} : vector<256x256xbf16>, vector<256x256xbf16>, vector<256x256xf32> -> vector<256x256xf32>
    %12 = arith.addf %5, %11 : vector<256x256xf32>
    %c0_11 = arith.constant 0 : index
    %c2 = arith.constant 2 : index
    %c0_12 = arith.constant 0 : index
    %13 = vector.load %arg1[%c0_11, %c2, %c0_12] : memref<32x10x256xf32, #tpu.memory_space<vmem>>, vector<32x8x256xf32>
    %14 = vector.shape_cast %13 : vector<32x8x256xf32> to vector<256x256xf32>
    %15 = arith.truncf %14 : vector<256x256xf32> to vector<256x256xbf16>
    %c2_13 = arith.constant 2 : index
    %c0_14 = arith.constant 0 : index
    %c0_15 = arith.constant 0 : index
    %16 = vector.load %arg2[%c2_13, %c0_14, %c0_15] : memref<3x256x256xbf16, #tpu.memory_space<vmem>>, vector<1x256x256xbf16>
    %17 = vector.shape_cast %16 : vector<1x256x256xbf16> to vector<256x256xbf16>
    %cst_16 = arith.constant dense<0.000000e+00> : vector<256x256xf32>
    %18 = tpu.matmul %15, %17, %cst_16 {dimension_numbers = #tpu.dot_dimension_numbers<[1], [0], [0], [1], [0, 0, 1, 1], [], []>} : vector<256x256xbf16>, vector<256x256xbf16>, vector<256x256xf32> -> vector<256x256xf32>
    %19 = arith.addf %12, %18 : vector<256x256xf32>
    %c0_17 = arith.constant 0 : index
    %c0_18 = arith.constant 0 : index
    %20 = vector.load %arg3[%c0_17, %c0_18] : memref<1x256xf32, #tpu.memory_space<vmem>>, vector<1x256xf32>
    %21 = vector.broadcast %20 : vector<1x256xf32> to vector<256x256xf32>
    %22 = arith.addf %19, %21 : vector<256x256xf32>
    %cst_19 = arith.constant 0.000000e+00 : f32
    %23 = vector.broadcast %cst_19 : f32 to vector<256x256xf32>
    %24 = arith.maximumf %22, %23 : vector<256x256xf32>
    %cst_20 = arith.constant 0.000000e+00 : f32
    %25 = vector.broadcast %cst_20 : f32 to vector<32x1x256xf32>
    %c0_21 = arith.constant 0 : index
    %c0_22 = arith.constant 0 : index
    %c0_23 = arith.constant 0 : index
    %26 = vector.load %arg7[%c0_21, %c0_22, %c0_23] : memref<32x10x256xf32, #tpu.memory_space<vmem>>, vector<32x1x256xf32>
    tpu.vector_store %arg7[%c0_21, %c0_22, %c0_23], %25 {strides = array<i32>} : memref<32x10x256xf32, #tpu.memory_space<vmem>>, vector<32x1x256xf32>,
    %c0_24 = arith.constant 0 : index
    %c9 = arith.constant 9 : index
    %c0_25 = arith.constant 0 : index
    %27 = vector.load %arg7[%c0_24, %c9, %c0_25] : memref<32x10x256xf32, #tpu.memory_space<vmem>>, vector<32x1x256xf32>
    tpu.vector_store %arg7[%c0_24, %c9, %c0_25], %25 {strides = array<i32>} : memref<32x10x256xf32, #tpu.memory_space<vmem>>, vector<32x1x256xf32>,
    %28 = vector.shape_cast %24 : vector<256x256xf32> to vector<32x8x256xf32>
    %c0_26 = arith.constant 0 : index
    %c1_27 = arith.constant 1 : index
    %c0_28 = arith.constant 0 : index
    %29 = vector.load %arg7[%c0_26, %c1_27, %c0_28] : memref<32x10x256xf32, #tpu.memory_space<vmem>>, vector<32x8x256xf32>
    tpu.vector_store %arg7[%c0_26, %c1_27, %c0_28], %28 {strides = array<i32>} : memref<32x10x256xf32, #tpu.memory_space<vmem>>, vector<32x8x256xf32>,
    %c0_29 = arith.constant 0 : index
    %c0_30 = arith.constant 0 : index
    %c0_31 = arith.constant 0 : index
    %30 = vector.load %arg7[%c0_29, %c0_30, %c0_31] : memref<32x10x256xf32, #tpu.memory_space<vmem>>, vector<32x8x256xf32>
    %31 = vector.shape_cast %30 : vector<32x8x256xf32> to vector<256x256xf32>
    %32 = arith.truncf %31 : vector<256x256xf32> to vector<256x256xbf16>
    %c0_32 = arith.constant 0 : index
    %c0_33 = arith.constant 0 : index
    %c0_34 = arith.constant 0 : index
    %33 = vector.load %arg4[%c0_32, %c0_33, %c0_34] : memref<3x256x256xbf16, #tpu.memory_space<vmem>>, vector<1x256x256xbf16>
    %34 = vector.shape_cast %33 : vector<1x256x256xbf16> to vector<256x256xbf16>
    %cst_35 = arith.constant dense<0.000000e+00> : vector<256x256xf32>
    %35 = tpu.matmul %32, %34, %cst_35 {dimension_numbers = #tpu.dot_dimension_numbers<[1], [0], [0], [1], [0, 0, 1, 1], [], []>} : vector<256x256xbf16>, vector<256x256xbf16>, vector<256x256xf32> -> vector<256x256xf32>
    %c0_36 = arith.constant 0 : index
    %c1_37 = arith.constant 1 : index
    %c0_38 = arith.constant 0 : index
    %36 = vector.load %arg7[%c0_36, %c1_37, %c0_38] : memref<32x10x256xf32, #tpu.memory_space<vmem>>, vector<32x8x256xf32>
    %37 = vector.shape_cast %36 : vector<32x8x256xf32> to vector<256x256xf32>
    %38 = arith.truncf %37 : vector<256x256xf32> to vector<256x256xbf16>
    %c1_39 = arith.constant 1 : index
    %c0_40 = arith.constant 0 : index
    %c0_41 = arith.constant 0 : index
    %39 = vector.load %arg4[%c1_39, %c0_40, %c0_41] : memref<3x256x256xbf16, #tpu.memory_space<vmem>>, vector<1x256x256xbf16>
    %40 = vector.shape_cast %39 : vector<1x256x256xbf16> to vector<256x256xbf16>
    %cst_42 = arith.constant dense<0.000000e+00> : vector<256x256xf32>
    %41 = tpu.matmul %38, %40, %cst_42 {dimension_numbers = #tpu.dot_dimension_numbers<[1], [0], [0], [1], [0, 0, 1, 1], [], []>} : vector<256x256xbf16>, vector<256x256xbf16>, vector<256x256xf32> -> vector<256x256xf32>
    %42 = arith.addf %35, %41 : vector<256x256xf32>
    %c0_43 = arith.constant 0 : index
    %c2_44 = arith.constant 2 : index
    %c0_45 = arith.constant 0 : index
    %43 = vector.load %arg7[%c0_43, %c2_44, %c0_45] : memref<32x10x256xf32, #tpu.memory_space<vmem>>, vector<32x8x256xf32>
    %44 = vector.shape_cast %43 : vector<32x8x256xf32> to vector<256x256xf32>
    %45 = arith.truncf %44 : vector<256x256xf32> to vector<256x256xbf16>
    %c2_46 = arith.constant 2 : index
    %c0_47 = arith.constant 0 : index
    %c0_48 = arith.constant 0 : index
    %46 = vector.load %arg4[%c2_46, %c0_47, %c0_48] : memref<3x256x256xbf16, #tpu.memory_space<vmem>>, vector<1x256x256xbf16>
    %47 = vector.shape_cast %46 : vector<1x256x256xbf16> to vector<256x256xbf16>
    %cst_49 = arith.constant dense<0.000000e+00> : vector<256x256xf32>
    %48 = tpu.matmul %45, %47, %cst_49 {dimension_numbers = #tpu.dot_dimension_numbers<[1], [0], [0], [1], [0, 0, 1, 1], [], []>} : vector<256x256xbf16>, vector<256x256xbf16>, vector<256x256xf32> -> vector<256x256xf32>
    %49 = arith.addf %42, %48 : vector<256x256xf32>
    %c0_50 = arith.constant 0 : index
    %c0_51 = arith.constant 0 : index
    %50 = vector.load %arg5[%c0_50, %c0_51] : memref<1x256xf32, #tpu.memory_space<vmem>>, vector<1x256xf32>
    %51 = vector.broadcast %50 : vector<1x256xf32> to vector<256x256xf32>
    %52 = arith.addf %49, %51 : vector<256x256xf32>
    %c0_52 = arith.constant 0 : index
    %c1_53 = arith.constant 1 : index
    %c0_54 = arith.constant 0 : index
    %53 = vector.load %arg1[%c0_52, %c1_53, %c0_54] : memref<32x10x256xf32, #tpu.memory_space<vmem>>, vector<32x8x256xf32>
    %54 = vector.shape_cast %53 : vector<32x8x256xf32> to vector<256x256xf32>
    %55 = arith.addf %52, %54 : vector<256x256xf32>
    %cst_55 = arith.constant 0.000000e+00 : f32
    %56 = vector.broadcast %cst_55 : f32 to vector<256x256xf32>
    %57 = arith.maximumf %55, %56 : vector<256x256xf32>
    %58 = vector.shape_cast %57 : vector<256x256xf32> to vector<32x8x256xf32>
    %c0_56 = arith.constant 0 : index
    %c0_57 = arith.constant 0 : index
    %c0_58 = arith.constant 0 : index
    %59 = vector.load %arg6[%c0_56, %c0_57, %c0_58] : memref<32x8x256xf32, #tpu.memory_space<vmem>>, vector<32x8x256xf32>
    tpu.vector_store %arg6[%c0_56, %c0_57, %c0_58], %58 {strides = array<i32>} : memref<32x8x256xf32, #tpu.memory_space<vmem>>, vector<32x8x256xf32>,
    return
  }
  func.func @transform_0(%arg0: i32) -> (i32, i32, i32) {
    %c0_i32 = arith.constant 0 : i32
    %c0_i32_0 = arith.constant 0 : i32
    %c0_i32_1 = arith.constant 0 : i32
    return %arg0, %c0_i32, %c0_i32_0 : i32, i32, i32
  }
  func.func @transform_1(%arg0: i32) -> (i32, i32, i32) {
    %c0_i32 = arith.constant 0 : i32
    %c0_i32_0 = arith.constant 0 : i32
    %c0_i32_1 = arith.constant 0 : i32
    %c0_i32_2 = arith.constant 0 : i32
    return %c0_i32, %c0_i32_0, %c0_i32_1 : i32, i32, i32
  }
  func.func @transform_2(%arg0: i32) -> (i32, i32) {
    %c0_i32 = arith.constant 0 : i32
    %c0_i32_0 = arith.constant 0 : i32
    %c0_i32_1 = arith.constant 0 : i32
    return %c0_i32, %c0_i32_0 : i32, i32
  }
  func.func @transform_3(%arg0: i32) -> (i32, i32, i32) {
    %c0_i32 = arith.constant 0 : i32
    %c0_i32_0 = arith.constant 0 : i32
    %c0_i32_1 = arith.constant 0 : i32
    %c0_i32_2 = arith.constant 0 : i32
    return %c0_i32, %c0_i32_0, %c0_i32_1 : i32, i32, i32
  }
  func.func @transform_4(%arg0: i32) -> (i32, i32) {
    %c0_i32 = arith.constant 0 : i32
    %c0_i32_0 = arith.constant 0 : i32
    %c0_i32_1 = arith.constant 0 : i32
    return %c0_i32, %c0_i32_0 : i32, i32
  }
  func.func @transform_5(%arg0: i32) -> (i32, i32, i32) {
    %c0_i32 = arith.constant 0 : i32
    %c0_i32_0 = arith.constant 0 : i32
    %c0_i32_1 = arith.constant 0 : i32
    return %arg0, %c0_i32, %c0_i32_0 : i32, i32, i32
  }
}

</mosaic_0001>

<llo_original>
// kernel: _lambda_.1
$region0: #{_lambda_.1}
  #allocation0 [shape = 'u32[]', space=smem, size = 0x4, offset = 0x4, fixed_abs, tag = 'smem constant byte address 0x4 - core index']
  #allocation1 [shape = 'u32[144,128]{1,0:T(1,128)}', space=vmem, size = 0x12000, scoped, tag = 'internal scratch']
  #allocation2 [shape = 'f32[32,10,256]{2,1,0:T(8,128)}', space=vmem, size = 0x80000, scoped, tag = 'scratch operand']
  %s0 = inlined_call_operand.vmem [shape: f32[64,10,256], index: 0, kind: input, shape index: {}]
  %s1 = inlined_call_operand.vmem [shape: bf16[3,256,256], index: 1, kind: input, shape index: {}]
  %s2 = inlined_call_operand.vmem [shape: f32[1,256], index: 2, kind: input, shape index: {}]
  %s3 = inlined_call_operand.vmem [shape: bf16[3,256,256], index: 3, kind: input, shape index: {}]
  %s4 = inlined_call_operand.vmem [shape: f32[1,256], index: 4, kind: input, shape index: {}]
  %s5 = inlined_call_operand.vmem [shape: f32[64,8,256], index: 5, kind: output, shape index: {}]
  %s6 = sld [smem:[#allocation0]]
  $region53: #{_lambda_.1} parent=0
    _
  %s8 = ssub.s32 1, %s6
  %s9 = scalar_select 0, %s8, %s6
  loop: start=0, step=1, limit=4
  $region2: #{_lambda_.1} parent=0 // loop_pre_header
    _
  $region3: #{_lambda_.1} parent=0 // loop_header
    %s11 = sphi 0, %s15
    %p12 = scmp.ge.s32.totalorder %s11, 4
    %s21 = sphi 0, %s23
    %s24 = sphi 0, %s21
    %s25 = sphi 0, %s24
    %s41 = sphi 0, %s25
    %s45 = sphi 0, %s45
    %s47 = sphi 0, %s45
    %s48 = sphi 0, %s47
    %s62 = sphi 0, %s48
    %s66 = sphi 0, %s66
    %s68 = sphi 0, %s66
    %s69 = sphi 0, %s68
    %s83 = sphi 0, %s69
    %s87 = sphi 0, %s87
    %s89 = sphi 0, %s87
    %s90 = sphi 0, %s89
    %s104 = sphi 0, %s90
    %s108 = sphi 0, %s108
    %s110 = sphi 0, %s108
    %s111 = sphi 0, %s110
    %s125 = sphi 0, %s111
    %s131 = sphi 0, %s133
    %s134 = sphi 0, %s131
    %s135 = sphi 0, %s134
    %s151 = sphi 0, %s135
  $region4: #{_lambda_.1} parent=0 // loop_header_branch
    %14 = sbr.rel (%p12) target = $region8
  $region5: #{_lambda_.1} parent=0 // loop_body
    %s16 = ssub.s32 %s11, 1
    %s17 = ssub.s32 %s11, 2
    %s18 = sadd.s32 %s11, 1
    %s19 = ssub.s32 %s11, %s18
    %p20 = scmp.eq.s32.totalorder %s19, 0
    %s22 = sadd.s32 %s21, 1
    %s23 = scalar_select %p20, %s21, %s22
    %p26 = pneg %p20
    %p27 = scmp.eq.s32.totalorder %s11, 1
    %p28 = por %p26, %p27
    %p29 = scmp.ne.s32.totalorder %s21, %s24
    %p30 = scmp.eq.s32.totalorder %s11, 0
    %p31 = por %p29, %p30
    %p32 = scmp.ne.s32.totalorder %s21, %s24
    %p33 = scmp.eq.s32.totalorder %s16, 1
    %p34 = por %p32, %p33
    %p35 = scmp.ne.s32.totalorder %s24, %s25
    %p36 = scmp.eq.s32.totalorder %s16, 0
    %p37 = por %p35, %p36
    %p38 = scmp.ne.s32.totalorder %s24, %s25
    %p39 = scmp.eq.s32.totalorder %s17, 1
    %p40 = por %p38, %p39
    %p42 = scmp.ne.s32.totalorder %s25, %s41
    %p43 = scmp.eq.s32.totalorder %s17, 0
    %p44 = por %p42, %p43
    %s46 = sadd.s32 %s45, 1
    %p49 = scmp.eq.s32.totalorder %s11, 1
    %p50 = scmp.ne.s32.totalorder %s45, %s47
    %p51 = scmp.eq.s32.totalorder %s11, 0
    %p52 = por %p50, %p51
    %p53 = scmp.ne.s32.totalorder %s45, %s47
    %p54 = scmp.eq.s32.totalorder %s16, 1
    %p55 = por %p53, %p54
    %p56 = scmp.ne.s32.totalorder %s47, %s48
    %p57 = scmp.eq.s32.totalorder %s16, 0
    %p58 = por %p56, %p57
    %p59 = scmp.ne.s32.totalorder %s47, %s48
    %p60 = scmp.eq.s32.totalorder %s17, 1
    %p61 = por %p59, %p60
    %p63 = scmp.ne.s32.totalorder %s48, %s62
    %p64 = scmp.eq.s32.totalorder %s17, 0
    %p65 = por %p63, %p64
    %s67 = sadd.s32 %s66, 1
    %p70 = scmp.eq.s32.totalorder %s11, 1
    %p71 = scmp.ne.s32.totalorder %s66, %s68
    %p72 = scmp.eq.s32.totalorder %s11, 0
    %p73 = por %p71, %p72
    %p74 = scmp.ne.s32.totalorder %s66, %s68
    %p75 = scmp.eq.s32.totalorder %s16, 1
    %p76 = por %p74, %p75
    %p77 = scmp.ne.s32.totalorder %s68, %s69
    %p78 = scmp.eq.s32.totalorder %s16, 0
    %p79 = por %p77, %p78
    %p80 = scmp.ne.s32.totalorder %s68, %s69
    %p81 = scmp.eq.s32.totalorder %s17, 1
    %p82 = por %p80, %p81
    %p84 = scmp.ne.s32.totalorder %s69, %s83
    %p85 = scmp.eq.s32.totalorder %s17, 0
    %p86 = por %p84, %p85
    %s88 = sadd.s32 %s87, 1
    %p91 = scmp.eq.s32.totalorder %s11, 1
    %p92 = scmp.ne.s32.totalorder %s87, %s89
    %p93 = scmp.eq.s32.totalorder %s11, 0
    %p94 = por %p92, %p93
    %p95 = scmp.ne.s32.totalorder %s87, %s89
    %p96 = scmp.eq.s32.totalorder %s16, 1
    %p97 = por %p95, %p96
    %p98 = scmp.ne.s32.totalorder %s89, %s90
    %p99 = scmp.eq.s32.totalorder %s16, 0
    %p100 = por %p98, %p99
    %p101 = scmp.ne.s32.totalorder %s89, %s90
    %p102 = scmp.eq.s32.totalorder %s17, 1
    %p103 = por %p101, %p102
    %p105 = scmp.ne.s32.totalorder %s90, %s104
    %p106 = scmp.eq.s32.totalorder %s17, 0
    %p107 = por %p105, %p106
    %s109 = sadd.s32 %s108, 1
    %p112 = scmp.eq.s32.totalorder %s11, 1
    %p113 = scmp.ne.s32.totalorder %s108, %s110
    %p114 = scmp.eq.s32.totalorder %s11, 0
    %p115 = por %p113, %p114
    %p116 = scmp.ne.s32.totalorder %s108, %s110
    %p117 = scmp.eq.s32.totalorder %s16, 1
    %p118 = por %p116, %p117
    %p119 = scmp.ne.s32.totalorder %s110, %s111
    %p120 = scmp.eq.s32.totalorder %s16, 0
    %p121 = por %p119, %p120
    %p122 = scmp.ne.s32.totalorder %s110, %s111
    %p123 = scmp.eq.s32.totalorder %s17, 1
    %p124 = por %p122, %p123
    %p126 = scmp.ne.s32.totalorder %s111, %s125
    %p127 = scmp.eq.s32.totalorder %s17, 0
    %p128 = por %p126, %p127
    %s129 = ssub.s32 %s11, %s18
    %p130 = scmp.eq.s32.totalorder %s129, 0
    %s132 = sadd.s32 %s131, 1
    %s133 = scalar_select %p130, %s131, %s132
    %p136 = pneg %p130
    %p137 = scmp.eq.s32.totalorder %s11, 1
    %p138 = por %p136, %p137
    %p139 = scmp.ne.s32.totalorder %s131, %s134
    %p140 = scmp.eq.s32.totalorder %s11, 0
    %p141 = por %p139, %p140
    %p142 = scmp.ne.s32.totalorder %s131, %s134
    %p143 = scmp.eq.s32.totalorder %s16, 1
    %p144 = por %p142, %p143
    %p145 = scmp.ne.s32.totalorder %s134, %s135
    %p146 = scmp.eq.s32.totalorder %s16, 0
    %p147 = por %p145, %p146
    %p148 = scmp.ne.s32.totalorder %s134, %s135
    %p149 = scmp.eq.s32.totalorder %s17, 1
    %p150 = por %p148, %p149
    %p152 = scmp.ne.s32.totalorder %s135, %s151
    %p153 = scmp.eq.s32.totalorder %s17, 0
    %p154 = por %p152, %p153
    %p155 = scmp.le.s32.totalorder 1, %s11
    %p156 = scmp.lt.s32.totalorder %s11, 3
    %p157 = pnand %p155, %p156
    %p158 = pneg %p157
    // Predicated region
    $region9: #{_lambda_.1} parent=5 // pred_check
      _
    $region10: #{_lambda_.1} parent=5 // pred_check_branch
      %160 = sbr.rel (%p157) target = $region12
    $region11: #{_lambda_.1} parent=5 // pred_region
      %s161 = ssub.s32 %s11, 1
      // Predicated region
      $region13: #{_lambda_.1} parent=11 // pred_check
        %p162 = pneg %p58
      $region14: #{_lambda_.1} parent=11 // pred_check_branch
        %164 = sbr.rel (%p162) target = $region16
      $region15: #{_lambda_.1} parent=11 // pred_region
        _
      $region16: #{_lambda_.1} parent=11 // pred_fallthru
        _
      // Predicated region
      $region17: #{_lambda_.1} parent=11 // pred_check
        %p165 = pneg %p79
      $region18: #{_lambda_.1} parent=11 // pred_check_branch
        %167 = sbr.rel (%p165) target = $region20
      $region19: #{_lambda_.1} parent=11 // pred_region
        _
      $region20: #{_lambda_.1} parent=11 // pred_fallthru
        _
      // Predicated region
      $region21: #{_lambda_.1} parent=11 // pred_check
        %p168 = pneg %p100
      $region22: #{_lambda_.1} parent=11 // pred_check_branch
        %170 = sbr.rel (%p168) target = $region24
      $region23: #{_lambda_.1} parent=11 // pred_region
        _
      $region24: #{_lambda_.1} parent=11 // pred_fallthru
        _
      // Predicated region
      $region25: #{_lambda_.1} parent=11 // pred_check
        %p171 = pneg %p121
      $region26: #{_lambda_.1} parent=11 // pred_check_branch
        %173 = sbr.rel (%p171) target = $region28
      $region27: #{_lambda_.1} parent=11 // pred_region
        _
      $region28: #{_lambda_.1} parent=11 // pred_fallthru
        _
    $region12: #{_lambda_.1} parent=5 // pred_fallthru
      _
    %p174 = scmp.lt.s32.totalorder %s11, 2
    // Predicated region
    $region29: #{_lambda_.1} parent=5 // pred_check
      %p175 = pneg %p174
    $region30: #{_lambda_.1} parent=5 // pred_check_branch
      %177 = sbr.rel (%p175) target = $region32
    $region31: #{_lambda_.1} parent=5 // pred_region
      // Predicated region
      $region33: #{_lambda_.1} parent=31 // pred_check
        %p178 = pneg %p31
      $region34: #{_lambda_.1} parent=31 // pred_check_branch
        %180 = sbr.rel (%p178) target = $region36
      $region35: #{_lambda_.1} parent=31 // pred_region
        %s181 = smul.u32 32, %s11
        %p182 = scmp.lt.s32.totalorder %s181, 63
        %s183 = scalar_select %p182, %s181, 63
        %s184 = smul.addr %s183, 4
        %s185 = smul.addr %s184, 8
        %s186 = scalar_lea.vmem %s0, %s185
        %s187 = smul.u32 32, %s11
      $region36: #{_lambda_.1} parent=31 // pred_fallthru
        _
    $region32: #{_lambda_.1} parent=5 // pred_fallthru
      _
    %p188 = scmp.le.s32.totalorder 1, %s11
    %p189 = scmp.lt.s32.totalorder %s11, 3
    %p190 = pnand %p188, %p189
    %p191 = pneg %p190
    // Predicated region
    $region37: #{_lambda_.1} parent=5 // pred_check
      _
    $region38: #{_lambda_.1} parent=5 // pred_check_branch
      %193 = sbr.rel (%p190) target = $region40
    $region39: #{_lambda_.1} parent=5 // pred_region
      %s194 = ssub.s32 %s11, 1
      %s195 = smul.u32 32, %s16
      %p196 = scmp.lt.s32.totalorder %s195, 63
      %s197 = scalar_select %p196, %s195, 63
      %s198 = smul.addr %s197, 4
      %s199 = smul.addr %s198, 8
      %s200 = scalar_lea.vmem %s0, %s199
      %p201 = pneg %p37
      %p202 = pneg %p34
      %p203 = pneg %p58
      %p204 = pneg %p55
      %p205 = pneg %p79
      %p206 = pneg %p76
      %p207 = pneg %p100
      %p208 = pneg %p97
      %p209 = pneg %p121
      %p210 = pneg %p118
      %p211 = pneg %p147
      %p212 = pneg %p144
      %s213 = smul.u32 32, %s16
      %p214 = scmp.lt.s32.totalorder %s213, 63
      %s215 = scalar_select %p214, %s213, 63
      %s216 = smul.addr %s215, 2
      %s217 = smul.addr %s216, 8
      %s218 = scalar_lea.vmem %s5, %s217
      %s219 = smul.u32 32, %s16
      %p220 = scmp.lt.s32.totalorder %s219, 63
      %s221 = scalar_select %p220, %s219, 63
      %s222 = smul.addr %s221, 4
      %s223 = smul.addr %s222, 8
      %s224 = scalar_lea.vmem %s0, %s223
      %s225 = smul.u32 32, %s16
      %s226 = smul.u32 32, %s16
      %p227 = scmp.lt.s32.totalorder %s226, 63
      %s228 = scalar_select %p227, %s226, 63
      %s229 = smul.addr %s228, 2
      %s230 = smul.addr %s229, 8
      %s231 = scalar_lea.vmem %s5, %s230
      %s232 = smul.u32 32, %s16
      %v233 = vld [vmem:[%s224] sm:$0xff]
      %v234 = vld [vmem:[%s224 + $0x8] sm:$0xff]
      %v235 = vld [vmem:[%s224 + $0x20] sm:$0xff]
      %v236 = vld [vmem:[%s224 + $0x28] sm:$0xff]
      %v237 = vld [vmem:[%s224 + $0x40] sm:$0xff]
      %v238 = vld [vmem:[%s224 + $0x48] sm:$0xff]
      %v239 = vld [vmem:[%s224 + $0x60] sm:$0xff]
      %v240 = vld [vmem:[%s224 + $0x68] sm:$0xff]
      %v241 = vld [vmem:[%s224 + $0x80] sm:$0xff]
      %v242 = vld [vmem:[%s224 + $0x88] sm:$0xff]
      %v243 = vld [vmem:[%s224 + $0xa0] sm:$0xff]
      %v244 = vld [vmem:[%s224 + $0xa8] sm:$0xff]
      %v245 = vld [vmem:[%s224 + $0xc0] sm:$0xff]
      %v246 = vld [vmem:[%s224 + $0xc8] sm:$0xff]
      %v247 = vld [vmem:[%s224 + $0xe0] sm:$0xff]
      %v248 = vld [vmem:[%s224 + $0xe8] sm:$0xff]
      %v249 = vld [vmem:[%s224 + $0x100] sm:$0xff]
      %v250 = vld [vmem:[%s224 + $0x108] sm:$0xff]
      %v251 = vld [vmem:[%s224 + $0x120] sm:$0xff]
      %v252 = vld [vmem:[%s224 + $0x128] sm:$0xff]
      %v253 = vld [vmem:[%s224 + $0x140] sm:$0xff]
      %v254 = vld [vmem:[%s224 + $0x148] sm:$0xff]
      %v255 = vld [vmem:[%s224 + $0x160] sm:$0xff]
      %v256 = vld [vmem:[%s224 + $0x168] sm:$0xff]
      %v257 = vld [vmem:[%s224 + $0x180] sm:$0xff]
      %v258 = vld [vmem:[%s224 + $0x188] sm:$0xff]
      %v259 = vld [vmem:[%s224 + $0x1a0] sm:$0xff]
      %v260 = vld [vmem:[%s224 + $0x1a8] sm:$0xff]
      %v261 = vld [vmem:[%s224 + $0x1c0] sm:$0xff]
      %v262 = vld [vmem:[%s224 + $0x1c8] sm:$0xff]
      %v263 = vld [vmem:[%s224 + $0x1e0] sm:$0xff]
      %v264 = vld [vmem:[%s224 + $0x1e8] sm:$0xff]
      %v265 = vld [vmem:[%s224 + $0x200] sm:$0xff]
      %v266 = vld [vmem:[%s224 + $0x208] sm:$0xff]
      %v267 = vld [vmem:[%s224 + $0x220] sm:$0xff]
      %v268 = vld [vmem:[%s224 + $0x228] sm:$0xff]
      %v269 = vld [vmem:[%s224 + $0x240] sm:$0xff]
      %v270 = vld [vmem:[%s224 + $0x248] sm:$0xff]
      %v271 = vld [vmem:[%s224 + $0x260] sm:$0xff]
      %v272 = vld [vmem:[%s224 + $0x268] sm:$0xff]
      %v273 = vld [vmem:[%s224 + $0x280] sm:$0xff]
      %v274 = vld [vmem:[%s224 + $0x288] sm:$0xff]
      %v275 = vld [vmem:[%s224 + $0x2a0] sm:$0xff]
      %v276 = vld [vmem:[%s224 + $0x2a8] sm:$0xff]
      %v277 = vld [vmem:[%s224 + $0x2c0] sm:$0xff]
      %v278 = vld [vmem:[%s224 + $0x2c8] sm:$0xff]
      %v279 = vld [vmem:[%s224 + $0x2e0] sm:$0xff]
      %v280 = vld [vmem:[%s224 + $0x2e8] sm:$0xff]
      %v281 = vld [vmem:[%s224 + $0x300] sm:$0xff]
      %v282 = vld [vmem:[%s224 + $0x308] sm:$0xff]
      %v283 = vld [vmem:[%s224 + $0x320] sm:$0xff]
      %v284 = vld [vmem:[%s224 + $0x328] sm:$0xff]
      %v285 = vld [vmem:[%s224 + $0x340] sm:$0xff]
      %v286 = vld [vmem:[%s224 + $0x348] sm:$0xff]
      %v287 = vld [vmem:[%s224 + $0x360] sm:$0xff]
      %v288 = vld [vmem:[%s224 + $0x368] sm:$0xff]
      %v289 = vld [vmem:[%s224 + $0x380] sm:$0xff]
      %v290 = vld [vmem:[%s224 + $0x388] sm:$0xff]
      %v291 = vld [vmem:[%s224 + $0x3a0] sm:$0xff]
      %v292 = vld [vmem:[%s224 + $0x3a8] sm:$0xff]
      %v293 = vld [vmem:[%s224 + $0x3c0] sm:$0xff]
      %v294 = vld [vmem:[%s224 + $0x3c8] sm:$0xff]
      %v295 = vld [vmem:[%s224 + $0x3e0] sm:$0xff]
      %v296 = vld [vmem:[%s224 + $0x3e8] sm:$0xff]
      %v297 = vpack.c.bf16 %v235, %v233
      %v298 = vpack.c.bf16 %v236, %v234
      %v299 = vpack.c.bf16 %v239, %v237
      %v300 = vpack.c.bf16 %v240, %v238
      %v301 = vpack.c.bf16 %v243, %v241
      %v302 = vpack.c.bf16 %v244, %v242
      %v303 = vpack.c.bf16 %v247, %v245
      %v304 = vpack.c.bf16 %v248, %v246
      %v305 = vpack.c.bf16 %v251, %v249
      %v306 = vpack.c.bf16 %v252, %v250
      %v307 = vpack.c.bf16 %v255, %v253
      %v308 = vpack.c.bf16 %v256, %v254
      %v309 = vpack.c.bf16 %v259, %v257
      %v310 = vpack.c.bf16 %v260, %v258
      %v311 = vpack.c.bf16 %v263, %v261
      %v312 = vpack.c.bf16 %v264, %v262
      %v313 = vpack.c.bf16 %v267, %v265
      %v314 = vpack.c.bf16 %v268, %v266
      %v315 = vpack.c.bf16 %v271, %v269
      %v316 = vpack.c.bf16 %v272, %v270
      %v317 = vpack.c.bf16 %v275, %v273
      %v318 = vpack.c.bf16 %v276, %v274
      %v319 = vpack.c.bf16 %v279, %v277
      %v320 = vpack.c.bf16 %v280, %v278
      %v321 = vpack.c.bf16 %v283, %v281
      %v322 = vpack.c.bf16 %v284, %v282
      %v323 = vpack.c.bf16 %v287, %v285
      %v324 = vpack.c.bf16 %v288, %v286
      %v325 = vpack.c.bf16 %v291, %v289
      %v326 = vpack.c.bf16 %v292, %v290
      %v327 = vpack.c.bf16 %v295, %v293
      %v328 = vpack.c.bf16 %v296, %v294
      %v329 = vld [vmem:[%s1] sm:$0xff]
      %v330 = vld [vmem:[%s1 + $0x8] sm:$0xff]
      %v331 = vld [vmem:[%s1 + $0x10] sm:$0xff]
      %v332 = vld [vmem:[%s1 + $0x18] sm:$0xff]
      %v333 = vld [vmem:[%s1 + $0x20] sm:$0xff]
      %v334 = vld [vmem:[%s1 + $0x28] sm:$0xff]
      %v335 = vld [vmem:[%s1 + $0x30] sm:$0xff]
      %v336 = vld [vmem:[%s1 + $0x38] sm:$0xff]
      %v337 = vld [vmem:[%s1 + $0x40] sm:$0xff]
      %v338 = vld [vmem:[%s1 + $0x48] sm:$0xff]
      %v339 = vld [vmem:[%s1 + $0x50] sm:$0xff]
      %v340 = vld [vmem:[%s1 + $0x58] sm:$0xff]
      %v341 = vld [vmem:[%s1 + $0x60] sm:$0xff]
      %v342 = vld [vmem:[%s1 + $0x68] sm:$0xff]
      %v343 = vld [vmem:[%s1 + $0x70] sm:$0xff]
      %v344 = vld [vmem:[%s1 + $0x78] sm:$0xff]
      %v345 = vld [vmem:[%s1 + $0x80] sm:$0xff]
      %v346 = vld [vmem:[%s1 + $0x88] sm:$0xff]
      %v347 = vld [vmem:[%s1 + $0x90] sm:$0xff]
      %v348 = vld [vmem:[%s1 + $0x98] sm:$0xff]
      %v349 = vld [vmem:[%s1 + $0xa0] sm:$0xff]
      %v350 = vld [vmem:[%s1 + $0xa8] sm:$0xff]
      %v351 = vld [vmem:[%s1 + $0xb0] sm:$0xff]
      %v352 = vld [vmem:[%s1 + $0xb8] sm:$0xff]
      %v353 = vld [vmem:[%s1 + $0xc0] sm:$0xff]
      %v354 = vld [vmem:[%s1 + $0xc8] sm:$0xff]
      %v355 = vld [vmem:[%s1 + $0xd0] sm:$0xff]
      %v356 = vld [vmem:[%s1 + $0xd8] sm:$0xff]
      %v357 = vld [vmem:[%s1 + $0xe0] sm:$0xff]
      %v358 = vld [vmem:[%s1 + $0xe8] sm:$0xff]
      %v359 = vld [vmem:[%s1 + $0xf0] sm:$0xff]
      %v360 = vld [vmem:[%s1 + $0xf8] sm:$0xff]
      %v361 = vld [vmem:[%s224] sm:$0xfe]
      %v362 = vld [vmem:[%s224 + $0x8] sm:$0xfe]
      %v363 = vld [vmem:[%s224 + $0x10] sm:$0x1]
      %v364 = vld [vmem:[%s224 + $0x18] sm:$0x1]
      %v365 = vld [vmem:[%s224 + $0x20] sm:$0xfe]
      %v366 = vld [vmem:[%s224 + $0x28] sm:$0xfe]
      %v367 = vld [vmem:[%s224 + $0x30] sm:$0x1]
      %v368 = vld [vmem:[%s224 + $0x38] sm:$0x1]
      %v369 = vld [vmem:[%s224 + $0x40] sm:$0xfe]
      %v370 = vld [vmem:[%s224 + $0x48] sm:$0xfe]
      %v371 = vld [vmem:[%s224 + $0x50] sm:$0x1]
      %v372 = vld [vmem:[%s224 + $0x58] sm:$0x1]
      %v373 = vld [vmem:[%s224 + $0x60] sm:$0xfe]
      %v374 = vld [vmem:[%s224 + $0x68] sm:$0xfe]
      %v375 = vld [vmem:[%s224 + $0x70] sm:$0x1]
      %v376 = vld [vmem:[%s224 + $0x78] sm:$0x1]
      %v377 = vld [vmem:[%s224 + $0x80] sm:$0xfe]
      %v378 = vld [vmem:[%s224 + $0x88] sm:$0xfe]
      %v379 = vld [vmem:[%s224 + $0x90] sm:$0x1]
      %v380 = vld [vmem:[%s224 + $0x98] sm:$0x1]
      %v381 = vld [vmem:[%s224 + $0xa0] sm:$0xfe]
      %v382 = vld [vmem:[%s224 + $0xa8] sm:$0xfe]
      %v383 = vld [vmem:[%s224 + $0xb0] sm:$0x1]
      %v384 = vld [vmem:[%s224 + $0xb8] sm:$0x1]
      %v385 = vld [vmem:[%s224 + $0xc0] sm:$0xfe]
      %v386 = vld [vmem:[%s224 + $0xc8] sm:$0xfe]
      %v387 = vld [vmem:[%s224 + $0xd0] sm:$0x1]
      %v388 = vld [vmem:[%s224 + $0xd8] sm:$0x1]
      %v389 = vld [vmem:[%s224 + $0xe0] sm:$0xfe]
      %v390 = vld [vmem:[%s224 + $0xe8] sm:$0xfe]
      %v391 = vld [vmem:[%s224 + $0xf0] sm:$0x1]
      %v392 = vld [vmem:[%s224 + $0xf8] sm:$0x1]
      %v393 = vld [vmem:[%s224 + $0x100] sm:$0xfe]
      %v394 = vld [vmem:[%s224 + $0x108] sm:$0xfe]
      %v395 = vld [vmem:[%s224 + $0x110] sm:$0x1]
      %v396 = vld [vmem:[%s224 + $0x118] sm:$0x1]
      %v397 = vld [vmem:[%s224 + $0x120] sm:$0xfe]
      %v398 = vld [vmem:[%s224 + $0x128] sm:$0xfe]
      %v399 = vld [vmem:[%s224 + $0x130] sm:$0x1]
      %v400 = vld [vmem:[%s224 + $0x138] sm:$0x1]
      %v401 = vld [vmem:[%s224 + $0x140] sm:$0xfe]
      %v402 = vld [vmem:[%s224 + $0x148] sm:$0xfe]
      %v403 = vld [vmem:[%s224 + $0x150] sm:$0x1]
      %v404 = vld [vmem:[%s224 + $0x158] sm:$0x1]
      %v405 = vld [vmem:[%s224 + $0x160] sm:$0xfe]
      %v406 = vld [vmem:[%s224 + $0x168] sm:$0xfe]
      %v407 = vld [vmem:[%s224 + $0x170] sm:$0x1]
      %v408 = vld [vmem:[%s224 + $0x178] sm:$0x1]
      %v409 = vld [vmem:[%s224 + $0x180] sm:$0xfe]
      %v410 = vld [vmem:[%s224 + $0x188] sm:$0xfe]
      %v411 = vld [vmem:[%s224 + $0x190] sm:$0x1]
      %v412 = vld [vmem:[%s224 + $0x198] sm:$0x1]
      %v413 = vld [vmem:[%s224 + $0x1a0] sm:$0xfe]
      %v414 = vld [vmem:[%s224 + $0x1a8] sm:$0xfe]
      %v415 = vld [vmem:[%s224 + $0x1b0] sm:$0x1]
      %v416 = vld [vmem:[%s224 + $0x1b8] sm:$0x1]
      %v417 = vld [vmem:[%s224 + $0x1c0] sm:$0xfe]
      %v418 = vld [vmem:[%s224 + $0x1c8] sm:$0xfe]
      %v419 = vld [vmem:[%s224 + $0x1d0] sm:$0x1]
      %v420 = vld [vmem:[%s224 + $0x1d8] sm:$0x1]
      %v421 = vld [vmem:[%s224 + $0x1e0] sm:$0xfe]
      %v422 = vld [vmem:[%s224 + $0x1e8] sm:$0xfe]
      %v423 = vld [vmem:[%s224 + $0x1f0] sm:$0x1]
      %v424 = vld [vmem:[%s224 + $0x1f8] sm:$0x1]
      %v425 = vld [vmem:[%s224 + $0x200] sm:$0xfe]
      %v426 = vld [vmem:[%s224 + $0x208] sm:$0xfe]
      %v427 = vld [vmem:[%s224 + $0x210] sm:$0x1]
      %v428 = vld [vmem:[%s224 + $0x218] sm:$0x1]
      %v429 = vld [vmem:[%s224 + $0x220] sm:$0xfe]
      %v430 = vld [vmem:[%s224 + $0x228] sm:$0xfe]
      %v431 = vld [vmem:[%s224 + $0x230] sm:$0x1]
      %v432 = vld [vmem:[%s224 + $0x238] sm:$0x1]
      %v433 = vld [vmem:[%s224 + $0x240] sm:$0xfe]
      %v434 = vld [vmem:[%s224 + $0x248] sm:$0xfe]
      %v435 = vld [vmem:[%s224 + $0x250] sm:$0x1]
      %v436 = vld [vmem:[%s224 + $0x258] sm:$0x1]
      %v437 = vld [vmem:[%s224 + $0x260] sm:$0xfe]
      %v438 = vld [vmem:[%s224 + $0x268] sm:$0xfe]
      %v439 = vld [vmem:[%s224 + $0x270] sm:$0x1]
      %v440 = vld [vmem:[%s224 + $0x278] sm:$0x1]
      %v441 = vld [vmem:[%s224 + $0x280] sm:$0xfe]
      %v442 = vld [vmem:[%s224 + $0x288] sm:$0xfe]
      %v443 = vld [vmem:[%s224 + $0x290] sm:$0x1]
      %v444 = vld [vmem:[%s224 + $0x298] sm:$0x1]
      %v445 = vld [vmem:[%s224 + $0x2a0] sm:$0xfe]
      %v446 = vld [vmem:[%s224 + $0x2a8] sm:$0xfe]
      %v447 = vld [vmem:[%s224 + $0x2b0] sm:$0x1]
      %v448 = vld [vmem:[%s224 + $0x2b8] sm:$0x1]
      %v449 = vld [vmem:[%s224 + $0x2c0] sm:$0xfe]
      %v450 = vld [vmem:[%s224 + $0x2c8] sm:$0xfe]
      %v451 = vld [vmem:[%s224 + $0x2d0] sm:$0x1]
      %v452 = vld [vmem:[%s224 + $0x2d8] sm:$0x1]
      %v453 = vld [vmem:[%s224 + $0x2e0] sm:$0xfe]
      %v454 = vld [vmem:[%s224 + $0x2e8] sm:$0xfe]
      %v455 = vld [vmem:[%s224 + $0x2f0] sm:$0x1]
      %v456 = vld [vmem:[%s224 + $0x2f8] sm:$0x1]
      %v457 = vld [vmem:[%s224 + $0x300] sm:$0xfe]
      %v458 = vld [vmem:[%s224 + $0x308] sm:$0xfe]
      %v459 = vld [vmem:[%s224 + $0x310] sm:$0x1]
      %v460 = vld [vmem:[%s224 + $0x318] sm:$0x1]
      %v461 = vld [vmem:[%s224 + $0x320] sm:$0xfe]
      %v462 = vld [vmem:[%s224 + $0x328] sm:$0xfe]
      %v463 = vld [vmem:[%s224 + $0x330] sm:$0x1]
      %v464 = vld [vmem:[%s224 + $0x338] sm:$0x1]
      %v465 = vld [vmem:[%s224 + $0x340] sm:$0xfe]
      %v466 = vld [vmem:[%s224 + $0x348] sm:$0xfe]
      %v467 = vld [vmem:[%s224 + $0x350] sm:$0x1]
      %v468 = vld [vmem:[%s224 + $0x358] sm:$0x1]
      %v469 = vld [vmem:[%s224 + $0x360] sm:$0xfe]
      %v470 = vld [vmem:[%s224 + $0x368] sm:$0xfe]
      %v471 = vld [vmem:[%s224 + $0x370] sm:$0x1]
      %v472 = vld [vmem:[%s224 + $0x378] sm:$0x1]
      %v473 = vld [vmem:[%s224 + $0x380] sm:$0xfe]
      %v474 = vld [vmem:[%s224 + $0x388] sm:$0xfe]
      %v475 = vld [vmem:[%s224 + $0x390] sm:$0x1]
      %v476 = vld [vmem:[%s224 + $0x398] sm:$0x1]
      %v477 = vld [vmem:[%s224 + $0x3a0] sm:$0xfe]
      %v478 = vld [vmem:[%s224 + $0x3a8] sm:$0xfe]
      %v479 = vld [vmem:[%s224 + $0x3b0] sm:$0x1]
      %v480 = vld [vmem:[%s224 + $0x3b8] sm:$0x1]
      %v481 = vld [vmem:[%s224 + $0x3c0] sm:$0xfe]
      %v482 = vld [vmem:[%s224 + $0x3c8] sm:$0xfe]
      %v483 = vld [vmem:[%s224 + $0x3d0] sm:$0x1]
      %v484 = vld [vmem:[%s224 + $0x3d8] sm:$0x1]
      %v485 = vld [vmem:[%s224 + $0x3e0] sm:$0xfe]
      %v486 = vld [vmem:[%s224 + $0x3e8] sm:$0xfe]
      %v487 = vld [vmem:[%s224 + $0x3f0] sm:$0x1]
      %v488 = vld [vmem:[%s224 + $0x3f8] sm:$0x1]
      %vm617 = vcmask 1046528
      %v618 = vrot.slane %v361, 1
      %v619 = vrot.slane %v363, 1
      %v620 = vsel %vm617, %v618, %v619
      %v621 = vrot.slane %v362, 1
      %v622 = vrot.slane %v364, 1
      %v623 = vsel %vm617, %v621, %v622
      %v624 = vrot.slane %v365, 1
      %v625 = vrot.slane %v367, 1
      %v626 = vsel %vm617, %v624, %v625
      %v627 = vrot.slane %v366, 1
      %v628 = vrot.slane %v368, 1
      %v629 = vsel %vm617, %v627, %v628
      %v630 = vrot.slane %v369, 1
      %v631 = vrot.slane %v371, 1
      %v632 = vsel %vm617, %v630, %v631
      %v633 = vrot.slane %v370, 1
      %v634 = vrot.slane %v372, 1
      %v635 = vsel %vm617, %v633, %v634
      %v636 = vrot.slane %v373, 1
      %v637 = vrot.slane %v375, 1
      %v638 = vsel %vm617, %v636, %v637
      %v639 = vrot.slane %v374, 1
      %v640 = vrot.slane %v376, 1
      %v641 = vsel %vm617, %v639, %v640
      %v642 = vrot.slane %v377, 1
      %v643 = vrot.slane %v379, 1
      %v644 = vsel %vm617, %v642, %v643
      %v645 = vrot.slane %v378, 1
      %v646 = vrot.slane %v380, 1
      %v647 = vsel %vm617, %v645, %v646
      %v648 = vrot.slane %v381, 1
      %v649 = vrot.slane %v383, 1
      %v650 = vsel %vm617, %v648, %v649
      %v651 = vrot.slane %v382, 1
      %v652 = vrot.slane %v384, 1
      %v653 = vsel %vm617, %v651, %v652
      %v654 = vrot.slane %v385, 1
      %v655 = vrot.slane %v387, 1
      %v656 = vsel %vm617, %v654, %v655
      %v657 = vrot.slane %v386, 1
      %v658 = vrot.slane %v388, 1
      %v659 = vsel %vm617, %v657, %v658
      %v660 = vrot.slane %v389, 1
      %v661 = vrot.slane %v391, 1
      %v662 = vsel %vm617, %v660, %v661
      %v663 = vrot.slane %v390, 1
      %v664 = vrot.slane %v392, 1
      %v665 = vsel %vm617, %v663, %v664
      %v666 = vrot.slane %v393, 1
      %v667 = vrot.slane %v395, 1
      %v668 = vsel %vm617, %v666, %v667
      %v669 = vrot.slane %v394, 1
      %v670 = vrot.slane %v396, 1
      %v671 = vsel %vm617, %v669, %v670
      %v672 = vrot.slane %v397, 1
      %v673 = vrot.slane %v399, 1
      %v674 = vsel %vm617, %v672, %v673
      %v675 = vrot.slane %v398, 1
      %v676 = vrot.slane %v400, 1
      %v677 = vsel %vm617, %v675, %v676
      %v678 = vrot.slane %v401, 1
      %v679 = vrot.slane %v403, 1
      %v680 = vsel %vm617, %v678, %v679
      %v681 = vrot.slane %v402, 1
      %v682 = vrot.slane %v404, 1
      %v683 = vsel %vm617, %v681, %v682
      %v684 = vrot.slane %v405, 1
      %v685 = vrot.slane %v407, 1
      %v686 = vsel %vm617, %v684, %v685
      %v687 = vrot.slane %v406, 1
      %v688 = vrot.slane %v408, 1
      %v689 = vsel %vm617, %v687, %v688
      %v690 = vrot.slane %v409, 1
      %v691 = vrot.slane %v411, 1
      %v692 = vsel %vm617, %v690, %v691
      %v693 = vrot.slane %v410, 1
      %v694 = vrot.slane %v412, 1
      %v695 = vsel %vm617, %v693, %v694
      %v696 = vrot.slane %v413, 1
      %v697 = vrot.slane %v415, 1
      %v698 = vsel %vm617, %v696, %v697
      %v699 = vrot.slane %v414, 1
      %v700 = vrot.slane %v416, 1
      %v701 = vsel %vm617, %v699, %v700
      %v702 = vrot.slane %v417, 1
      %v703 = vrot.slane %v419, 1
      %v704 = vsel %vm617, %v702, %v703
      %v705 = vrot.slane %v418, 1
      %v706 = vrot.slane %v420, 1
      %v707 = vsel %vm617, %v705, %v706
      %v708 = vrot.slane %v421, 1
      %v709 = vrot.slane %v423, 1
      %v710 = vsel %vm617, %v708, %v709
      %v711 = vrot.slane %v422, 1
      %v712 = vrot.slane %v424, 1
      %v713 = vsel %vm617, %v711, %v712
      %v714 = vrot.slane %v425, 1
      %v715 = vrot.slane %v427, 1
      %v716 = vsel %vm617, %v714, %v715
      %v717 = vrot.slane %v426, 1
      %v718 = vrot.slane %v428, 1
      %v719 = vsel %vm617, %v717, %v718
      %v720 = vrot.slane %v429, 1
      %v721 = vrot.slane %v431, 1
      %v722 = vsel %vm617, %v720, %v721
      %v723 = vrot.slane %v430, 1
      %v724 = vrot.slane %v432, 1
      %v725 = vsel %vm617, %v723, %v724
      %v726 = vrot.slane %v433, 1
      %v727 = vrot.slane %v435, 1
      %v728 = vsel %vm617, %v726, %v727
      %v729 = vrot.slane %v434, 1
      %v730 = vrot.slane %v436, 1
      %v731 = vsel %vm617, %v729, %v730
      %v732 = vrot.slane %v437, 1
      %v733 = vrot.slane %v439, 1
      %v734 = vsel %vm617, %v732, %v733
      %v735 = vrot.slane %v438, 1
      %v736 = vrot.slane %v440, 1
      %v737 = vsel %vm617, %v735, %v736
      %v738 = vrot.slane %v441, 1
      %v739 = vrot.slane %v443, 1
      %v740 = vsel %vm617, %v738, %v739
      %v741 = vrot.slane %v442, 1
      %v742 = vrot.slane %v444, 1
      %v743 = vsel %vm617, %v741, %v742
      %v744 = vrot.slane %v445, 1
      %v745 = vrot.slane %v447, 1
      %v746 = vsel %vm617, %v744, %v745
      %v747 = vrot.slane %v446, 1
      %v748 = vrot.slane %v448, 1
      %v749 = vsel %vm617, %v747, %v748
      %v750 = vrot.slane %v449, 1
      %v751 = vrot.slane %v451, 1
      %v752 = vsel %vm617, %v750, %v751
      %v753 = vrot.slane %v450, 1
      %v754 = vrot.slane %v452, 1
      %v755 = vsel %vm617, %v753, %v754
      %v756 = vrot.slane %v453, 1
      %v757 = vrot.slane %v455, 1
      %v758 = vsel %vm617, %v756, %v757
      %v759 = vrot.slane %v454, 1
      %v760 = vrot.slane %v456, 1
      %v761 = vsel %vm617, %v759, %v760
      %v762 = vrot.slane %v457, 1
      %v763 = vrot.slane %v459, 1
      %v764 = vsel %vm617, %v762, %v763
      %v765 = vrot.slane %v458, 1
      %v766 = vrot.slane %v460, 1
      %v767 = vsel %vm617, %v765, %v766
      %v768 = vrot.slane %v461, 1
      %v769 = vrot.slane %v463, 1
      %v770 = vsel %vm617, %v768, %v769
      %v771 = vrot.slane %v462, 1
      %v772 = vrot.slane %v464, 1
      %v773 = vsel %vm617, %v771, %v772
      %v774 = vrot.slane %v465, 1
      %v775 = vrot.slane %v467, 1
      %v776 = vsel %vm617, %v774, %v775
      %v777 = vrot.slane %v466, 1
      %v778 = vrot.slane %v468, 1
      %v779 = vsel %vm617, %v777, %v778
      %v780 = vrot.slane %v469, 1
      %v781 = vrot.slane %v471, 1
      %v782 = vsel %vm617, %v780, %v781
      %v783 = vrot.slane %v470, 1
      %v784 = vrot.slane %v472, 1
      %v785 = vsel %vm617, %v783, %v784
      %v786 = vrot.slane %v473, 1
      %v787 = vrot.slane %v475, 1
      %v788 = vsel %vm617, %v786, %v787
      %v789 = vrot.slane %v474, 1
      %v790 = vrot.slane %v476, 1
      %v791 = vsel %vm617, %v789, %v790
      %v792 = vrot.slane %v477, 1
      %v793 = vrot.slane %v479, 1
      %v794 = vsel %vm617, %v792, %v793
      %v795 = vrot.slane %v478, 1
      %v796 = vrot.slane %v480, 1
      %v797 = vsel %vm617, %v795, %v796
      %v798 = vrot.slane %v481, 1
      %v799 = vrot.slane %v483, 1
      %v800 = vsel %vm617, %v798, %v799
      %v801 = vrot.slane %v482, 1
      %v802 = vrot.slane %v484, 1
      %v803 = vsel %vm617, %v801, %v802
      %v804 = vrot.slane %v485, 1
      %v805 = vrot.slane %v487, 1
      %v806 = vsel %vm617, %v804, %v805
      %v807 = vrot.slane %v486, 1
      %v808 = vrot.slane %v488, 1
      %v809 = vsel %vm617, %v807, %v808
      %v874 = vpack.c.bf16 %v626, %v620
      %v875 = vpack.c.bf16 %v629, %v623
      %v876 = vpack.c.bf16 %v638, %v632
      %v877 = vpack.c.bf16 %v641, %v635
      %v878 = vpack.c.bf16 %v650, %v644
      %v879 = vpack.c.bf16 %v653, %v647
      %v880 = vpack.c.bf16 %v662, %v656
      %v881 = vpack.c.bf16 %v665, %v659
      %v882 = vpack.c.bf16 %v674, %v668
      %v883 = vpack.c.bf16 %v677, %v671
      %v884 = vpack.c.bf16 %v686, %v680
      %v885 = vpack.c.bf16 %v689, %v683
      %v886 = vpack.c.bf16 %v698, %v692
      %v887 = vpack.c.bf16 %v701, %v695
      %v888 = vpack.c.bf16 %v710, %v704
      %v889 = vpack.c.bf16 %v713, %v707
      %v890 = vpack.c.bf16 %v722, %v716
      %v891 = vpack.c.bf16 %v725, %v719
      %v892 = vpack.c.bf16 %v734, %v728
      %v893 = vpack.c.bf16 %v737, %v731
      %v894 = vpack.c.bf16 %v746, %v740
      %v895 = vpack.c.bf16 %v749, %v743
      %v896 = vpack.c.bf16 %v758, %v752
      %v897 = vpack.c.bf16 %v761, %v755
      %v898 = vpack.c.bf16 %v770, %v764
      %v899 = vpack.c.bf16 %v773, %v767
      %v900 = vpack.c.bf16 %v782, %v776
      %v901 = vpack.c.bf16 %v785, %v779
      %v902 = vpack.c.bf16 %v794, %v788
      %v903 = vpack.c.bf16 %v797, %v791
      %v904 = vpack.c.bf16 %v806, %v800
      %v905 = vpack.c.bf16 %v809, %v803
      %s906 = scalar_lea.vmem %s1, 256
      %v907 = vld [vmem:[%s906] sm:$0xff]
      %v908 = vld [vmem:[%s906 + $0x8] sm:$0xff]
      %v909 = vld [vmem:[%s906 + $0x10] sm:$0xff]
      %v910 = vld [vmem:[%s906 + $0x18] sm:$0xff]
      %v911 = vld [vmem:[%s906 + $0x20] sm:$0xff]
      %v912 = vld [vmem:[%s906 + $0x28] sm:$0xff]
      %v913 = vld [vmem:[%s906 + $0x30] sm:$0xff]
      %v914 = vld [vmem:[%s906 + $0x38] sm:$0xff]
      %v915 = vld [vmem:[%s906 + $0x40] sm:$0xff]
      %v916 = vld [vmem:[%s906 + $0x48] sm:$0xff]
      %v917 = vld [vmem:[%s906 + $0x50] sm:$0xff]
      %v918 = vld [vmem:[%s906 + $0x58] sm:$0xff]
      %v919 = vld [vmem:[%s906 + $0x60] sm:$0xff]
      %v920 = vld [vmem:[%s906 + $0x68] sm:$0xff]
      %v921 = vld [vmem:[%s906 + $0x70] sm:$0xff]
      %v922 = vld [vmem:[%s906 + $0x78] sm:$0xff]
      %v923 = vld [vmem:[%s906 + $0x80] sm:$0xff]
      %v924 = vld [vmem:[%s906 + $0x88] sm:$0xff]
      %v925 = vld [vmem:[%s906 + $0x90] sm:$0xff]
      %v926 = vld [vmem:[%s906 + $0x98] sm:$0xff]
      %v927 = vld [vmem:[%s906 + $0xa0] sm:$0xff]
      %v928 = vld [vmem:[%s906 + $0xa8] sm:$0xff]
      %v929 = vld [vmem:[%s906 + $0xb0] sm:$0xff]
      %v930 = vld [vmem:[%s906 + $0xb8] sm:$0xff]
      %v931 = vld [vmem:[%s906 + $0xc0] sm:$0xff]
      %v932 = vld [vmem:[%s906 + $0xc8] sm:$0xff]
      %v933 = vld [vmem:[%s906 + $0xd0] sm:$0xff]
      %v934 = vld [vmem:[%s906 + $0xd8] sm:$0xff]
      %v935 = vld [vmem:[%s906 + $0xe0] sm:$0xff]
      %v936 = vld [vmem:[%s906 + $0xe8] sm:$0xff]
      %v937 = vld [vmem:[%s906 + $0xf0] sm:$0xff]
      %v938 = vld [vmem:[%s906 + $0xf8] sm:$0xff]
      %v971 = vunpack.c.l.b16 %v907
      %v972 = vunpack.c.h.b16 %v907
      %v973 = vunpack.c.l.b16 %v908
      %v974 = vunpack.c.h.b16 %v908
      %v975 = vunpack.c.l.b16 %v909
      %v976 = vunpack.c.h.b16 %v909
      %v977 = vunpack.c.l.b16 %v910
      %v978 = vunpack.c.h.b16 %v910
      %v979 = vunpack.c.l.b16 %v911
      %v980 = vunpack.c.h.b16 %v911
      %v981 = vunpack.c.l.b16 %v912
      %v982 = vunpack.c.h.b16 %v912
      %v983 = vunpack.c.l.b16 %v913
      %v984 = vunpack.c.h.b16 %v913
      %v985 = vunpack.c.l.b16 %v914
      %v986 = vunpack.c.h.b16 %v914
      %v987 = vunpack.c.l.b16 %v915
      %v988 = vunpack.c.h.b16 %v915
      %v989 = vunpack.c.l.b16 %v916
      %v990 = vunpack.c.h.b16 %v916
      %v991 = vunpack.c.l.b16 %v917
      %v992 = vunpack.c.h.b16 %v917
      %v993 = vunpack.c.l.b16 %v918
      %v994 = vunpack.c.h.b16 %v918
      %v995 = vunpack.c.l.b16 %v919
      %v996 = vunpack.c.h.b16 %v919
      %v997 = vunpack.c.l.b16 %v920
      %v998 = vunpack.c.h.b16 %v920
      %v999 = vunpack.c.l.b16 %v921
      %v1000 = vunpack.c.h.b16 %v921
      %v1001 = vunpack.c.l.b16 %v922
      %v1002 = vunpack.c.h.b16 %v922
      %v1003 = vunpack.c.l.b16 %v923
      %v1004 = vunpack.c.h.b16 %v923
      %v1005 = vunpack.c.l.b16 %v924
      %v1006 = vunpack.c.h.b16 %v924
      %v1007 = vunpack.c.l.b16 %v925
      %v1008 = vunpack.c.h.b16 %v925
      %v1009 = vunpack.c.l.b16 %v926
      %v1010 = vunpack.c.h.b16 %v926
      %v1011 = vunpack.c.l.b16 %v927
      %v1012 = vunpack.c.h.b16 %v927
      %v1013 = vunpack.c.l.b16 %v928
      %v1014 = vunpack.c.h.b16 %v928
      %v1015 = vunpack.c.l.b16 %v929
      %v1016 = vunpack.c.h.b16 %v929
      %v1017 = vunpack.c.l.b16 %v930
      %v1018 = vunpack.c.h.b16 %v930
      %v1019 = vunpack.c.l.b16 %v931
      %v1020 = vunpack.c.h.b16 %v931
      %v1021 = vunpack.c.l.b16 %v932
      %v1022 = vunpack.c.h.b16 %v932
      %v1023 = vunpack.c.l.b16 %v933
      %v1024 = vunpack.c.h.b16 %v933
      %v1025 = vunpack.c.l.b16 %v934
      %v1026 = vunpack.c.h.b16 %v934
      %v1027 = vunpack.c.l.b16 %v935
      %v1028 = vunpack.c.h.b16 %v935
      %v1029 = vunpack.c.l.b16 %v936
      %v1030 = vunpack.c.h.b16 %v936
      %v1031 = vunpack.c.l.b16 %v937
      %v1032 = vunpack.c.h.b16 %v937
      %v1033 = vunpack.c.l.b16 %v938
      %v1034 = vunpack.c.h.b16 %v938
      %v1035 = vpack.c.b16 %v973, %v971
      %v1036 = vpack.c.b16 %v974, %v972
      %v1037 = vpack.c.b16 %v977, %v975
      %v1038 = vpack.c.b16 %v978, %v976
      %v1039 = vpack.c.b16 %v981, %v979
      %v1040 = vpack.c.b16 %v982, %v980
      %v1041 = vpack.c.b16 %v985, %v983
      %v1042 = vpack.c.b16 %v986, %v984
      %v1043 = vpack.c.b16 %v989, %v987
      %v1044 = vpack.c.b16 %v990, %v988
      %v1045 = vpack.c.b16 %v993, %v991
      %v1046 = vpack.c.b16 %v994, %v992
      %v1047 = vpack.c.b16 %v997, %v995
      %v1048 = vpack.c.b16 %v998, %v996
      %v1049 = vpack.c.b16 %v1001, %v999
      %v1050 = vpack.c.b16 %v1002, %v1000
      %v1051 = vpack.c.b16 %v1005, %v1003
      %v1052 = vpack.c.b16 %v1006, %v1004
      %v1053 = vpack.c.b16 %v1009, %v1007
      %v1054 = vpack.c.b16 %v1010, %v1008
      %v1055 = vpack.c.b16 %v1013, %v1011
      %v1056 = vpack.c.b16 %v1014, %v1012
      %v1057 = vpack.c.b16 %v1017, %v1015
      %v1058 = vpack.c.b16 %v1018, %v1016
      %v1059 = vpack.c.b16 %v1021, %v1019
      %v1060 = vpack.c.b16 %v1022, %v1020
      %v1061 = vpack.c.b16 %v1025, %v1023
      %v1062 = vpack.c.b16 %v1026, %v1024
      %v1063 = vpack.c.b16 %v1029, %v1027
      %v1064 = vpack.c.b16 %v1030, %v1028
      %v1065 = vpack.c.b16 %v1033, %v1031
      %v1066 = vpack.c.b16 %v1034, %v1032
      %1099 = vmatprep.subr.bf16.mxu0 %v1036
      %1100 = vmatpush1.bf16.msra.mxu0 %v1035
      %1101 = vmatprep.subr.bf16.mxu0 %v1038
      %1102 = vmatpush1.bf16.msra.mxu0 %v1037
      %1103 = vmatprep.subr.bf16.mxu0 %v1040
      %1104 = vmatpush1.bf16.msra.mxu0 %v1039
      %1105 = vmatprep.subr.bf16.mxu0 %v1042
      %1106 = vmatpush1.bf16.msra.mxu0 %v1041
      %1107 = vmatprep.subr.bf16.mxu0 %v1044
      %1108 = vmatpush1.bf16.msra.mxu0 %v1043
      %1109 = vmatprep.subr.bf16.mxu0 %v1046
      %1110 = vmatpush1.bf16.msra.mxu0 %v1045
      %1111 = vmatprep.subr.bf16.mxu0 %v1048
      %1112 = vmatpush1.bf16.msra.mxu0 %v1047
      %1113 = vmatprep.subr.bf16.mxu0 %v1050
      %1114 = vmatpush1.bf16.msra.mxu0 %v1049
      %1115 = vmatprep.subr.bf16.mxu0 %v1052
      %1116 = vmatpush1.bf16.msra.mxu0 %v1051
      %1117 = vmatprep.subr.bf16.mxu0 %v1054
      %1118 = vmatpush1.bf16.msra.mxu0 %v1053
      %1119 = vmatprep.subr.bf16.mxu0 %v1056
      %1120 = vmatpush1.bf16.msra.mxu0 %v1055
      %1121 = vmatprep.subr.bf16.mxu0 %v1058
      %1122 = vmatpush1.bf16.msra.mxu0 %v1057
      %1123 = vmatprep.subr.bf16.mxu0 %v1060
      %1124 = vmatpush1.bf16.msra.mxu0 %v1059
      %1125 = vmatprep.subr.bf16.mxu0 %v1062
      %1126 = vmatpush1.bf16.msra.mxu0 %v1061
      %1127 = vmatprep.subr.bf16.mxu0 %v1064
      %1128 = vmatpush1.bf16.msra.mxu0 %v1063
      %1129 = vmatprep.subr.bf16.mxu0 %v1066
      %1130 = vmatpush1.bf16.msra.mxu0 %v1065
      %1131 = vmatprep.mubr.bf16.mxu0 %v875
      %1132 = vmatmul.mubr.bf16.gmra.mrb[0].mxu0 %v874
      %v1133 = vpop.f32.mrb[0].mxu0
      %v1134 = vadd.f32 0.0, %v1133
      %v1135 = vpop.f32.mrb[0].mxu0
      %v1136 = vadd.f32 0.0, %v1135
      %v1137 = vpop.f32.mrb[0].mxu0
      %v1138 = vadd.f32 0.0, %v1137
      %v1139 = vpop.f32.mrb[0].mxu0
      %v1140 = vadd.f32 0.0, %v1139
      %1141 = vmatprep.mubr.bf16.mxu0 %v877
      %1142 = vmatmul.mubr.bf16.gmra.mrb[0].mxu0 %v876
      %v1143 = vpop.f32.mrb[0].mxu0
      %v1144 = vadd.f32 0.0, %v1143
      %v1145 = vpop.f32.mrb[0].mxu0
      %v1146 = vadd.f32 0.0, %v1145
      %v1147 = vpop.f32.mrb[0].mxu0
      %v1148 = vadd.f32 0.0, %v1147
      %v1149 = vpop.f32.mrb[0].mxu0
      %v1150 = vadd.f32 0.0, %v1149
      %1151 = vmatprep.mubr.bf16.mxu0 %v879
      %1152 = vmatmul.mubr.bf16.gmra.mrb[0].mxu0 %v878
      %v1153 = vpop.f32.mrb[0].mxu0
      %v1154 = vadd.f32 0.0, %v1153
      %v1155 = vpop.f32.mrb[0].mxu0
      %v1156 = vadd.f32 0.0, %v1155
      %v1157 = vpop.f32.mrb[0].mxu0
      %v1158 = vadd.f32 0.0, %v1157
      %v1159 = vpop.f32.mrb[0].mxu0
      %v1160 = vadd.f32 0.0, %v1159
      %1161 = vmatprep.mubr.bf16.mxu0 %v881
      %1162 = vmatmul.mubr.bf16.gmra.mrb[0].mxu0 %v880
      %v1163 = vpop.f32.mrb[0].mxu0
      %v1164 = vadd.f32 0.0, %v1163
      %v1165 = vpop.f32.mrb[0].mxu0
      %v1166 = vadd.f32 0.0, %v1165
      %v1167 = vpop.f32.mrb[0].mxu0
      %v1168 = vadd.f32 0.0, %v1167
      %v1169 = vpop.f32.mrb[0].mxu0
      %v1170 = vadd.f32 0.0, %v1169
      %1171 = vmatprep.mubr.bf16.mxu0 %v883
      %1172 = vmatmul.mubr.bf16.gmra.mrb[0].mxu0 %v882
      %v1173 = vpop.f32.mrb[0].mxu0
      %v1174 = vadd.f32 0.0, %v1173
      %v1175 = vpop.f32.mrb[0].mxu0
      %v1176 = vadd.f32 0.0, %v1175
      %v1177 = vpop.f32.mrb[0].mxu0
      %v1178 = vadd.f32 0.0, %v1177
      %v1179 = vpop.f32.mrb[0].mxu0
      %v1180 = vadd.f32 0.0, %v1179
      %1181 = vmatprep.mubr.bf16.mxu0 %v885
      %1182 = vmatmul.mubr.bf16.gmra.mrb[0].mxu0 %v884
      %v1183 = vpop.f32.mrb[0].mxu0
      %v1184 = vadd.f32 0.0, %v1183
      %v1185 = vpop.f32.mrb[0].mxu0
      %v1186 = vadd.f32 0.0, %v1185
      %v1187 = vpop.f32.mrb[0].mxu0
      %v1188 = vadd.f32 0.0, %v1187
      %v1189 = vpop.f32.mrb[0].mxu0
      %v1190 = vadd.f32 0.0, %v1189
      %1191 = vmatprep.mubr.bf16.mxu0 %v887
      %1192 = vmatmul.mubr.bf16.gmra.mrb[0].mxu0 %v886
      %v1193 = vpop.f32.mrb[0].mxu0
      %v1194 = vadd.f32 0.0, %v1193
      %v1195 = vpop.f32.mrb[0].mxu0
      %v1196 = vadd.f32 0.0, %v1195
      %v1197 = vpop.f32.mrb[0].mxu0
      %v1198 = vadd.f32 0.0, %v1197
      %v1199 = vpop.f32.mrb[0].mxu0
      %v1200 = vadd.f32 0.0, %v1199
      %1201 = vmatprep.mubr.bf16.mxu0 %v889
      %1202 = vmatmul.mubr.bf16.gmra.mrb[0].mxu0 %v888
      %v1203 = vpop.f32.mrb[0].mxu0
      %v1204 = vadd.f32 0.0, %v1203
      %v1205 = vpop.f32.mrb[0].mxu0
      %v1206 = vadd.f32 0.0, %v1205
      %v1207 = vpop.f32.mrb[0].mxu0
      %v1208 = vadd.f32 0.0, %v1207
      %v1209 = vpop.f32.mrb[0].mxu0
      %v1210 = vadd.f32 0.0, %v1209
      %1211 = vmatprep.mubr.bf16.mxu0 %v891
      %1212 = vmatmul.mubr.bf16.gmra.mrb[0].mxu0 %v890
      %v1213 = vpop.f32.mrb[0].mxu0
      %v1214 = vadd.f32 0.0, %v1213
      %v1215 = vpop.f32.mrb[0].mxu0
      %v1216 = vadd.f32 0.0, %v1215
      %v1217 = vpop.f32.mrb[0].mxu0
      %v1218 = vadd.f32 0.0, %v1217
      %v1219 = vpop.f32.mrb[0].mxu0
      %v1220 = vadd.f32 0.0, %v1219
      %1221 = vmatprep.mubr.bf16.mxu0 %v893
      %1222 = vmatmul.mubr.bf16.gmra.mrb[0].mxu0 %v892
      %v1223 = vpop.f32.mrb[0].mxu0
      %v1224 = vadd.f32 0.0, %v1223
      %v1225 = vpop.f32.mrb[0].mxu0
      %v1226 = vadd.f32 0.0, %v1225
      %v1227 = vpop.f32.mrb[0].mxu0
      %v1228 = vadd.f32 0.0, %v1227
      %v1229 = vpop.f32.mrb[0].mxu0
      %v1230 = vadd.f32 0.0, %v1229
      %1231 = vmatprep.mubr.bf16.mxu0 %v895
      %1232 = vmatmul.mubr.bf16.gmra.mrb[0].mxu0 %v894
      %v1233 = vpop.f32.mrb[0].mxu0
      %v1234 = vadd.f32 0.0, %v1233
      %v1235 = vpop.f32.mrb[0].mxu0
      %v1236 = vadd.f32 0.0, %v1235
      %v1237 = vpop.f32.mrb[0].mxu0
      %v1238 = vadd.f32 0.0, %v1237
      %v1239 = vpop.f32.mrb[0].mxu0
      %v1240 = vadd.f32 0.0, %v1239
      %1241 = vmatprep.mubr.bf16.mxu0 %v897
      %1242 = vmatmul.mubr.bf16.gmra.mrb[0].mxu0 %v896
      %v1243 = vpop.f32.mrb[0].mxu0
      %v1244 = vadd.f32 0.0, %v1243
      %v1245 = vpop.f32.mrb[0].mxu0
      %v1246 = vadd.f32 0.0, %v1245
      %v1247 = vpop.f32.mrb[0].mxu0
      %v1248 = vadd.f32 0.0, %v1247
      %v1249 = vpop.f32.mrb[0].mxu0
      %v1250 = vadd.f32 0.0, %v1249
      %1251 = vmatprep.mubr.bf16.mxu0 %v899
      %1252 = vmatmul.mubr.bf16.gmra.mrb[0].mxu0 %v898
      %v1253 = vpop.f32.mrb[0].mxu0
      %v1254 = vadd.f32 0.0, %v1253
      %v1255 = vpop.f32.mrb[0].mxu0
      %v1256 = vadd.f32 0.0, %v1255
      %v1257 = vpop.f32.mrb[0].mxu0
      %v1258 = vadd.f32 0.0, %v1257
      %v1259 = vpop.f32.mrb[0].mxu0
      %v1260 = vadd.f32 0.0, %v1259
      %1261 = vmatprep.mubr.bf16.mxu0 %v901
      %1262 = vmatmul.mubr.bf16.gmra.mrb[0].mxu0 %v900
      %v1263 = vpop.f32.mrb[0].mxu0
      %v1264 = vadd.f32 0.0, %v1263
      %v1265 = vpop.f32.mrb[0].mxu0
      %v1266 = vadd.f32 0.0, %v1265
      %v1267 = vpop.f32.mrb[0].mxu0
      %v1268 = vadd.f32 0.0, %v1267
      %v1269 = vpop.f32.mrb[0].mxu0
      %v1270 = vadd.f32 0.0, %v1269
      %1271 = vmatprep.mubr.bf16.mxu0 %v903
      %1272 = vmatmul.mubr.bf16.gmra.mrb[0].mxu0 %v902
      %v1273 = vpop.f32.mrb[0].mxu0
      %v1274 = vadd.f32 0.0, %v1273
      %v1275 = vpop.f32.mrb[0].mxu0
      %v1276 = vadd.f32 0.0, %v1275
      %v1277 = vpop.f32.mrb[0].mxu0
      %v1278 = vadd.f32 0.0, %v1277
      %v1279 = vpop.f32.mrb[0].mxu0
      %v1280 = vadd.f32 0.0, %v1279
      %1281 = vmatprep.mubr.bf16.mxu0 %v905
      %1282 = vmatmul.mubr.bf16.gmra.mrb[0].mxu0 %v904
      %v1283 = vpop.f32.mrb[0].mxu0
      %v1284 = vadd.f32 0.0, %v1283
      %v1285 = vpop.f32.mrb[0].mxu0
      %v1286 = vadd.f32 0.0, %v1285
      %v1287 = vpop.f32.mrb[0].mxu0
      %v1288 = vadd.f32 0.0, %v1287
      %v1289 = vpop.f32.mrb[0].mxu0
      %v1290 = vadd.f32 0.0, %v1289
      %1291 = vdwg.mxu0
      %v1324 = vunpack.c.l.b16 %v329
      %v1325 = vunpack.c.h.b16 %v329
      %v1326 = vunpack.c.l.b16 %v330
      %v1327 = vunpack.c.h.b16 %v330
      %v1328 = vunpack.c.l.b16 %v331
      %v1329 = vunpack.c.h.b16 %v331
      %v1330 = vunpack.c.l.b16 %v332
      %v1331 = vunpack.c.h.b16 %v332
      %v1332 = vunpack.c.l.b16 %v333
      %v1333 = vunpack.c.h.b16 %v333
      %v1334 = vunpack.c.l.b16 %v334
      %v1335 = vunpack.c.h.b16 %v334
      %v1336 = vunpack.c.l.b16 %v335
      %v1337 = vunpack.c.h.b16 %v335
      %v1338 = vunpack.c.l.b16 %v336
      %v1339 = vunpack.c.h.b16 %v336
      %v1340 = vunpack.c.l.b16 %v337
      %v1341 = vunpack.c.h.b16 %v337
      %v1342 = vunpack.c.l.b16 %v338
      %v1343 = vunpack.c.h.b16 %v338
      %v1344 = vunpack.c.l.b16 %v339
      %v1345 = vunpack.c.h.b16 %v339
      %v1346 = vunpack.c.l.b16 %v340
      %v1347 = vunpack.c.h.b16 %v340
      %v1348 = vunpack.c.l.b16 %v341
      %v1349 = vunpack.c.h.b16 %v341
      %v1350 = vunpack.c.l.b16 %v342
      %v1351 = vunpack.c.h.b16 %v342
      %v1352 = vunpack.c.l.b16 %v343
      %v1353 = vunpack.c.h.b16 %v343
      %v1354 = vunpack.c.l.b16 %v344
      %v1355 = vunpack.c.h.b16 %v344
      %v1356 = vunpack.c.l.b16 %v345
      %v1357 = vunpack.c.h.b16 %v345
      %v1358 = vunpack.c.l.b16 %v346
      %v1359 = vunpack.c.h.b16 %v346
      %v1360 = vunpack.c.l.b16 %v347
      %v1361 = vunpack.c.h.b16 %v347
      %v1362 = vunpack.c.l.b16 %v348
      %v1363 = vunpack.c.h.b16 %v348
      %v1364 = vunpack.c.l.b16 %v349
      %v1365 = vunpack.c.h.b16 %v349
      %v1366 = vunpack.c.l.b16 %v350
      %v1367 = vunpack.c.h.b16 %v350
      %v1368 = vunpack.c.l.b16 %v351
      %v1369 = vunpack.c.h.b16 %v351
      %v1370 = vunpack.c.l.b16 %v352
      %v1371 = vunpack.c.h.b16 %v352
      %v1372 = vunpack.c.l.b16 %v353
      %v1373 = vunpack.c.h.b16 %v353
      %v1374 = vunpack.c.l.b16 %v354
      %v1375 = vunpack.c.h.b16 %v354
      %v1376 = vunpack.c.l.b16 %v355
      %v1377 = vunpack.c.h.b16 %v355
      %v1378 = vunpack.c.l.b16 %v356
      %v1379 = vunpack.c.h.b16 %v356
      %v1380 = vunpack.c.l.b16 %v357
      %v1381 = vunpack.c.h.b16 %v357
      %v1382 = vunpack.c.l.b16 %v358
      %v1383 = vunpack.c.h.b16 %v358
      %v1384 = vunpack.c.l.b16 %v359
      %v1385 = vunpack.c.h.b16 %v359
      %v1386 = vunpack.c.l.b16 %v360
      %v1387 = vunpack.c.h.b16 %v360
      %v1388 = vpack.c.b16 %v1326, %v1324
      %v1389 = vpack.c.b16 %v1327, %v1325
      %v1390 = vpack.c.b16 %v1330, %v1328
      %v1391 = vpack.c.b16 %v1331, %v1329
      %v1392 = vpack.c.b16 %v1334, %v1332
      %v1393 = vpack.c.b16 %v1335, %v1333
      %v1394 = vpack.c.b16 %v1338, %v1336
      %v1395 = vpack.c.b16 %v1339, %v1337
      %v1396 = vpack.c.b16 %v1342, %v1340
      %v1397 = vpack.c.b16 %v1343, %v1341
      %v1398 = vpack.c.b16 %v1346, %v1344
      %v1399 = vpack.c.b16 %v1347, %v1345
      %v1400 = vpack.c.b16 %v1350, %v1348
      %v1401 = vpack.c.b16 %v1351, %v1349
      %v1402 = vpack.c.b16 %v1354, %v1352
      %v1403 = vpack.c.b16 %v1355, %v1353
      %v1404 = vpack.c.b16 %v1358, %v1356
      %v1405 = vpack.c.b16 %v1359, %v1357
      %v1406 = vpack.c.b16 %v1362, %v1360
      %v1407 = vpack.c.b16 %v1363, %v1361
      %v1408 = vpack.c.b16 %v1366, %v1364
      %v1409 = vpack.c.b16 %v1367, %v1365
      %v1410 = vpack.c.b16 %v1370, %v1368
      %v1411 = vpack.c.b16 %v1371, %v1369
      %v1412 = vpack.c.b16 %v1374, %v1372
      %v1413 = vpack.c.b16 %v1375, %v1373
      %v1414 = vpack.c.b16 %v1378, %v1376
      %v1415 = vpack.c.b16 %v1379, %v1377
      %v1416 = vpack.c.b16 %v1382, %v1380
      %v1417 = vpack.c.b16 %v1383, %v1381
      %v1418 = vpack.c.b16 %v1386, %v1384
      %v1419 = vpack.c.b16 %v1387, %v1385
      %1452 = vmatprep.subr.bf16.mxu0 %v1389
      %1453 = vmatpush1.bf16.msra.mxu0 %v1388
      %1454 = vmatprep.subr.bf16.mxu0 %v1391
      %1455 = vmatpush1.bf16.msra.mxu0 %v1390
      %1456 = vmatprep.subr.bf16.mxu0 %v1393
      %1457 = vmatpush1.bf16.msra.mxu0 %v1392
      %1458 = vmatprep.subr.bf16.mxu0 %v1395
      %1459 = vmatpush1.bf16.msra.mxu0 %v1394
      %1460 = vmatprep.subr.bf16.mxu0 %v1397
      %1461 = vmatpush1.bf16.msra.mxu0 %v1396
      %1462 = vmatprep.subr.bf16.mxu0 %v1399
      %1463 = vmatpush1.bf16.msra.mxu0 %v1398
      %1464 = vmatprep.subr.bf16.mxu0 %v1401
      %1465 = vmatpush1.bf16.msra.mxu0 %v1400
      %1466 = vmatprep.subr.bf16.mxu0 %v1403
      %1467 = vmatpush1.bf16.msra.mxu0 %v1402
      %1468 = vmatprep.subr.bf16.mxu0 %v1405
      %1469 = vmatpush1.bf16.msra.mxu0 %v1404
      %1470 = vmatprep.subr.bf16.mxu0 %v1407
      %1471 = vmatpush1.bf16.msra.mxu0 %v1406
      %1472 = vmatprep.subr.bf16.mxu0 %v1409
      %1473 = vmatpush1.bf16.msra.mxu0 %v1408
      %1474 = vmatprep.subr.bf16.mxu0 %v1411
      %1475 = vmatpush1.bf16.msra.mxu0 %v1410
      %1476 = vmatprep.subr.bf16.mxu0 %v1413
      %1477 = vmatpush1.bf16.msra.mxu0 %v1412
      %1478 = vmatprep.subr.bf16.mxu0 %v1415
      %1479 = vmatpush1.bf16.msra.mxu0 %v1414
      %1480 = vmatprep.subr.bf16.mxu0 %v1417
      %1481 = vmatpush1.bf16.msra.mxu0 %v1416
      %1482 = vmatprep.subr.bf16.mxu0 %v1419
      %1483 = vmatpush1.bf16.msra.mxu0 %v1418
      %1484 = vmatprep.mubr.bf16.mxu0 %v298
      %1485 = vmatmul.mubr.bf16.gmra.mrb[0].mxu0 %v297
      %v1486 = vpop.f32.mrb[0].mxu0
      %v1487 = vadd.f32 %v1134, %v1486
      %v1488 = vpop.f32.mrb[0].mxu0
      %v1489 = vadd.f32 %v1136, %v1488
      %v1490 = vpop.f32.mrb[0].mxu0
      %v1491 = vadd.f32 %v1138, %v1490
      %v1492 = vpop.f32.mrb[0].mxu0
      %v1493 = vadd.f32 %v1140, %v1492
      %1494 = vmatprep.mubr.bf16.mxu0 %v300
      %1495 = vmatmul.mubr.bf16.gmra.mrb[0].mxu0 %v299
      %v1496 = vpop.f32.mrb[0].mxu0
      %v1497 = vadd.f32 %v1144, %v1496
      %v1498 = vpop.f32.mrb[0].mxu0
      %v1499 = vadd.f32 %v1146, %v1498
      %v1500 = vpop.f32.mrb[0].mxu0
      %v1501 = vadd.f32 %v1148, %v1500
      %v1502 = vpop.f32.mrb[0].mxu0
      %v1503 = vadd.f32 %v1150, %v1502
      %1504 = vmatprep.mubr.bf16.mxu0 %v302
      %1505 = vmatmul.mubr.bf16.gmra.mrb[0].mxu0 %v301
      %v1506 = vpop.f32.mrb[0].mxu0
      %v1507 = vadd.f32 %v1154, %v1506
      %v1508 = vpop.f32.mrb[0].mxu0
      %v1509 = vadd.f32 %v1156, %v1508
      %v1510 = vpop.f32.mrb[0].mxu0
      %v1511 = vadd.f32 %v1158, %v1510
      %v1512 = vpop.f32.mrb[0].mxu0
      %v1513 = vadd.f32 %v1160, %v1512
      %1514 = vmatprep.mubr.bf16.mxu0 %v304
      %1515 = vmatmul.mubr.bf16.gmra.mrb[0].mxu0 %v303
      %v1516 = vpop.f32.mrb[0].mxu0
      %v1517 = vadd.f32 %v1164, %v1516
      %v1518 = vpop.f32.mrb[0].mxu0
      %v1519 = vadd.f32 %v1166, %v1518
      %v1520 = vpop.f32.mrb[0].mxu0
      %v1521 = vadd.f32 %v1168, %v1520
      %v1522 = vpop.f32.mrb[0].mxu0
      %v1523 = vadd.f32 %v1170, %v1522
      %1524 = vmatprep.mubr.bf16.mxu0 %v306
      %1525 = vmatmul.mubr.bf16.gmra.mrb[0].mxu0 %v305
      %v1526 = vpop.f32.mrb[0].mxu0
      %v1527 = vadd.f32 %v1174, %v1526
      %v1528 = vpop.f32.mrb[0].mxu0
      %v1529 = vadd.f32 %v1176, %v1528
      %v1530 = vpop.f32.mrb[0].mxu0
      %v1531 = vadd.f32 %v1178, %v1530
      %v1532 = vpop.f32.mrb[0].mxu0
      %v1533 = vadd.f32 %v1180, %v1532
      %1534 = vmatprep.mubr.bf16.mxu0 %v308
      %1535 = vmatmul.mubr.bf16.gmra.mrb[0].mxu0 %v307
      %v1536 = vpop.f32.mrb[0].mxu0
      %v1537 = vadd.f32 %v1184, %v1536
      %v1538 = vpop.f32.mrb[0].mxu0
      %v1539 = vadd.f32 %v1186, %v1538
      %v1540 = vpop.f32.mrb[0].mxu0
      %v1541 = vadd.f32 %v1188, %v1540
      %v1542 = vpop.f32.mrb[0].mxu0
      %v1543 = vadd.f32 %v1190, %v1542
      %1544 = vmatprep.mubr.bf16.mxu0 %v310
      %1545 = vmatmul.mubr.bf16.gmra.mrb[0].mxu0 %v309
      %v1546 = vpop.f32.mrb[0].mxu0
      %v1547 = vadd.f32 %v1194, %v1546
      %v1548 = vpop.f32.mrb[0].mxu0
      %v1549 = vadd.f32 %v1196, %v1548
      %v1550 = vpop.f32.mrb[0].mxu0
      %v1551 = vadd.f32 %v1198, %v1550
      %v1552 = vpop.f32.mrb[0].mxu0
      %v1553 = vadd.f32 %v1200, %v1552
      %1554 = vmatprep.mubr.bf16.mxu0 %v312
      %1555 = vmatmul.mubr.bf16.gmra.mrb[0].mxu0 %v311
      %v1556 = vpop.f32.mrb[0].mxu0
      %v1557 = vadd.f32 %v1204, %v1556
      %v1558 = vpop.f32.mrb[0].mxu0
      %v1559 = vadd.f32 %v1206, %v1558
      %v1560 = vpop.f32.mrb[0].mxu0
      %v1561 = vadd.f32 %v1208, %v1560
      %v1562 = vpop.f32.mrb[0].mxu0
      %v1563 = vadd.f32 %v1210, %v1562
      %1564 = vmatprep.mubr.bf16.mxu0 %v314
      %1565 = vmatmul.mubr.bf16.gmra.mrb[0].mxu0 %v313
      %v1566 = vpop.f32.mrb[0].mxu0
      %v1567 = vadd.f32 %v1214, %v1566
      %v1568 = vpop.f32.mrb[0].mxu0
      %v1569 = vadd.f32 %v1216, %v1568
      %v1570 = vpop.f32.mrb[0].mxu0
      %v1571 = vadd.f32 %v1218, %v1570
      %v1572 = vpop.f32.mrb[0].mxu0
      %v1573 = vadd.f32 %v1220, %v1572
      %1574 = vmatprep.mubr.bf16.mxu0 %v316
      %1575 = vmatmul.mubr.bf16.gmra.mrb[0].mxu0 %v315
      %v1576 = vpop.f32.mrb[0].mxu0
      %v1577 = vadd.f32 %v1224, %v1576
      %v1578 = vpop.f32.mrb[0].mxu0
      %v1579 = vadd.f32 %v1226, %v1578
      %v1580 = vpop.f32.mrb[0].mxu0
      %v1581 = vadd.f32 %v1228, %v1580
      %v1582 = vpop.f32.mrb[0].mxu0
      %v1583 = vadd.f32 %v1230, %v1582
      %1584 = vmatprep.mubr.bf16.mxu0 %v318
      %1585 = vmatmul.mubr.bf16.gmra.mrb[0].mxu0 %v317
      %v1586 = vpop.f32.mrb[0].mxu0
      %v1587 = vadd.f32 %v1234, %v1586
      %v1588 = vpop.f32.mrb[0].mxu0
      %v1589 = vadd.f32 %v1236, %v1588
      %v1590 = vpop.f32.mrb[0].mxu0
      %v1591 = vadd.f32 %v1238, %v1590
      %v1592 = vpop.f32.mrb[0].mxu0
      %v1593 = vadd.f32 %v1240, %v1592
      %1594 = vmatprep.mubr.bf16.mxu0 %v320
      %1595 = vmatmul.mubr.bf16.gmra.mrb[0].mxu0 %v319
      %v1596 = vpop.f32.mrb[0].mxu0
      %v1597 = vadd.f32 %v1244, %v1596
      %v1598 = vpop.f32.mrb[0].mxu0
      %v1599 = vadd.f32 %v1246, %v1598
      %v1600 = vpop.f32.mrb[0].mxu0
      %v1601 = vadd.f32 %v1248, %v1600
      %v1602 = vpop.f32.mrb[0].mxu0
      %v1603 = vadd.f32 %v1250, %v1602
      %1604 = vmatprep.mubr.bf16.mxu0 %v322
      %1605 = vmatmul.mubr.bf16.gmra.mrb[0].mxu0 %v321
      %v1606 = vpop.f32.mrb[0].mxu0
      %v1607 = vadd.f32 %v1254, %v1606
      %v1608 = vpop.f32.mrb[0].mxu0
      %v1609 = vadd.f32 %v1256, %v1608
      %v1610 = vpop.f32.mrb[0].mxu0
      %v1611 = vadd.f32 %v1258, %v1610
      %v1612 = vpop.f32.mrb[0].mxu0
      %v1613 = vadd.f32 %v1260, %v1612
      %1614 = vmatprep.mubr.bf16.mxu0 %v324
      %1615 = vmatmul.mubr.bf16.gmra.mrb[0].mxu0 %v323
      %v1616 = vpop.f32.mrb[0].mxu0
      %v1617 = vadd.f32 %v1264, %v1616
      %v1618 = vpop.f32.mrb[0].mxu0
      %v1619 = vadd.f32 %v1266, %v1618
      %v1620 = vpop.f32.mrb[0].mxu0
      %v1621 = vadd.f32 %v1268, %v1620
      %v1622 = vpop.f32.mrb[0].mxu0
      %v1623 = vadd.f32 %v1270, %v1622
      %1624 = vmatprep.mubr.bf16.mxu0 %v326
      %1625 = vmatmul.mubr.bf16.gmra.mrb[0].mxu0 %v325
      %v1626 = vpop.f32.mrb[0].mxu0
      %v1627 = vadd.f32 %v1274, %v1626
      %v1628 = vpop.f32.mrb[0].mxu0
      %v1629 = vadd.f32 %v1276, %v1628
      %v1630 = vpop.f32.mrb[0].mxu0
      %v1631 = vadd.f32 %v1278, %v1630
      %v1632 = vpop.f32.mrb[0].mxu0
      %v1633 = vadd.f32 %v1280, %v1632
      %1634 = vmatprep.mubr.bf16.mxu0 %v328
      %1635 = vmatmul.mubr.bf16.gmra.mrb[0].mxu0 %v327
      %v1636 = vpop.f32.mrb[0].mxu0
      %v1637 = vadd.f32 %v1284, %v1636
      %v1638 = vpop.f32.mrb[0].mxu0
      %v1639 = vadd.f32 %v1286, %v1638
      %v1640 = vpop.f32.mrb[0].mxu0
      %v1641 = vadd.f32 %v1288, %v1640
      %v1642 = vpop.f32.mrb[0].mxu0
      %v1643 = vadd.f32 %v1290, %v1642
      %1644 = vdwg.mxu0
      %v1645 = vld [vmem:[%s224] sm:$0xfc]
      %v1646 = vld [vmem:[%s224 + $0x8] sm:$0xfc]
      %v1647 = vld [vmem:[%s224 + $0x10] sm:$0x3]
      %v1648 = vld [vmem:[%s224 + $0x18] sm:$0x3]
      %v1649 = vld [vmem:[%s224 + $0x20] sm:$0xfc]
      %v1650 = vld [vmem:[%s224 + $0x28] sm:$0xfc]
      %v1651 = vld [vmem:[%s224 + $0x30] sm:$0x3]
      %v1652 = vld [vmem:[%s224 + $0x38] sm:$0x3]
      %v1653 = vld [vmem:[%s224 + $0x40] sm:$0xfc]
      %v1654 = vld [vmem:[%s224 + $0x48] sm:$0xfc]
      %v1655 = vld [vmem:[%s224 + $0x50] sm:$0x3]
      %v1656 = vld [vmem:[%s224 + $0x58] sm:$0x3]
      %v1657 = vld [vmem:[%s224 + $0x60] sm:$0xfc]
      %v1658 = vld [vmem:[%s224 + $0x68] sm:$0xfc]
      %v1659 = vld [vmem:[%s224 + $0x70] sm:$0x3]
      %v1660 = vld [vmem:[%s224 + $0x78] sm:$0x3]
      %v1661 = vld [vmem:[%s224 + $0x80] sm:$0xfc]
      %v1662 = vld [vmem:[%s224 + $0x88] sm:$0xfc]
      %v1663 = vld [vmem:[%s224 + $0x90] sm:$0x3]
      %v1664 = vld [vmem:[%s224 + $0x98] sm:$0x3]
      %v1665 = vld [vmem:[%s224 + $0xa0] sm:$0xfc]
      %v1666 = vld [vmem:[%s224 + $0xa8] sm:$0xfc]
      %v1667 = vld [vmem:[%s224 + $0xb0] sm:$0x3]
      %v1668 = vld [vmem:[%s224 + $0xb8] sm:$0x3]
      %v1669 = vld [vmem:[%s224 + $0xc0] sm:$0xfc]
      %v1670 = vld [vmem:[%s224 + $0xc8] sm:$0xfc]
      %v1671 = vld [vmem:[%s224 + $0xd0] sm:$0x3]
      %v1672 = vld [vmem:[%s224 + $0xd8] sm:$0x3]
      %v1673 = vld [vmem:[%s224 + $0xe0] sm:$0xfc]
      %v1674 = vld [vmem:[%s224 + $0xe8] sm:$0xfc]
      %v1675 = vld [vmem:[%s224 + $0xf0] sm:$0x3]
      %v1676 = vld [vmem:[%s224 + $0xf8] sm:$0x3]
      %v1677 = vld [vmem:[%s224 + $0x100] sm:$0xfc]
      %v1678 = vld [vmem:[%s224 + $0x108] sm:$0xfc]
      %v1679 = vld [vmem:[%s224 + $0x110] sm:$0x3]
      %v1680 = vld [vmem:[%s224 + $0x118] sm:$0x3]
      %v1681 = vld [vmem:[%s224 + $0x120] sm:$0xfc]
      %v1682 = vld [vmem:[%s224 + $0x128] sm:$0xfc]
      %v1683 = vld [vmem:[%s224 + $0x130] sm:$0x3]
      %v1684 = vld [vmem:[%s224 + $0x138] sm:$0x3]
      %v1685 = vld [vmem:[%s224 + $0x140] sm:$0xfc]
      %v1686 = vld [vmem:[%s224 + $0x148] sm:$0xfc]
      %v1687 = vld [vmem:[%s224 + $0x150] sm:$0x3]
      %v1688 = vld [vmem:[%s224 + $0x158] sm:$0x3]
      %v1689 = vld [vmem:[%s224 + $0x160] sm:$0xfc]
      %v1690 = vld [vmem:[%s224 + $0x168] sm:$0xfc]
      %v1691 = vld [vmem:[%s224 + $0x170] sm:$0x3]
      %v1692 = vld [vmem:[%s224 + $0x178] sm:$0x3]
      %v1693 = vld [vmem:[%s224 + $0x180] sm:$0xfc]
      %v1694 = vld [vmem:[%s224 + $0x188] sm:$0xfc]
      %v1695 = vld [vmem:[%s224 + $0x190] sm:$0x3]
      %v1696 = vld [vmem:[%s224 + $0x198] sm:$0x3]
      %v1697 = vld [vmem:[%s224 + $0x1a0] sm:$0xfc]
      %v1698 = vld [vmem:[%s224 + $0x1a8] sm:$0xfc]
      %v1699 = vld [vmem:[%s224 + $0x1b0] sm:$0x3]
      %v1700 = vld [vmem:[%s224 + $0x1b8] sm:$0x3]
      %v1701 = vld [vmem:[%s224 + $0x1c0] sm:$0xfc]
      %v1702 = vld [vmem:[%s224 + $0x1c8] sm:$0xfc]
      %v1703 = vld [vmem:[%s224 + $0x1d0] sm:$0x3]
      %v1704 = vld [vmem:[%s224 + $0x1d8] sm:$0x3]
      %v1705 = vld [vmem:[%s224 + $0x1e0] sm:$0xfc]
      %v1706 = vld [vmem:[%s224 + $0x1e8] sm:$0xfc]
      %v1707 = vld [vmem:[%s224 + $0x1f0] sm:$0x3]
      %v1708 = vld [vmem:[%s224 + $0x1f8] sm:$0x3]
      %v1709 = vld [vmem:[%s224 + $0x200] sm:$0xfc]
      %v1710 = vld [vmem:[%s224 + $0x208] sm:$0xfc]
      %v1711 = vld [vmem:[%s224 + $0x210] sm:$0x3]
      %v1712 = vld [vmem:[%s224 + $0x218] sm:$0x3]
      %v1713 = vld [vmem:[%s224 + $0x220] sm:$0xfc]
      %v1714 = vld [vmem:[%s224 + $0x228] sm:$0xfc]
      %v1715 = vld [vmem:[%s224 + $0x230] sm:$0x3]
      %v1716 = vld [vmem:[%s224 + $0x238] sm:$0x3]
      %v1717 = vld [vmem:[%s224 + $0x240] sm:$0xfc]
      %v1718 = vld [vmem:[%s224 + $0x248] sm:$0xfc]
      %v1719 = vld [vmem:[%s224 + $0x250] sm:$0x3]
      %v1720 = vld [vmem:[%s224 + $0x258] sm:$0x3]
      %v1721 = vld [vmem:[%s224 + $0x260] sm:$0xfc]
      %v1722 = vld [vmem:[%s224 + $0x268] sm:$0xfc]
      %v1723 = vld [vmem:[%s224 + $0x270] sm:$0x3]
      %v1724 = vld [vmem:[%s224 + $0x278] sm:$0x3]
      %v1725 = vld [vmem:[%s224 + $0x280] sm:$0xfc]
      %v1726 = vld [vmem:[%s224 + $0x288] sm:$0xfc]
      %v1727 = vld [vmem:[%s224 + $0x290] sm:$0x3]
      %v1728 = vld [vmem:[%s224 + $0x298] sm:$0x3]
      %v1729 = vld [vmem:[%s224 + $0x2a0] sm:$0xfc]
      %v1730 = vld [vmem:[%s224 + $0x2a8] sm:$0xfc]
      %v1731 = vld [vmem:[%s224 + $0x2b0] sm:$0x3]
      %v1732 = vld [vmem:[%s224 + $0x2b8] sm:$0x3]
      %v1733 = vld [vmem:[%s224 + $0x2c0] sm:$0xfc]
      %v1734 = vld [vmem:[%s224 + $0x2c8] sm:$0xfc]
      %v1735 = vld [vmem:[%s224 + $0x2d0] sm:$0x3]
      %v1736 = vld [vmem:[%s224 + $0x2d8] sm:$0x3]
      %v1737 = vld [vmem:[%s224 + $0x2e0] sm:$0xfc]
      %v1738 = vld [vmem:[%s224 + $0x2e8] sm:$0xfc]
      %v1739 = vld [vmem:[%s224 + $0x2f0] sm:$0x3]
      %v1740 = vld [vmem:[%s224 + $0x2f8] sm:$0x3]
      %v1741 = vld [vmem:[%s224 + $0x300] sm:$0xfc]
      %v1742 = vld [vmem:[%s224 + $0x308] sm:$0xfc]
      %v1743 = vld [vmem:[%s224 + $0x310] sm:$0x3]
      %v1744 = vld [vmem:[%s224 + $0x318] sm:$0x3]
      %v1745 = vld [vmem:[%s224 + $0x320] sm:$0xfc]
      %v1746 = vld [vmem:[%s224 + $0x328] sm:$0xfc]
      %v1747 = vld [vmem:[%s224 + $0x330] sm:$0x3]
      %v1748 = vld [vmem:[%s224 + $0x338] sm:$0x3]
      %v1749 = vld [vmem:[%s224 + $0x340] sm:$0xfc]
      %v1750 = vld [vmem:[%s224 + $0x348] sm:$0xfc]
      %v1751 = vld [vmem:[%s224 + $0x350] sm:$0x3]
      %v1752 = vld [vmem:[%s224 + $0x358] sm:$0x3]
      %v1753 = vld [vmem:[%s224 + $0x360] sm:$0xfc]
      %v1754 = vld [vmem:[%s224 + $0x368] sm:$0xfc]
      %v1755 = vld [vmem:[%s224 + $0x370] sm:$0x3]
      %v1756 = vld [vmem:[%s224 + $0x378] sm:$0x3]
      %v1757 = vld [vmem:[%s224 + $0x380] sm:$0xfc]
      %v1758 = vld [vmem:[%s224 + $0x388] sm:$0xfc]
      %v1759 = vld [vmem:[%s224 + $0x390] sm:$0x3]
      %v1760 = vld [vmem:[%s224 + $0x398] sm:$0x3]
      %v1761 = vld [vmem:[%s224 + $0x3a0] sm:$0xfc]
      %v1762 = vld [vmem:[%s224 + $0x3a8] sm:$0xfc]
      %v1763 = vld [vmem:[%s224 + $0x3b0] sm:$0x3]
      %v1764 = vld [vmem:[%s224 + $0x3b8] sm:$0x3]
      %v1765 = vld [vmem:[%s224 + $0x3c0] sm:$0xfc]
      %v1766 = vld [vmem:[%s224 + $0x3c8] sm:$0xfc]
      %v1767 = vld [vmem:[%s224 + $0x3d0] sm:$0x3]
      %v1768 = vld [vmem:[%s224 + $0x3d8] sm:$0x3]
      %v1769 = vld [vmem:[%s224 + $0x3e0] sm:$0xfc]
      %v1770 = vld [vmem:[%s224 + $0x3e8] sm:$0xfc]
      %v1771 = vld [vmem:[%s224 + $0x3f0] sm:$0x3]
      %v1772 = vld [vmem:[%s224 + $0x3f8] sm:$0x3]
      %vm1901 = vcmask 1045504
      %v1902 = vrot.slane %v1645, 2
      %v1903 = vrot.slane %v1647, 2
      %v1904 = vsel %vm1901, %v1902, %v1903
      %v1905 = vrot.slane %v1646, 2
      %v1906 = vrot.slane %v1648, 2
      %v1907 = vsel %vm1901, %v1905, %v1906
      %v1908 = vrot.slane %v1649, 2
      %v1909 = vrot.slane %v1651, 2
      %v1910 = vsel %vm1901, %v1908, %v1909
      %v1911 = vrot.slane %v1650, 2
      %v1912 = vrot.slane %v1652, 2
      %v1913 = vsel %vm1901, %v1911, %v1912
      %v1914 = vrot.slane %v1653, 2
      %v1915 = vrot.slane %v1655, 2
      %v1916 = vsel %vm1901, %v1914, %v1915
      %v1917 = vrot.slane %v1654, 2
      %v1918 = vrot.slane %v1656, 2
      %v1919 = vsel %vm1901, %v1917, %v1918
      %v1920 = vrot.slane %v1657, 2
      %v1921 = vrot.slane %v1659, 2
      %v1922 = vsel %vm1901, %v1920, %v1921
      %v1923 = vrot.slane %v1658, 2
      %v1924 = vrot.slane %v1660, 2
      %v1925 = vsel %vm1901, %v1923, %v1924
      %v1926 = vrot.slane %v1661, 2
      %v1927 = vrot.slane %v1663, 2
      %v1928 = vsel %vm1901, %v1926, %v1927
      %v1929 = vrot.slane %v1662, 2
      %v1930 = vrot.slane %v1664, 2
      %v1931 = vsel %vm1901, %v1929, %v1930
      %v1932 = vrot.slane %v1665, 2
      %v1933 = vrot.slane %v1667, 2
      %v1934 = vsel %vm1901, %v1932, %v1933
      %v1935 = vrot.slane %v1666, 2
      %v1936 = vrot.slane %v1668, 2
      %v1937 = vsel %vm1901, %v1935, %v1936
      %v1938 = vrot.slane %v1669, 2
      %v1939 = vrot.slane %v1671, 2
      %v1940 = vsel %vm1901, %v1938, %v1939
      %v1941 = vrot.slane %v1670, 2
      %v1942 = vrot.slane %v1672, 2
      %v1943 = vsel %vm1901, %v1941, %v1942
      %v1944 = vrot.slane %v1673, 2
      %v1945 = vrot.slane %v1675, 2
      %v1946 = vsel %vm1901, %v1944, %v1945
      %v1947 = vrot.slane %v1674, 2
      %v1948 = vrot.slane %v1676, 2
      %v1949 = vsel %vm1901, %v1947, %v1948
      %v1950 = vrot.slane %v1677, 2
      %v1951 = vrot.slane %v1679, 2
      %v1952 = vsel %vm1901, %v1950, %v1951
      %v1953 = vrot.slane %v1678, 2
      %v1954 = vrot.slane %v1680, 2
      %v1955 = vsel %vm1901, %v1953, %v1954
      %v1956 = vrot.slane %v1681, 2
      %v1957 = vrot.slane %v1683, 2
      %v1958 = vsel %vm1901, %v1956, %v1957
      %v1959 = vrot.slane %v1682, 2
      %v1960 = vrot.slane %v1684, 2
      %v1961 = vsel %vm1901, %v1959, %v1960
      %v1962 = vrot.slane %v1685, 2
      %v1963 = vrot.slane %v1687, 2
      %v1964 = vsel %vm1901, %v1962, %v1963
      %v1965 = vrot.slane %v1686, 2
      %v1966 = vrot.slane %v1688, 2
      %v1967 = vsel %vm1901, %v1965, %v1966
      %v1968 = vrot.slane %v1689, 2
      %v1969 = vrot.slane %v1691, 2
      %v1970 = vsel %vm1901, %v1968, %v1969
      %v1971 = vrot.slane %v1690, 2
      %v1972 = vrot.slane %v1692, 2
      %v1973 = vsel %vm1901, %v1971, %v1972
      %v1974 = vrot.slane %v1693, 2
      %v1975 = vrot.slane %v1695, 2
      %v1976 = vsel %vm1901, %v1974, %v1975
      %v1977 = vrot.slane %v1694, 2
      %v1978 = vrot.slane %v1696, 2
      %v1979 = vsel %vm1901, %v1977, %v1978
      %v1980 = vrot.slane %v1697, 2
      %v1981 = vrot.slane %v1699, 2
      %v1982 = vsel %vm1901, %v1980, %v1981
      %v1983 = vrot.slane %v1698, 2
      %v1984 = vrot.slane %v1700, 2
      %v1985 = vsel %vm1901, %v1983, %v1984
      %v1986 = vrot.slane %v1701, 2
      %v1987 = vrot.slane %v1703, 2
      %v1988 = vsel %vm1901, %v1986, %v1987
      %v1989 = vrot.slane %v1702, 2
      %v1990 = vrot.slane %v1704, 2
      %v1991 = vsel %vm1901, %v1989, %v1990
      %v1992 = vrot.slane %v1705, 2
      %v1993 = vrot.slane %v1707, 2
      %v1994 = vsel %vm1901, %v1992, %v1993
      %v1995 = vrot.slane %v1706, 2
      %v1996 = vrot.slane %v1708, 2
      %v1997 = vsel %vm1901, %v1995, %v1996
      %v1998 = vrot.slane %v1709, 2
      %v1999 = vrot.slane %v1711, 2
      %v2000 = vsel %vm1901, %v1998, %v1999
      %v2001 = vrot.slane %v1710, 2
      %v2002 = vrot.slane %v1712, 2
      %v2003 = vsel %vm1901, %v2001, %v2002
      %v2004 = vrot.slane %v1713, 2
      %v2005 = vrot.slane %v1715, 2
      %v2006 = vsel %vm1901, %v2004, %v2005
      %v2007 = vrot.slane %v1714, 2
      %v2008 = vrot.slane %v1716, 2
      %v2009 = vsel %vm1901, %v2007, %v2008
      %v2010 = vrot.slane %v1717, 2
      %v2011 = vrot.slane %v1719, 2
      %v2012 = vsel %vm1901, %v2010, %v2011
      %v2013 = vrot.slane %v1718, 2
      %v2014 = vrot.slane %v1720, 2
      %v2015 = vsel %vm1901, %v2013, %v2014
      %v2016 = vrot.slane %v1721, 2
      %v2017 = vrot.slane %v1723, 2
      %v2018 = vsel %vm1901, %v2016, %v2017
      %v2019 = vrot.slane %v1722, 2
      %v2020 = vrot.slane %v1724, 2
      %v2021 = vsel %vm1901, %v2019, %v2020
      %v2022 = vrot.slane %v1725, 2
      %v2023 = vrot.slane %v1727, 2
      %v2024 = vsel %vm1901, %v2022, %v2023
      %v2025 = vrot.slane %v1726, 2
      %v2026 = vrot.slane %v1728, 2
      %v2027 = vsel %vm1901, %v2025, %v2026
      %v2028 = vrot.slane %v1729, 2
      %v2029 = vrot.slane %v1731, 2
      %v2030 = vsel %vm1901, %v2028, %v2029
      %v2031 = vrot.slane %v1730, 2
      %v2032 = vrot.slane %v1732, 2
      %v2033 = vsel %vm1901, %v2031, %v2032
      %v2034 = vrot.slane %v1733, 2
      %v2035 = vrot.slane %v1735, 2
      %v2036 = vsel %vm1901, %v2034, %v2035
      %v2037 = vrot.slane %v1734, 2
      %v2038 = vrot.slane %v1736, 2
      %v2039 = vsel %vm1901, %v2037, %v2038
      %v2040 = vrot.slane %v1737, 2
      %v2041 = vrot.slane %v1739, 2
      %v2042 = vsel %vm1901, %v2040, %v2041
      %v2043 = vrot.slane %v1738, 2
      %v2044 = vrot.slane %v1740, 2
      %v2045 = vsel %vm1901, %v2043, %v2044
      %v2046 = vrot.slane %v1741, 2
      %v2047 = vrot.slane %v1743, 2
      %v2048 = vsel %vm1901, %v2046, %v2047
      %v2049 = vrot.slane %v1742, 2
      %v2050 = vrot.slane %v1744, 2
      %v2051 = vsel %vm1901, %v2049, %v2050
      %v2052 = vrot.slane %v1745, 2
      %v2053 = vrot.slane %v1747, 2
      %v2054 = vsel %vm1901, %v2052, %v2053
      %v2055 = vrot.slane %v1746, 2
      %v2056 = vrot.slane %v1748, 2
      %v2057 = vsel %vm1901, %v2055, %v2056
      %v2058 = vrot.slane %v1749, 2
      %v2059 = vrot.slane %v1751, 2
      %v2060 = vsel %vm1901, %v2058, %v2059
      %v2061 = vrot.slane %v1750, 2
      %v2062 = vrot.slane %v1752, 2
      %v2063 = vsel %vm1901, %v2061, %v2062
      %v2064 = vrot.slane %v1753, 2
      %v2065 = vrot.slane %v1755, 2
      %v2066 = vsel %vm1901, %v2064, %v2065
      %v2067 = vrot.slane %v1754, 2
      %v2068 = vrot.slane %v1756, 2
      %v2069 = vsel %vm1901, %v2067, %v2068
      %v2070 = vrot.slane %v1757, 2
      %v2071 = vrot.slane %v1759, 2
      %v2072 = vsel %vm1901, %v2070, %v2071
      %v2073 = vrot.slane %v1758, 2
      %v2074 = vrot.slane %v1760, 2
      %v2075 = vsel %vm1901, %v2073, %v2074
      %v2076 = vrot.slane %v1761, 2
      %v2077 = vrot.slane %v1763, 2
      %v2078 = vsel %vm1901, %v2076, %v2077
      %v2079 = vrot.slane %v1762, 2
      %v2080 = vrot.slane %v1764, 2
      %v2081 = vsel %vm1901, %v2079, %v2080
      %v2082 = vrot.slane %v1765, 2
      %v2083 = vrot.slane %v1767, 2
      %v2084 = vsel %vm1901, %v2082, %v2083
      %v2085 = vrot.slane %v1766, 2
      %v2086 = vrot.slane %v1768, 2
      %v2087 = vsel %vm1901, %v2085, %v2086
      %v2088 = vrot.slane %v1769, 2
      %v2089 = vrot.slane %v1771, 2
      %v2090 = vsel %vm1901, %v2088, %v2089
      %v2091 = vrot.slane %v1770, 2
      %v2092 = vrot.slane %v1772, 2
      %v2093 = vsel %vm1901, %v2091, %v2092
      %v2158 = vpack.c.bf16 %v1910, %v1904
      %v2159 = vpack.c.bf16 %v1913, %v1907
      %v2160 = vpack.c.bf16 %v1922, %v1916
      %v2161 = vpack.c.bf16 %v1925, %v1919
      %v2162 = vpack.c.bf16 %v1934, %v1928
      %v2163 = vpack.c.bf16 %v1937, %v1931
      %v2164 = vpack.c.bf16 %v1946, %v1940
      %v2165 = vpack.c.bf16 %v1949, %v1943
      %v2166 = vpack.c.bf16 %v1958, %v1952
      %v2167 = vpack.c.bf16 %v1961, %v1955
      %v2168 = vpack.c.bf16 %v1970, %v1964
      %v2169 = vpack.c.bf16 %v1973, %v1967
      %v2170 = vpack.c.bf16 %v1982, %v1976
      %v2171 = vpack.c.bf16 %v1985, %v1979
      %v2172 = vpack.c.bf16 %v1994, %v1988
      %v2173 = vpack.c.bf16 %v1997, %v1991
      %v2174 = vpack.c.bf16 %v2006, %v2000
      %v2175 = vpack.c.bf16 %v2009, %v2003
      %v2176 = vpack.c.bf16 %v2018, %v2012
      %v2177 = vpack.c.bf16 %v2021, %v2015
      %v2178 = vpack.c.bf16 %v2030, %v2024
      %v2179 = vpack.c.bf16 %v2033, %v2027
      %v2180 = vpack.c.bf16 %v2042, %v2036
      %v2181 = vpack.c.bf16 %v2045, %v2039
      %v2182 = vpack.c.bf16 %v2054, %v2048
      %v2183 = vpack.c.bf16 %v2057, %v2051
      %v2184 = vpack.c.bf16 %v2066, %v2060
      %v2185 = vpack.c.bf16 %v2069, %v2063
      %v2186 = vpack.c.bf16 %v2078, %v2072
      %v2187 = vpack.c.bf16 %v2081, %v2075
      %v2188 = vpack.c.bf16 %v2090, %v2084
      %v2189 = vpack.c.bf16 %v2093, %v2087
      %s2190 = scalar_lea.vmem %s1, 512
      %v2191 = vld [vmem:[%s2190] sm:$0xff]
      %v2192 = vld [vmem:[%s2190 + $0x8] sm:$0xff]
      %v2193 = vld [vmem:[%s2190 + $0x10] sm:$0xff]
      %v2194 = vld [vmem:[%s2190 + $0x18] sm:$0xff]
      %v2195 = vld [vmem:[%s2190 + $0x20] sm:$0xff]
      %v2196 = vld [vmem:[%s2190 + $0x28] sm:$0xff]
      %v2197 = vld [vmem:[%s2190 + $0x30] sm:$0xff]
      %v2198 = vld [vmem:[%s2190 + $0x38] sm:$0xff]
      %v2199 = vld [vmem:[%s2190 + $0x40] sm:$0xff]
      %v2200 = vld [vmem:[%s2190 + $0x48] sm:$0xff]
      %v2201 = vld [vmem:[%s2190 + $0x50] sm:$0xff]
      %v2202 = vld [vmem:[%s2190 + $0x58] sm:$0xff]
      %v2203 = vld [vmem:[%s2190 + $0x60] sm:$0xff]
      %v2204 = vld [vmem:[%s2190 + $0x68] sm:$0xff]
      %v2205 = vld [vmem:[%s2190 + $0x70] sm:$0xff]
      %v2206 = vld [vmem:[%s2190 + $0x78] sm:$0xff]
      %v2207 = vld [vmem:[%s2190 + $0x80] sm:$0xff]
      %v2208 = vld [vmem:[%s2190 + $0x88] sm:$0xff]
      %v2209 = vld [vmem:[%s2190 + $0x90] sm:$0xff]
      %v2210 = vld [vmem:[%s2190 + $0x98] sm:$0xff]
      %v2211 = vld [vmem:[%s2190 + $0xa0] sm:$0xff]
      %v2212 = vld [vmem:[%s2190 + $0xa8] sm:$0xff]
      %v2213 = vld [vmem:[%s2190 + $0xb0] sm:$0xff]
      %v2214 = vld [vmem:[%s2190 + $0xb8] sm:$0xff]
      %v2215 = vld [vmem:[%s2190 + $0xc0] sm:$0xff]
      %v2216 = vld [vmem:[%s2190 + $0xc8] sm:$0xff]
      %v2217 = vld [vmem:[%s2190 + $0xd0] sm:$0xff]
      %v2218 = vld [vmem:[%s2190 + $0xd8] sm:$0xff]
      %v2219 = vld [vmem:[%s2190 + $0xe0] sm:$0xff]
      %v2220 = vld [vmem:[%s2190 + $0xe8] sm:$0xff]
      %v2221 = vld [vmem:[%s2190 + $0xf0] sm:$0xff]
      %v2222 = vld [vmem:[%s2190 + $0xf8] sm:$0xff]
      %v2255 = vunpack.c.l.b16 %v2191
      %v2256 = vunpack.c.h.b16 %v2191
      %v2257 = vunpack.c.l.b16 %v2192
      %v2258 = vunpack.c.h.b16 %v2192
      %v2259 = vunpack.c.l.b16 %v2193
      %v2260 = vunpack.c.h.b16 %v2193
      %v2261 = vunpack.c.l.b16 %v2194
      %v2262 = vunpack.c.h.b16 %v2194
      %v2263 = vunpack.c.l.b16 %v2195
      %v2264 = vunpack.c.h.b16 %v2195
      %v2265 = vunpack.c.l.b16 %v2196
      %v2266 = vunpack.c.h.b16 %v2196
      %v2267 = vunpack.c.l.b16 %v2197
      %v2268 = vunpack.c.h.b16 %v2197
      %v2269 = vunpack.c.l.b16 %v2198
      %v2270 = vunpack.c.h.b16 %v2198
      %v2271 = vunpack.c.l.b16 %v2199
      %v2272 = vunpack.c.h.b16 %v2199
      %v2273 = vunpack.c.l.b16 %v2200
      %v2274 = vunpack.c.h.b16 %v2200
      %v2275 = vunpack.c.l.b16 %v2201
      %v2276 = vunpack.c.h.b16 %v2201
      %v2277 = vunpack.c.l.b16 %v2202
      %v2278 = vunpack.c.h.b16 %v2202
      %v2279 = vunpack.c.l.b16 %v2203
      %v2280 = vunpack.c.h.b16 %v2203
      %v2281 = vunpack.c.l.b16 %v2204
      %v2282 = vunpack.c.h.b16 %v2204
      %v2283 = vunpack.c.l.b16 %v2205
      %v2284 = vunpack.c.h.b16 %v2205
      %v2285 = vunpack.c.l.b16 %v2206
      %v2286 = vunpack.c.h.b16 %v2206
      %v2287 = vunpack.c.l.b16 %v2207
      %v2288 = vunpack.c.h.b16 %v2207
      %v2289 = vunpack.c.l.b16 %v2208
      %v2290 = vunpack.c.h.b16 %v2208
      %v2291 = vunpack.c.l.b16 %v2209
      %v2292 = vunpack.c.h.b16 %v2209
      %v2293 = vunpack.c.l.b16 %v2210
      %v2294 = vunpack.c.h.b16 %v2210
      %v2295 = vunpack.c.l.b16 %v2211
      %v2296 = vunpack.c.h.b16 %v2211
      %v2297 = vunpack.c.l.b16 %v2212
      %v2298 = vunpack.c.h.b16 %v2212
      %v2299 = vunpack.c.l.b16 %v2213
      %v2300 = vunpack.c.h.b16 %v2213
      %v2301 = vunpack.c.l.b16 %v2214
      %v2302 = vunpack.c.h.b16 %v2214
      %v2303 = vunpack.c.l.b16 %v2215
      %v2304 = vunpack.c.h.b16 %v2215
      %v2305 = vunpack.c.l.b16 %v2216
      %v2306 = vunpack.c.h.b16 %v2216
      %v2307 = vunpack.c.l.b16 %v2217
      %v2308 = vunpack.c.h.b16 %v2217
      %v2309 = vunpack.c.l.b16 %v2218
      %v2310 = vunpack.c.h.b16 %v2218
      %v2311 = vunpack.c.l.b16 %v2219
      %v2312 = vunpack.c.h.b16 %v2219
      %v2313 = vunpack.c.l.b16 %v2220
      %v2314 = vunpack.c.h.b16 %v2220
      %v2315 = vunpack.c.l.b16 %v2221
      %v2316 = vunpack.c.h.b16 %v2221
      %v2317 = vunpack.c.l.b16 %v2222
      %v2318 = vunpack.c.h.b16 %v2222
      %v2319 = vpack.c.b16 %v2257, %v2255
      %v2320 = vpack.c.b16 %v2258, %v2256
      %v2321 = vpack.c.b16 %v2261, %v2259
      %v2322 = vpack.c.b16 %v2262, %v2260
      %v2323 = vpack.c.b16 %v2265, %v2263
      %v2324 = vpack.c.b16 %v2266, %v2264
      %v2325 = vpack.c.b16 %v2269, %v2267
      %v2326 = vpack.c.b16 %v2270, %v2268
      %v2327 = vpack.c.b16 %v2273, %v2271
      %v2328 = vpack.c.b16 %v2274, %v2272
      %v2329 = vpack.c.b16 %v2277, %v2275
      %v2330 = vpack.c.b16 %v2278, %v2276
      %v2331 = vpack.c.b16 %v2281, %v2279
      %v2332 = vpack.c.b16 %v2282, %v2280
      %v2333 = vpack.c.b16 %v2285, %v2283
      %v2334 = vpack.c.b16 %v2286, %v2284
      %v2335 = vpack.c.b16 %v2289, %v2287
      %v2336 = vpack.c.b16 %v2290, %v2288
      %v2337 = vpack.c.b16 %v2293, %v2291
      %v2338 = vpack.c.b16 %v2294, %v2292
      %v2339 = vpack.c.b16 %v2297, %v2295
      %v2340 = vpack.c.b16 %v2298, %v2296
      %v2341 = vpack.c.b16 %v2301, %v2299
      %v2342 = vpack.c.b16 %v2302, %v2300
      %v2343 = vpack.c.b16 %v2305, %v2303
      %v2344 = vpack.c.b16 %v2306, %v2304
      %v2345 = vpack.c.b16 %v2309, %v2307
      %v2346 = vpack.c.b16 %v2310, %v2308
      %v2347 = vpack.c.b16 %v2313, %v2311
      %v2348 = vpack.c.b16 %v2314, %v2312
      %v2349 = vpack.c.b16 %v2317, %v2315
      %v2350 = vpack.c.b16 %v2318, %v2316
      %2383 = vmatprep.subr.bf16.mxu0 %v2320
      %2384 = vmatpush1.bf16.msra.mxu0 %v2319
      %2385 = vmatprep.subr.bf16.mxu0 %v2322
      %2386 = vmatpush1.bf16.msra.mxu0 %v2321
      %2387 = vmatprep.subr.bf16.mxu0 %v2324
      %2388 = vmatpush1.bf16.msra.mxu0 %v2323
      %2389 = vmatprep.subr.bf16.mxu0 %v2326
      %2390 = vmatpush1.bf16.msra.mxu0 %v2325
      %2391 = vmatprep.subr.bf16.mxu0 %v2328
      %2392 = vmatpush1.bf16.msra.mxu0 %v2327
      %2393 = vmatprep.subr.bf16.mxu0 %v2330
      %2394 = vmatpush1.bf16.msra.mxu0 %v2329
      %2395 = vmatprep.subr.bf16.mxu0 %v2332
      %2396 = vmatpush1.bf16.msra.mxu0 %v2331
      %2397 = vmatprep.subr.bf16.mxu0 %v2334
      %2398 = vmatpush1.bf16.msra.mxu0 %v2333
      %2399 = vmatprep.subr.bf16.mxu0 %v2336
      %2400 = vmatpush1.bf16.msra.mxu0 %v2335
      %2401 = vmatprep.subr.bf16.mxu0 %v2338
      %2402 = vmatpush1.bf16.msra.mxu0 %v2337
      %2403 = vmatprep.subr.bf16.mxu0 %v2340
      %2404 = vmatpush1.bf16.msra.mxu0 %v2339
      %2405 = vmatprep.subr.bf16.mxu0 %v2342
      %2406 = vmatpush1.bf16.msra.mxu0 %v2341
      %2407 = vmatprep.subr.bf16.mxu0 %v2344
      %2408 = vmatpush1.bf16.msra.mxu0 %v2343
      %2409 = vmatprep.subr.bf16.mxu0 %v2346
      %2410 = vmatpush1.bf16.msra.mxu0 %v2345
      %2411 = vmatprep.subr.bf16.mxu0 %v2348
      %2412 = vmatpush1.bf16.msra.mxu0 %v2347
      %2413 = vmatprep.subr.bf16.mxu0 %v2350
      %2414 = vmatpush1.bf16.msra.mxu0 %v2349
      %2415 = vmatprep.mubr.bf16.mxu0 %v2159
      %2416 = vmatmul.mubr.bf16.gmra.mrb[0].mxu0 %v2158
      %v2417 = vpop.f32.mrb[0].mxu0
      %v2418 = vadd.f32 0.0, %v2417
      %v2419 = vpop.f32.mrb[0].mxu0
      %v2420 = vadd.f32 0.0, %v2419
      %v2421 = vpop.f32.mrb[0].mxu0
      %v2422 = vadd.f32 0.0, %v2421
      %v2423 = vpop.f32.mrb[0].mxu0
      %v2424 = vadd.f32 0.0, %v2423
      %2425 = vmatprep.mubr.bf16.mxu0 %v2161
      %2426 = vmatmul.mubr.bf16.gmra.mrb[0].mxu0 %v2160
      %v2427 = vpop.f32.mrb[0].mxu0
      %v2428 = vadd.f32 0.0, %v2427
      %v2429 = vpop.f32.mrb[0].mxu0
      %v2430 = vadd.f32 0.0, %v2429
      %v2431 = vpop.f32.mrb[0].mxu0
      %v2432 = vadd.f32 0.0, %v2431
      %v2433 = vpop.f32.mrb[0].mxu0
      %v2434 = vadd.f32 0.0, %v2433
      %2435 = vmatprep.mubr.bf16.mxu0 %v2163
      %2436 = vmatmul.mubr.bf16.gmra.mrb[0].mxu0 %v2162
      %v2437 = vpop.f32.mrb[0].mxu0
      %v2438 = vadd.f32 0.0, %v2437
      %v2439 = vpop.f32.mrb[0].mxu0
      %v2440 = vadd.f32 0.0, %v2439
      %v2441 = vpop.f32.mrb[0].mxu0
      %v2442 = vadd.f32 0.0, %v2441
      %v2443 = vpop.f32.mrb[0].mxu0
      %v2444 = vadd.f32 0.0, %v2443
      %2445 = vmatprep.mubr.bf16.mxu0 %v2165
      %2446 = vmatmul.mubr.bf16.gmra.mrb[0].mxu0 %v2164
      %v2447 = vpop.f32.mrb[0].mxu0
      %v2448 = vadd.f32 0.0, %v2447
      %v2449 = vpop.f32.mrb[0].mxu0
      %v2450 = vadd.f32 0.0, %v2449
      %v2451 = vpop.f32.mrb[0].mxu0
      %v2452 = vadd.f32 0.0, %v2451
      %v2453 = vpop.f32.mrb[0].mxu0
      %v2454 = vadd.f32 0.0, %v2453
      %2455 = vmatprep.mubr.bf16.mxu0 %v2167
      %2456 = vmatmul.mubr.bf16.gmra.mrb[0].mxu0 %v2166
      %v2457 = vpop.f32.mrb[0].mxu0
      %v2458 = vadd.f32 0.0, %v2457
      %v2459 = vpop.f32.mrb[0].mxu0
      %v2460 = vadd.f32 0.0, %v2459
      %v2461 = vpop.f32.mrb[0].mxu0
      %v2462 = vadd.f32 0.0, %v2461
      %v2463 = vpop.f32.mrb[0].mxu0
      %v2464 = vadd.f32 0.0, %v2463
      %2465 = vmatprep.mubr.bf16.mxu0 %v2169
      %2466 = vmatmul.mubr.bf16.gmra.mrb[0].mxu0 %v2168
      %v2467 = vpop.f32.mrb[0].mxu0
      %v2468 = vadd.f32 0.0, %v2467
      %v2469 = vpop.f32.mrb[0].mxu0
      %v2470 = vadd.f32 0.0, %v2469
      %v2471 = vpop.f32.mrb[0].mxu0
      %v2472 = vadd.f32 0.0, %v2471
      %v2473 = vpop.f32.mrb[0].mxu0
      %v2474 = vadd.f32 0.0, %v2473
      %2475 = vmatprep.mubr.bf16.mxu0 %v2171
      %2476 = vmatmul.mubr.bf16.gmra.mrb[0].mxu0 %v2170
      %v2477 = vpop.f32.mrb[0].mxu0
      %v2478 = vadd.f32 0.0, %v2477
      %v2479 = vpop.f32.mrb[0].mxu0
      %v2480 = vadd.f32 0.0, %v2479
      %v2481 = vpop.f32.mrb[0].mxu0
      %v2482 = vadd.f32 0.0, %v2481
      %v2483 = vpop.f32.mrb[0].mxu0
      %v2484 = vadd.f32 0.0, %v2483
      %2485 = vmatprep.mubr.bf16.mxu0 %v2173
      %2486 = vmatmul.mubr.bf16.gmra.mrb[0].mxu0 %v2172
      %v2487 = vpop.f32.mrb[0].mxu0
      %v2488 = vadd.f32 0.0, %v2487
      %v2489 = vpop.f32.mrb[0].mxu0
      %v2490 = vadd.f32 0.0, %v2489
      %v2491 = vpop.f32.mrb[0].mxu0
      %v2492 = vadd.f32 0.0, %v2491
      %v2493 = vpop.f32.mrb[0].mxu0
      %v2494 = vadd.f32 0.0, %v2493
      %2495 = vmatprep.mubr.bf16.mxu0 %v2175
      %2496 = vmatmul.mubr.bf16.gmra.mrb[0].mxu0 %v2174
      %v2497 = vpop.f32.mrb[0].mxu0
      %v2498 = vadd.f32 0.0, %v2497
      %v2499 = vpop.f32.mrb[0].mxu0
      %v2500 = vadd.f32 0.0, %v2499
      %v2501 = vpop.f32.mrb[0].mxu0
      %v2502 = vadd.f32 0.0, %v2501
      %v2503 = vpop.f32.mrb[0].mxu0
      %v2504 = vadd.f32 0.0, %v2503
      %2505 = vmatprep.mubr.bf16.mxu0 %v2177
      %2506 = vmatmul.mubr.bf16.gmra.mrb[0].mxu0 %v2176
      %v2507 = vpop.f32.mrb[0].mxu0
      %v2508 = vadd.f32 0.0, %v2507
      %v2509 = vpop.f32.mrb[0].mxu0
      %v2510 = vadd.f32 0.0, %v2509
      %v2511 = vpop.f32.mrb[0].mxu0
      %v2512 = vadd.f32 0.0, %v2511
      %v2513 = vpop.f32.mrb[0].mxu0
      %v2514 = vadd.f32 0.0, %v2513
      %2515 = vmatprep.mubr.bf16.mxu0 %v2179
      %2516 = vmatmul.mubr.bf16.gmra.mrb[0].mxu0 %v2178
      %v2517 = vpop.f32.mrb[0].mxu0
      %v2518 = vadd.f32 0.0, %v2517
      %v2519 = vpop.f32.mrb[0].mxu0
      %v2520 = vadd.f32 0.0, %v2519
      %v2521 = vpop.f32.mrb[0].mxu0
      %v2522 = vadd.f32 0.0, %v2521
      %v2523 = vpop.f32.mrb[0].mxu0
      %v2524 = vadd.f32 0.0, %v2523
      %2525 = vmatprep.mubr.bf16.mxu0 %v2181
      %2526 = vmatmul.mubr.bf16.gmra.mrb[0].mxu0 %v2180
      %v2527 = vpop.f32.mrb[0].mxu0
      %v2528 = vadd.f32 0.0, %v2527
      %v2529 = vpop.f32.mrb[0].mxu0
      %v2530 = vadd.f32 0.0, %v2529
      %v2531 = vpop.f32.mrb[0].mxu0
      %v2532 = vadd.f32 0.0, %v2531
      %v2533 = vpop.f32.mrb[0].mxu0
      %v2534 = vadd.f32 0.0, %v2533
      %2535 = vmatprep.mubr.bf16.mxu0 %v2183
      %2536 = vmatmul.mubr.bf16.gmra.mrb[0].mxu0 %v2182
      %v2537 = vpop.f32.mrb[0].mxu0
      %v2538 = vadd.f32 0.0, %v2537
      %v2539 = vpop.f32.mrb[0].mxu0
      %v2540 = vadd.f32 0.0, %v2539
      %v2541 = vpop.f32.mrb[0].mxu0
      %v2542 = vadd.f32 0.0, %v2541
      %v2543 = vpop.f32.mrb[0].mxu0
      %v2544 = vadd.f32 0.0, %v2543
      %2545 = vmatprep.mubr.bf16.mxu0 %v2185
      %2546 = vmatmul.mubr.bf16.gmra.mrb[0].mxu0 %v2184
      %v2547 = vpop.f32.mrb[0].mxu0
      %v2548 = vadd.f32 0.0, %v2547
      %v2549 = vpop.f32.mrb[0].mxu0
      %v2550 = vadd.f32 0.0, %v2549
      %v2551 = vpop.f32.mrb[0].mxu0
      %v2552 = vadd.f32 0.0, %v2551
      %v2553 = vpop.f32.mrb[0].mxu0
      %v2554 = vadd.f32 0.0, %v2553
      %2555 = vmatprep.mubr.bf16.mxu0 %v2187
      %2556 = vmatmul.mubr.bf16.gmra.mrb[0].mxu0 %v2186
      %v2557 = vpop.f32.mrb[0].mxu0
      %v2558 = vadd.f32 0.0, %v2557
      %v2559 = vpop.f32.mrb[0].mxu0
      %v2560 = vadd.f32 0.0, %v2559
      %v2561 = vpop.f32.mrb[0].mxu0
      %v2562 = vadd.f32 0.0, %v2561
      %v2563 = vpop.f32.mrb[0].mxu0
      %v2564 = vadd.f32 0.0, %v2563
      %2565 = vmatprep.mubr.bf16.mxu0 %v2189
      %2566 = vmatmul.mubr.bf16.gmra.mrb[0].mxu0 %v2188
      %v2567 = vpop.f32.mrb[0].mxu0
      %v2568 = vadd.f32 0.0, %v2567
      %v2569 = vpop.f32.mrb[0].mxu0
      %v2570 = vadd.f32 0.0, %v2569
      %v2571 = vpop.f32.mrb[0].mxu0
      %v2572 = vadd.f32 0.0, %v2571
      %v2573 = vpop.f32.mrb[0].mxu0
      %v2574 = vadd.f32 0.0, %v2573
      %2575 = vdwg.mxu0
      %v2576 = vadd.f32 %v1487, %v2418
      %v2577 = vadd.f32 %v1489, %v2420
      %v2578 = vadd.f32 %v1491, %v2422
      %v2579 = vadd.f32 %v1493, %v2424
      %v2580 = vadd.f32 %v1497, %v2428
      %v2581 = vadd.f32 %v1499, %v2430
      %v2582 = vadd.f32 %v1501, %v2432
      %v2583 = vadd.f32 %v1503, %v2434
      %v2584 = vadd.f32 %v1507, %v2438
      %v2585 = vadd.f32 %v1509, %v2440
      %v2586 = vadd.f32 %v1511, %v2442
      %v2587 = vadd.f32 %v1513, %v2444
      %v2588 = vadd.f32 %v1517, %v2448
      %v2589 = vadd.f32 %v1519, %v2450
      %v2590 = vadd.f32 %v1521, %v2452
      %v2591 = vadd.f32 %v1523, %v2454
      %v2592 = vadd.f32 %v1527, %v2458
      %v2593 = vadd.f32 %v1529, %v2460
      %v2594 = vadd.f32 %v1531, %v2462
      %v2595 = vadd.f32 %v1533, %v2464
      %v2596 = vadd.f32 %v1537, %v2468
      %v2597 = vadd.f32 %v1539, %v2470
      %v2598 = vadd.f32 %v1541, %v2472
      %v2599 = vadd.f32 %v1543, %v2474
      %v2600 = vadd.f32 %v1547, %v2478
      %v2601 = vadd.f32 %v1549, %v2480
      %v2602 = vadd.f32 %v1551, %v2482
      %v2603 = vadd.f32 %v1553, %v2484
      %v2604 = vadd.f32 %v1557, %v2488
      %v2605 = vadd.f32 %v1559, %v2490
      %v2606 = vadd.f32 %v1561, %v2492
      %v2607 = vadd.f32 %v1563, %v2494
      %v2608 = vadd.f32 %v1567, %v2498
      %v2609 = vadd.f32 %v1569, %v2500
      %v2610 = vadd.f32 %v1571, %v2502
      %v2611 = vadd.f32 %v1573, %v2504
      %v2612 = vadd.f32 %v1577, %v2508
      %v2613 = vadd.f32 %v1579, %v2510
      %v2614 = vadd.f32 %v1581, %v2512
      %v2615 = vadd.f32 %v1583, %v2514
      %v2616 = vadd.f32 %v1587, %v2518
      %v2617 = vadd.f32 %v1589, %v2520
      %v2618 = vadd.f32 %v1591, %v2522
      %v2619 = vadd.f32 %v1593, %v2524
      %v2620 = vadd.f32 %v1597, %v2528
      %v2621 = vadd.f32 %v1599, %v2530
      %v2622 = vadd.f32 %v1601, %v2532
      %v2623 = vadd.f32 %v1603, %v2534
      %v2624 = vadd.f32 %v1607, %v2538
      %v2625 = vadd.f32 %v1609, %v2540
      %v2626 = vadd.f32 %v1611, %v2542
      %v2627 = vadd.f32 %v1613, %v2544
      %v2628 = vadd.f32 %v1617, %v2548
      %v2629 = vadd.f32 %v1619, %v2550
      %v2630 = vadd.f32 %v1621, %v2552
      %v2631 = vadd.f32 %v1623, %v2554
      %v2632 = vadd.f32 %v1627, %v2558
      %v2633 = vadd.f32 %v1629, %v2560
      %v2634 = vadd.f32 %v1631, %v2562
      %v2635 = vadd.f32 %v1633, %v2564
      %v2636 = vadd.f32 %v1637, %v2568
      %v2637 = vadd.f32 %v1639, %v2570
      %v2638 = vadd.f32 %v1641, %v2572
      %v2639 = vadd.f32 %v1643, %v2574
      %v2640 = vld [vmem:[%s2] sm:$0x3]
      %v2642 = vlaneseq
      %v2643 = vshrl.u32 %v2642, 7
      %v2644 = vsub.s32 0, %v2643
      %v2645 = vrot.slane %v2640, %v2644
      %v2646 = vlaneseq
      %v2647 = vshrl.u32 %v2646, 7
      %v2648 = vsub.s32 1, %v2647
      %v2649 = vrot.slane %v2640, %v2648
      %v2652 = vadd.f32 %v2576, %v2645
      %v2653 = vadd.f32 %v2577, %v2649
      %v2654 = vadd.f32 %v2578, %v2645
      %v2655 = vadd.f32 %v2579, %v2649
      %v2656 = vadd.f32 %v2580, %v2645
      %v2657 = vadd.f32 %v2581, %v2649
      %v2658 = vadd.f32 %v2582, %v2645
      %v2659 = vadd.f32 %v2583, %v2649
      %v2660 = vadd.f32 %v2584, %v2645
      %v2661 = vadd.f32 %v2585, %v2649
      %v2662 = vadd.f32 %v2586, %v2645
      %v2663 = vadd.f32 %v2587, %v2649
      %v2664 = vadd.f32 %v2588, %v2645
      %v2665 = vadd.f32 %v2589, %v2649
      %v2666 = vadd.f32 %v2590, %v2645
      %v2667 = vadd.f32 %v2591, %v2649
      %v2668 = vadd.f32 %v2592, %v2645
      %v2669 = vadd.f32 %v2593, %v2649
      %v2670 = vadd.f32 %v2594, %v2645
      %v2671 = vadd.f32 %v2595, %v2649
      %v2672 = vadd.f32 %v2596, %v2645
      %v2673 = vadd.f32 %v2597, %v2649
      %v2674 = vadd.f32 %v2598, %v2645
      %v2675 = vadd.f32 %v2599, %v2649
      %v2676 = vadd.f32 %v2600, %v2645
      %v2677 = vadd.f32 %v2601, %v2649
      %v2678 = vadd.f32 %v2602, %v2645
      %v2679 = vadd.f32 %v2603, %v2649
      %v2680 = vadd.f32 %v2604, %v2645
      %v2681 = vadd.f32 %v2605, %v2649
      %v2682 = vadd.f32 %v2606, %v2645
      %v2683 = vadd.f32 %v2607, %v2649
      %v2684 = vadd.f32 %v2608, %v2645
      %v2685 = vadd.f32 %v2609, %v2649
      %v2686 = vadd.f32 %v2610, %v2645
      %v2687 = vadd.f32 %v2611, %v2649
      %v2688 = vadd.f32 %v2612, %v2645
      %v2689 = vadd.f32 %v2613, %v2649
      %v2690 = vadd.f32 %v2614, %v2645
      %v2691 = vadd.f32 %v2615, %v2649
      %v2692 = vadd.f32 %v2616, %v2645
      %v2693 = vadd.f32 %v2617, %v2649
      %v2694 = vadd.f32 %v2618, %v2645
      %v2695 = vadd.f32 %v2619, %v2649
      %v2696 = vadd.f32 %v2620, %v2645
      %v2697 = vadd.f32 %v2621, %v2649
      %v2698 = vadd.f32 %v2622, %v2645
      %v2699 = vadd.f32 %v2623, %v2649
      %v2700 = vadd.f32 %v2624, %v2645
      %v2701 = vadd.f32 %v2625, %v2649
      %v2702 = vadd.f32 %v2626, %v2645
      %v2703 = vadd.f32 %v2627, %v2649
      %v2704 = vadd.f32 %v2628, %v2645
      %v2705 = vadd.f32 %v2629, %v2649
      %v2706 = vadd.f32 %v2630, %v2645
      %v2707 = vadd.f32 %v2631, %v2649
      %v2708 = vadd.f32 %v2632, %v2645
      %v2709 = vadd.f32 %v2633, %v2649
      %v2710 = vadd.f32 %v2634, %v2645
      %v2711 = vadd.f32 %v2635, %v2649
      %v2712 = vadd.f32 %v2636, %v2645
      %v2713 = vadd.f32 %v2637, %v2649
      %v2714 = vadd.f32 %v2638, %v2645
      %v2715 = vadd.f32 %v2639, %v2649
      %v2716 = vmax.f32 %v2652, 0.0
      %v2717 = vmax.f32 %v2653, 0.0
      %v2718 = vmax.f32 %v2654, 0.0
      %v2719 = vmax.f32 %v2655, 0.0
      %v2720 = vmax.f32 %v2656, 0.0
      %v2721 = vmax.f32 %v2657, 0.0
      %v2722 = vmax.f32 %v2658, 0.0
      %v2723 = vmax.f32 %v2659, 0.0
      %v2724 = vmax.f32 %v2660, 0.0
      %v2725 = vmax.f32 %v2661, 0.0
      %v2726 = vmax.f32 %v2662, 0.0
      %v2727 = vmax.f32 %v2663, 0.0
      %v2728 = vmax.f32 %v2664, 0.0
      %v2729 = vmax.f32 %v2665, 0.0
      %v2730 = vmax.f32 %v2666, 0.0
      %v2731 = vmax.f32 %v2667, 0.0
      %v2732 = vmax.f32 %v2668, 0.0
      %v2733 = vmax.f32 %v2669, 0.0
      %v2734 = vmax.f32 %v2670, 0.0
      %v2735 = vmax.f32 %v2671, 0.0
      %v2736 = vmax.f32 %v2672, 0.0
      %v2737 = vmax.f32 %v2673, 0.0
      %v2738 = vmax.f32 %v2674, 0.0
      %v2739 = vmax.f32 %v2675, 0.0
      %v2740 = vmax.f32 %v2676, 0.0
      %v2741 = vmax.f32 %v2677, 0.0
      %v2742 = vmax.f32 %v2678, 0.0
      %v2743 = vmax.f32 %v2679, 0.0
      %v2744 = vmax.f32 %v2680, 0.0
      %v2745 = vmax.f32 %v2681, 0.0
      %v2746 = vmax.f32 %v2682, 0.0
      %v2747 = vmax.f32 %v2683, 0.0
      %v2748 = vmax.f32 %v2684, 0.0
      %v2749 = vmax.f32 %v2685, 0.0
      %v2750 = vmax.f32 %v2686, 0.0
      %v2751 = vmax.f32 %v2687, 0.0
      %v2752 = vmax.f32 %v2688, 0.0
      %v2753 = vmax.f32 %v2689, 0.0
      %v2754 = vmax.f32 %v2690, 0.0
      %v2755 = vmax.f32 %v2691, 0.0
      %v2756 = vmax.f32 %v2692, 0.0
      %v2757 = vmax.f32 %v2693, 0.0
      %v2758 = vmax.f32 %v2694, 0.0
      %v2759 = vmax.f32 %v2695, 0.0
      %v2760 = vmax.f32 %v2696, 0.0
      %v2761 = vmax.f32 %v2697, 0.0
      %v2762 = vmax.f32 %v2698, 0.0
      %v2763 = vmax.f32 %v2699, 0.0
      %v2764 = vmax.f32 %v2700, 0.0
      %v2765 = vmax.f32 %v2701, 0.0
      %v2766 = vmax.f32 %v2702, 0.0
      %v2767 = vmax.f32 %v2703, 0.0
      %v2768 = vmax.f32 %v2704, 0.0
      %v2769 = vmax.f32 %v2705, 0.0
      %v2770 = vmax.f32 %v2706, 0.0
      %v2771 = vmax.f32 %v2707, 0.0
      %v2772 = vmax.f32 %v2708, 0.0
      %v2773 = vmax.f32 %v2709, 0.0
      %v2774 = vmax.f32 %v2710, 0.0
      %v2775 = vmax.f32 %v2711, 0.0
      %v2776 = vmax.f32 %v2712, 0.0
      %v2777 = vmax.f32 %v2713, 0.0
      %v2778 = vmax.f32 %v2714, 0.0
      %v2779 = vmax.f32 %v2715, 0.0
      %v2780 = vlaneseq
      %vm2781 = vcmp.ge.s32.totalorder %v2780, 0
      %vm2782 = vcmp.lt.s32.totalorder %v2780, 256
      %vm2783 = vmand %vm2781, %vm2782
      %2784 = vst.msk [vmem:[#allocation2] ss:$8 sm:$0x3] %vm2783, 0.0
      %2785 = vst.msk [vmem:[#allocation2] ss:$8 sm:$0x0] %vm2783, 0.0
      %s2786 = scalar_lea.vmem [#allocation2], 32
      %2787 = vst.msk [vmem:[%s2786] ss:$8 sm:$0x3] %vm2783, 0.0
      %2788 = vst.msk [vmem:[%s2786] ss:$8 sm:$0x0] %vm2783, 0.0
      %s2789 = scalar_lea.vmem [#allocation2], 64
      %2790 = vst.msk [vmem:[%s2789] ss:$8 sm:$0x3] %vm2783, 0.0
      %2791 = vst.msk [vmem:[%s2789] ss:$8 sm:$0x0] %vm2783, 0.0
      %s2792 = scalar_lea.vmem [#allocation2], 96
      %2793 = vst.msk [vmem:[%s2792] ss:$8 sm:$0x3] %vm2783, 0.0
      %2794 = vst.msk [vmem:[%s2792] ss:$8 sm:$0x0] %vm2783, 0.0
      %s2795 = scalar_lea.vmem [#allocation2], 128
      %2796 = vst.msk [vmem:[%s2795] ss:$8 sm:$0x3] %vm2783, 0.0
      %2797 = vst.msk [vmem:[%s2795] ss:$8 sm:$0x0] %vm2783, 0.0
      %s2798 = scalar_lea.vmem [#allocation2], 160
      %2799 = vst.msk [vmem:[%s2798] ss:$8 sm:$0x3] %vm2783, 0.0
      %2800 = vst.msk [vmem:[%s2798] ss:$8 sm:$0x0] %vm2783, 0.0
      %s2801 = scalar_lea.vmem [#allocation2], 192
      %2802 = vst.msk [vmem:[%s2801] ss:$8 sm:$0x3] %vm2783, 0.0
      %2803 = vst.msk [vmem:[%s2801] ss:$8 sm:$0x0] %vm2783, 0.0
      %s2804 = scalar_lea.vmem [#allocation2], 224
      %2805 = vst.msk [vmem:[%s2804] ss:$8 sm:$0x3] %vm2783, 0.0
      %2806 = vst.msk [vmem:[%s2804] ss:$8 sm:$0x0] %vm2783, 0.0
      %s2807 = scalar_lea.vmem [#allocation2], 256
      %2808 = vst.msk [vmem:[%s2807] ss:$8 sm:$0x3] %vm2783, 0.0
      %2809 = vst.msk [vmem:[%s2807] ss:$8 sm:$0x0] %vm2783, 0.0
      %s2810 = scalar_lea.vmem [#allocation2], 288
      %2811 = vst.msk [vmem:[%s2810] ss:$8 sm:$0x3] %vm2783, 0.0
      %2812 = vst.msk [vmem:[%s2810] ss:$8 sm:$0x0] %vm2783, 0.0
      %s2813 = scalar_lea.vmem [#allocation2], 320
      %2814 = vst.msk [vmem:[%s2813] ss:$8 sm:$0x3] %vm2783, 0.0
      %2815 = vst.msk [vmem:[%s2813] ss:$8 sm:$0x0] %vm2783, 0.0
      %s2816 = scalar_lea.vmem [#allocation2], 352
      %2817 = vst.msk [vmem:[%s2816] ss:$8 sm:$0x3] %vm2783, 0.0
      %2818 = vst.msk [vmem:[%s2816] ss:$8 sm:$0x0] %vm2783, 0.0
      %s2819 = scalar_lea.vmem [#allocation2], 384
      %2820 = vst.msk [vmem:[%s2819] ss:$8 sm:$0x3] %vm2783, 0.0
      %2821 = vst.msk [vmem:[%s2819] ss:$8 sm:$0x0] %vm2783, 0.0
      %s2822 = scalar_lea.vmem [#allocation2], 416
      %2823 = vst.msk [vmem:[%s2822] ss:$8 sm:$0x3] %vm2783, 0.0
      %2824 = vst.msk [vmem:[%s2822] ss:$8 sm:$0x0] %vm2783, 0.0
      %s2825 = scalar_lea.vmem [#allocation2], 448
      %2826 = vst.msk [vmem:[%s2825] ss:$8 sm:$0x3] %vm2783, 0.0
      %2827 = vst.msk [vmem:[%s2825] ss:$8 sm:$0x0] %vm2783, 0.0
      %s2828 = scalar_lea.vmem [#allocation2], 480
      %2829 = vst.msk [vmem:[%s2828] ss:$8 sm:$0x3] %vm2783, 0.0
      %2830 = vst.msk [vmem:[%s2828] ss:$8 sm:$0x0] %vm2783, 0.0
      %s2831 = scalar_lea.vmem [#allocation2], 512
      %2832 = vst.msk [vmem:[%s2831] ss:$8 sm:$0x3] %vm2783, 0.0
      %2833 = vst.msk [vmem:[%s2831] ss:$8 sm:$0x0] %vm2783, 0.0
      %s2834 = scalar_lea.vmem [#allocation2], 544
      %2835 = vst.msk [vmem:[%s2834] ss:$8 sm:$0x3] %vm2783, 0.0
      %2836 = vst.msk [vmem:[%s2834] ss:$8 sm:$0x0] %vm2783, 0.0
      %s2837 = scalar_lea.vmem [#allocation2], 576
      %2838 = vst.msk [vmem:[%s2837] ss:$8 sm:$0x3] %vm2783, 0.0
      %2839 = vst.msk [vmem:[%s2837] ss:$8 sm:$0x0] %vm2783, 0.0
      %s2840 = scalar_lea.vmem [#allocation2], 608
      %2841 = vst.msk [vmem:[%s2840] ss:$8 sm:$0x3] %vm2783, 0.0
      %2842 = vst.msk [vmem:[%s2840] ss:$8 sm:$0x0] %vm2783, 0.0
      %s2843 = scalar_lea.vmem [#allocation2], 640
      %2844 = vst.msk [vmem:[%s2843] ss:$8 sm:$0x3] %vm2783, 0.0
      %2845 = vst.msk [vmem:[%s2843] ss:$8 sm:$0x0] %vm2783, 0.0
      %s2846 = scalar_lea.vmem [#allocation2], 672
      %2847 = vst.msk [vmem:[%s2846] ss:$8 sm:$0x3] %vm2783, 0.0
      %2848 = vst.msk [vmem:[%s2846] ss:$8 sm:$0x0] %vm2783, 0.0
      %s2849 = scalar_lea.vmem [#allocation2], 704
      %2850 = vst.msk [vmem:[%s2849] ss:$8 sm:$0x3] %vm2783, 0.0
      %2851 = vst.msk [vmem:[%s2849] ss:$8 sm:$0x0] %vm2783, 0.0
      %s2852 = scalar_lea.vmem [#allocation2], 736
      %2853 = vst.msk [vmem:[%s2852] ss:$8 sm:$0x3] %vm2783, 0.0
      %2854 = vst.msk [vmem:[%s2852] ss:$8 sm:$0x0] %vm2783, 0.0
      %s2855 = scalar_lea.vmem [#allocation2], 768
      %2856 = vst.msk [vmem:[%s2855] ss:$8 sm:$0x3] %vm2783, 0.0
      %2857 = vst.msk [vmem:[%s2855] ss:$8 sm:$0x0] %vm2783, 0.0
      %s2858 = scalar_lea.vmem [#allocation2], 800
      %2859 = vst.msk [vmem:[%s2858] ss:$8 sm:$0x3] %vm2783, 0.0
      %2860 = vst.msk [vmem:[%s2858] ss:$8 sm:$0x0] %vm2783, 0.0
      %s2861 = scalar_lea.vmem [#allocation2], 832
      %2862 = vst.msk [vmem:[%s2861] ss:$8 sm:$0x3] %vm2783, 0.0
      %2863 = vst.msk [vmem:[%s2861] ss:$8 sm:$0x0] %vm2783, 0.0
      %s2864 = scalar_lea.vmem [#allocation2], 864
      %2865 = vst.msk [vmem:[%s2864] ss:$8 sm:$0x3] %vm2783, 0.0
      %2866 = vst.msk [vmem:[%s2864] ss:$8 sm:$0x0] %vm2783, 0.0
      %s2867 = scalar_lea.vmem [#allocation2], 896
      %2868 = vst.msk [vmem:[%s2867] ss:$8 sm:$0x3] %vm2783, 0.0
      %2869 = vst.msk [vmem:[%s2867] ss:$8 sm:$0x0] %vm2783, 0.0
      %s2870 = scalar_lea.vmem [#allocation2], 928
      %2871 = vst.msk [vmem:[%s2870] ss:$8 sm:$0x3] %vm2783, 0.0
      %2872 = vst.msk [vmem:[%s2870] ss:$8 sm:$0x0] %vm2783, 0.0
      %s2873 = scalar_lea.vmem [#allocation2], 960
      %2874 = vst.msk [vmem:[%s2873] ss:$8 sm:$0x3] %vm2783, 0.0
      %2875 = vst.msk [vmem:[%s2873] ss:$8 sm:$0x0] %vm2783, 0.0
      %s2876 = scalar_lea.vmem [#allocation2], 992
      %2877 = vst.msk [vmem:[%s2876] ss:$8 sm:$0x3] %vm2783, 0.0
      %2878 = vst.msk [vmem:[%s2876] ss:$8 sm:$0x0] %vm2783, 0.0
      %s2879 = scalar_lea.vmem [#allocation2], 17
      %2880 = vst.msk [vmem:[%s2879] ss:$8 sm:$0x3] %vm2783, 0.0
      %2881 = vst.msk [vmem:[%s2879] ss:$8 sm:$0x0] %vm2783, 0.0
      %s2882 = scalar_lea.vmem [#allocation2], 49
      %2883 = vst.msk [vmem:[%s2882] ss:$8 sm:$0x3] %vm2783, 0.0
      %2884 = vst.msk [vmem:[%s2882] ss:$8 sm:$0x0] %vm2783, 0.0
      %s2885 = scalar_lea.vmem [#allocation2], 81
      %2886 = vst.msk [vmem:[%s2885] ss:$8 sm:$0x3] %vm2783, 0.0
      %2887 = vst.msk [vmem:[%s2885] ss:$8 sm:$0x0] %vm2783, 0.0
      %s2888 = scalar_lea.vmem [#allocation2], 113
      %2889 = vst.msk [vmem:[%s2888] ss:$8 sm:$0x3] %vm2783, 0.0
      %2890 = vst.msk [vmem:[%s2888] ss:$8 sm:$0x0] %vm2783, 0.0
      %s2891 = scalar_lea.vmem [#allocation2], 145
      %2892 = vst.msk [vmem:[%s2891] ss:$8 sm:$0x3] %vm2783, 0.0
      %2893 = vst.msk [vmem:[%s2891] ss:$8 sm:$0x0] %vm2783, 0.0
      %s2894 = scalar_lea.vmem [#allocation2], 177
      %2895 = vst.msk [vmem:[%s2894] ss:$8 sm:$0x3] %vm2783, 0.0
      %2896 = vst.msk [vmem:[%s2894] ss:$8 sm:$0x0] %vm2783, 0.0
      %s2897 = scalar_lea.vmem [#allocation2], 209
      %2898 = vst.msk [vmem:[%s2897] ss:$8 sm:$0x3] %vm2783, 0.0
      %2899 = vst.msk [vmem:[%s2897] ss:$8 sm:$0x0] %vm2783, 0.0
      %s2900 = scalar_lea.vmem [#allocation2], 241
      %2901 = vst.msk [vmem:[%s2900] ss:$8 sm:$0x3] %vm2783, 0.0
      %2902 = vst.msk [vmem:[%s2900] ss:$8 sm:$0x0] %vm2783, 0.0
      %s2903 = scalar_lea.vmem [#allocation2], 273
      %2904 = vst.msk [vmem:[%s2903] ss:$8 sm:$0x3] %vm2783, 0.0
      %2905 = vst.msk [vmem:[%s2903] ss:$8 sm:$0x0] %vm2783, 0.0
      %s2906 = scalar_lea.vmem [#allocation2], 305
      %2907 = vst.msk [vmem:[%s2906] ss:$8 sm:$0x3] %vm2783, 0.0
      %2908 = vst.msk [vmem:[%s2906] ss:$8 sm:$0x0] %vm2783, 0.0
      %s2909 = scalar_lea.vmem [#allocation2], 337
      %2910 = vst.msk [vmem:[%s2909] ss:$8 sm:$0x3] %vm2783, 0.0
      %2911 = vst.msk [vmem:[%s2909] ss:$8 sm:$0x0] %vm2783, 0.0
      %s2912 = scalar_lea.vmem [#allocation2], 369
      %2913 = vst.msk [vmem:[%s2912] ss:$8 sm:$0x3] %vm2783, 0.0
      %2914 = vst.msk [vmem:[%s2912] ss:$8 sm:$0x0] %vm2783, 0.0
      %s2915 = scalar_lea.vmem [#allocation2], 401
      %2916 = vst.msk [vmem:[%s2915] ss:$8 sm:$0x3] %vm2783, 0.0
      %2917 = vst.msk [vmem:[%s2915] ss:$8 sm:$0x0] %vm2783, 0.0
      %s2918 = scalar_lea.vmem [#allocation2], 433
      %2919 = vst.msk [vmem:[%s2918] ss:$8 sm:$0x3] %vm2783, 0.0
      %2920 = vst.msk [vmem:[%s2918] ss:$8 sm:$0x0] %vm2783, 0.0
      %s2921 = scalar_lea.vmem [#allocation2], 465
      %2922 = vst.msk [vmem:[%s2921] ss:$8 sm:$0x3] %vm2783, 0.0
      %2923 = vst.msk [vmem:[%s2921] ss:$8 sm:$0x0] %vm2783, 0.0
      %s2924 = scalar_lea.vmem [#allocation2], 497
      %2925 = vst.msk [vmem:[%s2924] ss:$8 sm:$0x3] %vm2783, 0.0
      %2926 = vst.msk [vmem:[%s2924] ss:$8 sm:$0x0] %vm2783, 0.0
      %s2927 = scalar_lea.vmem [#allocation2], 529
      %2928 = vst.msk [vmem:[%s2927] ss:$8 sm:$0x3] %vm2783, 0.0
      %2929 = vst.msk [vmem:[%s2927] ss:$8 sm:$0x0] %vm2783, 0.0
      %s2930 = scalar_lea.vmem [#allocation2], 561
      %2931 = vst.msk [vmem:[%s2930] ss:$8 sm:$0x3] %vm2783, 0.0
      %2932 = vst.msk [vmem:[%s2930] ss:$8 sm:$0x0] %vm2783, 0.0
      %s2933 = scalar_lea.vmem [#allocation2], 593
      %2934 = vst.msk [vmem:[%s2933] ss:$8 sm:$0x3] %vm2783, 0.0
      %2935 = vst.msk [vmem:[%s2933] ss:$8 sm:$0x0] %vm2783, 0.0
      %s2936 = scalar_lea.vmem [#allocation2], 625
      %2937 = vst.msk [vmem:[%s2936] ss:$8 sm:$0x3] %vm2783, 0.0
      %2938 = vst.msk [vmem:[%s2936] ss:$8 sm:$0x0] %vm2783, 0.0
      %s2939 = scalar_lea.vmem [#allocation2], 657
      %2940 = vst.msk [vmem:[%s2939] ss:$8 sm:$0x3] %vm2783, 0.0
      %2941 = vst.msk [vmem:[%s2939] ss:$8 sm:$0x0] %vm2783, 0.0
      %s2942 = scalar_lea.vmem [#allocation2], 689
      %2943 = vst.msk [vmem:[%s2942] ss:$8 sm:$0x3] %vm2783, 0.0
      %2944 = vst.msk [vmem:[%s2942] ss:$8 sm:$0x0] %vm2783, 0.0
      %s2945 = scalar_lea.vmem [#allocation2], 721
      %2946 = vst.msk [vmem:[%s2945] ss:$8 sm:$0x3] %vm2783, 0.0
      %2947 = vst.msk [vmem:[%s2945] ss:$8 sm:$0x0] %vm2783, 0.0
      %s2948 = scalar_lea.vmem [#allocation2], 753
      %2949 = vst.msk [vmem:[%s2948] ss:$8 sm:$0x3] %vm2783, 0.0
      %2950 = vst.msk [vmem:[%s2948] ss:$8 sm:$0x0] %vm2783, 0.0
      %s2951 = scalar_lea.vmem [#allocation2], 785
      %2952 = vst.msk [vmem:[%s2951] ss:$8 sm:$0x3] %vm2783, 0.0
      %2953 = vst.msk [vmem:[%s2951] ss:$8 sm:$0x0] %vm2783, 0.0
      %s2954 = scalar_lea.vmem [#allocation2], 817
      %2955 = vst.msk [vmem:[%s2954] ss:$8 sm:$0x3] %vm2783, 0.0
      %2956 = vst.msk [vmem:[%s2954] ss:$8 sm:$0x0] %vm2783, 0.0
      %s2957 = scalar_lea.vmem [#allocation2], 849
      %2958 = vst.msk [vmem:[%s2957] ss:$8 sm:$0x3] %vm2783, 0.0
      %2959 = vst.msk [vmem:[%s2957] ss:$8 sm:$0x0] %vm2783, 0.0
      %s2960 = scalar_lea.vmem [#allocation2], 881
      %2961 = vst.msk [vmem:[%s2960] ss:$8 sm:$0x3] %vm2783, 0.0
      %2962 = vst.msk [vmem:[%s2960] ss:$8 sm:$0x0] %vm2783, 0.0
      %s2963 = scalar_lea.vmem [#allocation2], 913
      %2964 = vst.msk [vmem:[%s2963] ss:$8 sm:$0x3] %vm2783, 0.0
      %2965 = vst.msk [vmem:[%s2963] ss:$8 sm:$0x0] %vm2783, 0.0
      %s2966 = scalar_lea.vmem [#allocation2], 945
      %2967 = vst.msk [vmem:[%s2966] ss:$8 sm:$0x3] %vm2783, 0.0
      %2968 = vst.msk [vmem:[%s2966] ss:$8 sm:$0x0] %vm2783, 0.0
      %s2969 = scalar_lea.vmem [#allocation2], 977
      %2970 = vst.msk [vmem:[%s2969] ss:$8 sm:$0x3] %vm2783, 0.0
      %2971 = vst.msk [vmem:[%s2969] ss:$8 sm:$0x0] %vm2783, 0.0
      %s2972 = scalar_lea.vmem [#allocation2], 1009
      %2973 = vst.msk [vmem:[%s2972] ss:$8 sm:$0x3] %vm2783, 0.0
      %2974 = vst.msk [vmem:[%s2972] ss:$8 sm:$0x0] %vm2783, 0.0
      %v3039 = vrot.slane %v2716, 7
      %v3040 = vrot.slane %v2717, 7
      %v3041 = vrot.slane %v2718, 7
      %v3042 = vrot.slane %v2719, 7
      %v3043 = vrot.slane %v2720, 7
      %v3044 = vrot.slane %v2721, 7
      %v3045 = vrot.slane %v2722, 7
      %v3046 = vrot.slane %v2723, 7
      %v3047 = vrot.slane %v2724, 7
      %v3048 = vrot.slane %v2725, 7
      %v3049 = vrot.slane %v2726, 7
      %v3050 = vrot.slane %v2727, 7
      %v3051 = vrot.slane %v2728, 7
      %v3052 = vrot.slane %v2729, 7
      %v3053 = vrot.slane %v2730, 7
      %v3054 = vrot.slane %v2731, 7
      %v3055 = vrot.slane %v2732, 7
      %v3056 = vrot.slane %v2733, 7
      %v3057 = vrot.slane %v2734, 7
      %v3058 = vrot.slane %v2735, 7
      %v3059 = vrot.slane %v2736, 7
      %v3060 = vrot.slane %v2737, 7
      %v3061 = vrot.slane %v2738, 7
      %v3062 = vrot.slane %v2739, 7
      %v3063 = vrot.slane %v2740, 7
      %v3064 = vrot.slane %v2741, 7
      %v3065 = vrot.slane %v2742, 7
      %v3066 = vrot.slane %v2743, 7
      %v3067 = vrot.slane %v2744, 7
      %v3068 = vrot.slane %v2745, 7
      %v3069 = vrot.slane %v2746, 7
      %v3070 = vrot.slane %v2747, 7
      %v3071 = vrot.slane %v2748, 7
      %v3072 = vrot.slane %v2749, 7
      %v3073 = vrot.slane %v2750, 7
      %v3074 = vrot.slane %v2751, 7
      %v3075 = vrot.slane %v2752, 7
      %v3076 = vrot.slane %v2753, 7
      %v3077 = vrot.slane %v2754, 7
      %v3078 = vrot.slane %v2755, 7
      %v3079 = vrot.slane %v2756, 7
      %v3080 = vrot.slane %v2757, 7
      %v3081 = vrot.slane %v2758, 7
      %v3082 = vrot.slane %v2759, 7
      %v3083 = vrot.slane %v2760, 7
      %v3084 = vrot.slane %v2761, 7
      %v3085 = vrot.slane %v2762, 7
      %v3086 = vrot.slane %v2763, 7
      %v3087 = vrot.slane %v2764, 7
      %v3088 = vrot.slane %v2765, 7
      %v3089 = vrot.slane %v2766, 7
      %v3090 = vrot.slane %v2767, 7
      %v3091 = vrot.slane %v2768, 7
      %v3092 = vrot.slane %v2769, 7
      %v3093 = vrot.slane %v2770, 7
      %v3094 = vrot.slane %v2771, 7
      %v3095 = vrot.slane %v2772, 7
      %v3096 = vrot.slane %v2773, 7
      %v3097 = vrot.slane %v2774, 7
      %v3098 = vrot.slane %v2775, 7
      %v3099 = vrot.slane %v2776, 7
      %v3100 = vrot.slane %v2777, 7
      %v3101 = vrot.slane %v2778, 7
      %v3102 = vrot.slane %v2779, 7
      %3167 = vst [vmem:[#allocation2] sm:$0xfe] %v3039
      %3168 = vst [vmem:[#allocation2 + $0x8] sm:$0xfe] %v3040
      %3169 = vst [vmem:[#allocation2 + $0x10] sm:$0x1] %v3039
      %3170 = vst [vmem:[#allocation2 + $0x18] sm:$0x1] %v3040
      %3171 = vst [vmem:[#allocation2 + $0x20] sm:$0xfe] %v3041
      %3172 = vst [vmem:[#allocation2 + $0x28] sm:$0xfe] %v3042
      %3173 = vst [vmem:[#allocation2 + $0x30] sm:$0x1] %v3041
      %3174 = vst [vmem:[#allocation2 + $0x38] sm:$0x1] %v3042
      %3175 = vst [vmem:[#allocation2 + $0x40] sm:$0xfe] %v3043
      %3176 = vst [vmem:[#allocation2 + $0x48] sm:$0xfe] %v3044
      %3177 = vst [vmem:[#allocation2 + $0x50] sm:$0x1] %v3043
      %3178 = vst [vmem:[#allocation2 + $0x58] sm:$0x1] %v3044
      %3179 = vst [vmem:[#allocation2 + $0x60] sm:$0xfe] %v3045
      %3180 = vst [vmem:[#allocation2 + $0x68] sm:$0xfe] %v3046
      %3181 = vst [vmem:[#allocation2 + $0x70] sm:$0x1] %v3045
      %3182 = vst [vmem:[#allocation2 + $0x78] sm:$0x1] %v3046
      %3183 = vst [vmem:[#allocation2 + $0x80] sm:$0xfe] %v3047
      %3184 = vst [vmem:[#allocation2 + $0x88] sm:$0xfe] %v3048
      %3185 = vst [vmem:[#allocation2 + $0x90] sm:$0x1] %v3047
      %3186 = vst [vmem:[#allocation2 + $0x98] sm:$0x1] %v3048
      %3187 = vst [vmem:[#allocation2 + $0xa0] sm:$0xfe] %v3049
      %3188 = vst [vmem:[#allocation2 + $0xa8] sm:$0xfe] %v3050
      %3189 = vst [vmem:[#allocation2 + $0xb0] sm:$0x1] %v3049
      %3190 = vst [vmem:[#allocation2 + $0xb8] sm:$0x1] %v3050
      %3191 = vst [vmem:[#allocation2 + $0xc0] sm:$0xfe] %v3051
      %3192 = vst [vmem:[#allocation2 + $0xc8] sm:$0xfe] %v3052
      %3193 = vst [vmem:[#allocation2 + $0xd0] sm:$0x1] %v3051
      %3194 = vst [vmem:[#allocation2 + $0xd8] sm:$0x1] %v3052
      %3195 = vst [vmem:[#allocation2 + $0xe0] sm:$0xfe] %v3053
      %3196 = vst [vmem:[#allocation2 + $0xe8] sm:$0xfe] %v3054
      %3197 = vst [vmem:[#allocation2 + $0xf0] sm:$0x1] %v3053
      %3198 = vst [vmem:[#allocation2 + $0xf8] sm:$0x1] %v3054
      %3199 = vst [vmem:[#allocation2 + $0x100] sm:$0xfe] %v3055
      %3200 = vst [vmem:[#allocation2 + $0x108] sm:$0xfe] %v3056
      %3201 = vst [vmem:[#allocation2 + $0x110] sm:$0x1] %v3055
      %3202 = vst [vmem:[#allocation2 + $0x118] sm:$0x1] %v3056
      %3203 = vst [vmem:[#allocation2 + $0x120] sm:$0xfe] %v3057
      %3204 = vst [vmem:[#allocation2 + $0x128] sm:$0xfe] %v3058
      %3205 = vst [vmem:[#allocation2 + $0x130] sm:$0x1] %v3057
      %3206 = vst [vmem:[#allocation2 + $0x138] sm:$0x1] %v3058
      %3207 = vst [vmem:[#allocation2 + $0x140] sm:$0xfe] %v3059
      %3208 = vst [vmem:[#allocation2 + $0x148] sm:$0xfe] %v3060
      %3209 = vst [vmem:[#allocation2 + $0x150] sm:$0x1] %v3059
      %3210 = vst [vmem:[#allocation2 + $0x158] sm:$0x1] %v3060
      %3211 = vst [vmem:[#allocation2 + $0x160] sm:$0xfe] %v3061
      %3212 = vst [vmem:[#allocation2 + $0x168] sm:$0xfe] %v3062
      %3213 = vst [vmem:[#allocation2 + $0x170] sm:$0x1] %v3061
      %3214 = vst [vmem:[#allocation2 + $0x178] sm:$0x1] %v3062
      %3215 = vst [vmem:[#allocation2 + $0x180] sm:$0xfe] %v3063
      %3216 = vst [vmem:[#allocation2 + $0x188] sm:$0xfe] %v3064
      %3217 = vst [vmem:[#allocation2 + $0x190] sm:$0x1] %v3063
      %3218 = vst [vmem:[#allocation2 + $0x198] sm:$0x1] %v3064
      %3219 = vst [vmem:[#allocation2 + $0x1a0] sm:$0xfe] %v3065
      %3220 = vst [vmem:[#allocation2 + $0x1a8] sm:$0xfe] %v3066
      %3221 = vst [vmem:[#allocation2 + $0x1b0] sm:$0x1] %v3065
      %3222 = vst [vmem:[#allocation2 + $0x1b8] sm:$0x1] %v3066
      %3223 = vst [vmem:[#allocation2 + $0x1c0] sm:$0xfe] %v3067
      %3224 = vst [vmem:[#allocation2 + $0x1c8] sm:$0xfe] %v3068
      %3225 = vst [vmem:[#allocation2 + $0x1d0] sm:$0x1] %v3067
      %3226 = vst [vmem:[#allocation2 + $0x1d8] sm:$0x1] %v3068
      %3227 = vst [vmem:[#allocation2 + $0x1e0] sm:$0xfe] %v3069
      %3228 = vst [vmem:[#allocation2 + $0x1e8] sm:$0xfe] %v3070
      %3229 = vst [vmem:[#allocation2 + $0x1f0] sm:$0x1] %v3069
      %3230 = vst [vmem:[#allocation2 + $0x1f8] sm:$0x1] %v3070
      %3231 = vst [vmem:[#allocation2 + $0x200] sm:$0xfe] %v3071
      %3232 = vst [vmem:[#allocation2 + $0x208] sm:$0xfe] %v3072
      %3233 = vst [vmem:[#allocation2 + $0x210] sm:$0x1] %v3071
      %3234 = vst [vmem:[#allocation2 + $0x218] sm:$0x1] %v3072
      %3235 = vst [vmem:[#allocation2 + $0x220] sm:$0xfe] %v3073
      %3236 = vst [vmem:[#allocation2 + $0x228] sm:$0xfe] %v3074
      %3237 = vst [vmem:[#allocation2 + $0x230] sm:$0x1] %v3073
      %3238 = vst [vmem:[#allocation2 + $0x238] sm:$0x1] %v3074
      %3239 = vst [vmem:[#allocation2 + $0x240] sm:$0xfe] %v3075
      %3240 = vst [vmem:[#allocation2 + $0x248] sm:$0xfe] %v3076
      %3241 = vst [vmem:[#allocation2 + $0x250] sm:$0x1] %v3075
      %3242 = vst [vmem:[#allocation2 + $0x258] sm:$0x1] %v3076
      %3243 = vst [vmem:[#allocation2 + $0x260] sm:$0xfe] %v3077
      %3244 = vst [vmem:[#allocation2 + $0x268] sm:$0xfe] %v3078
      %3245 = vst [vmem:[#allocation2 + $0x270] sm:$0x1] %v3077
      %3246 = vst [vmem:[#allocation2 + $0x278] sm:$0x1] %v3078
      %3247 = vst [vmem:[#allocation2 + $0x280] sm:$0xfe] %v3079
      %3248 = vst [vmem:[#allocation2 + $0x288] sm:$0xfe] %v3080
      %3249 = vst [vmem:[#allocation2 + $0x290] sm:$0x1] %v3079
      %3250 = vst [vmem:[#allocation2 + $0x298] sm:$0x1] %v3080
      %3251 = vst [vmem:[#allocation2 + $0x2a0] sm:$0xfe] %v3081
      %3252 = vst [vmem:[#allocation2 + $0x2a8] sm:$0xfe] %v3082
      %3253 = vst [vmem:[#allocation2 + $0x2b0] sm:$0x1] %v3081
      %3254 = vst [vmem:[#allocation2 + $0x2b8] sm:$0x1] %v3082
      %3255 = vst [vmem:[#allocation2 + $0x2c0] sm:$0xfe] %v3083
      %3256 = vst [vmem:[#allocation2 + $0x2c8] sm:$0xfe] %v3084
      %3257 = vst [vmem:[#allocation2 + $0x2d0] sm:$0x1] %v3083
      %3258 = vst [vmem:[#allocation2 + $0x2d8] sm:$0x1] %v3084
      %3259 = vst [vmem:[#allocation2 + $0x2e0] sm:$0xfe] %v3085
      %3260 = vst [vmem:[#allocation2 + $0x2e8] sm:$0xfe] %v3086
      %3261 = vst [vmem:[#allocation2 + $0x2f0] sm:$0x1] %v3085
      %3262 = vst [vmem:[#allocation2 + $0x2f8] sm:$0x1] %v3086
      %3263 = vst [vmem:[#allocation2 + $0x300] sm:$0xfe] %v3087
      %3264 = vst [vmem:[#allocation2 + $0x308] sm:$0xfe] %v3088
      %3265 = vst [vmem:[#allocation2 + $0x310] sm:$0x1] %v3087
      %3266 = vst [vmem:[#allocation2 + $0x318] sm:$0x1] %v3088
      %3267 = vst [vmem:[#allocation2 + $0x320] sm:$0xfe] %v3089
      %3268 = vst [vmem:[#allocation2 + $0x328] sm:$0xfe] %v3090
      %3269 = vst [vmem:[#allocation2 + $0x330] sm:$0x1] %v3089
      %3270 = vst [vmem:[#allocation2 + $0x338] sm:$0x1] %v3090
      %3271 = vst [vmem:[#allocation2 + $0x340] sm:$0xfe] %v3091
      %3272 = vst [vmem:[#allocation2 + $0x348] sm:$0xfe] %v3092
      %3273 = vst [vmem:[#allocation2 + $0x350] sm:$0x1] %v3091
      %3274 = vst [vmem:[#allocation2 + $0x358] sm:$0x1] %v3092
      %3275 = vst [vmem:[#allocation2 + $0x360] sm:$0xfe] %v3093
      %3276 = vst [vmem:[#allocation2 + $0x368] sm:$0xfe] %v3094
      %3277 = vst [vmem:[#allocation2 + $0x370] sm:$0x1] %v3093
      %3278 = vst [vmem:[#allocation2 + $0x378] sm:$0x1] %v3094
      %3279 = vst [vmem:[#allocation2 + $0x380] sm:$0xfe] %v3095
      %3280 = vst [vmem:[#allocation2 + $0x388] sm:$0xfe] %v3096
      %3281 = vst [vmem:[#allocation2 + $0x390] sm:$0x1] %v3095
      %3282 = vst [vmem:[#allocation2 + $0x398] sm:$0x1] %v3096
      %3283 = vst [vmem:[#allocation2 + $0x3a0] sm:$0xfe] %v3097
      %3284 = vst [vmem:[#allocation2 + $0x3a8] sm:$0xfe] %v3098
      %3285 = vst [vmem:[#allocation2 + $0x3b0] sm:$0x1] %v3097
      %3286 = vst [vmem:[#allocation2 + $0x3b8] sm:$0x1] %v3098
      %3287 = vst [vmem:[#allocation2 + $0x3c0] sm:$0xfe] %v3099
      %3288 = vst [vmem:[#allocation2 + $0x3c8] sm:$0xfe] %v3100
      %3289 = vst [vmem:[#allocation2 + $0x3d0] sm:$0x1] %v3099
      %3290 = vst [vmem:[#allocation2 + $0x3d8] sm:$0x1] %v3100
      %3291 = vst [vmem:[#allocation2 + $0x3e0] sm:$0xfe] %v3101
      %3292 = vst [vmem:[#allocation2 + $0x3e8] sm:$0xfe] %v3102
      %3293 = vst [vmem:[#allocation2 + $0x3f0] sm:$0x1] %v3101
      %3294 = vst [vmem:[#allocation2 + $0x3f8] sm:$0x1] %v3102
      %v3295 = vld [vmem:[#allocation2] sm:$0xff]
      %v3296 = vld [vmem:[#allocation2 + $0x8] sm:$0xff]
      %v3297 = vld [vmem:[#allocation2 + $0x20] sm:$0xff]
      %v3298 = vld [vmem:[#allocation2 + $0x28] sm:$0xff]
      %v3299 = vld [vmem:[#allocation2 + $0x40] sm:$0xff]
      %v3300 = vld [vmem:[#allocation2 + $0x48] sm:$0xff]
      %v3301 = vld [vmem:[#allocation2 + $0x60] sm:$0xff]
      %v3302 = vld [vmem:[#allocation2 + $0x68] sm:$0xff]
      %v3303 = vld [vmem:[#allocation2 + $0x80] sm:$0xff]
      %v3304 = vld [vmem:[#allocation2 + $0x88] sm:$0xff]
      %v3305 = vld [vmem:[#allocation2 + $0xa0] sm:$0xff]
      %v3306 = vld [vmem:[#allocation2 + $0xa8] sm:$0xff]
      %v3307 = vld [vmem:[#allocation2 + $0xc0] sm:$0xff]
      %v3308 = vld [vmem:[#allocation2 + $0xc8] sm:$0xff]
      %v3309 = vld [vmem:[#allocation2 + $0xe0] sm:$0xff]
      %v3310 = vld [vmem:[#allocation2 + $0xe8] sm:$0xff]
      %v3311 = vld [vmem:[#allocation2 + $0x100] sm:$0xff]
      %v3312 = vld [vmem:[#allocation2 + $0x108] sm:$0xff]
      %v3313 = vld [vmem:[#allocation2 + $0x120] sm:$0xff]
      %v3314 = vld [vmem:[#allocation2 + $0x128] sm:$0xff]
      %v3315 = vld [vmem:[#allocation2 + $0x140] sm:$0xff]
      %v3316 = vld [vmem:[#allocation2 + $0x148] sm:$0xff]
      %v3317 = vld [vmem:[#allocation2 + $0x160] sm:$0xff]
      %v3318 = vld [vmem:[#allocation2 + $0x168] sm:$0xff]
      %v3319 = vld [vmem:[#allocation2 + $0x180] sm:$0xff]
      %v3320 = vld [vmem:[#allocation2 + $0x188] sm:$0xff]
      %v3321 = vld [vmem:[#allocation2 + $0x1a0] sm:$0xff]
      %v3322 = vld [vmem:[#allocation2 + $0x1a8] sm:$0xff]
      %v3323 = vld [vmem:[#allocation2 + $0x1c0] sm:$0xff]
      %v3324 = vld [vmem:[#allocation2 + $0x1c8] sm:$0xff]
      %v3325 = vld [vmem:[#allocation2 + $0x1e0] sm:$0xff]
      %v3326 = vld [vmem:[#allocation2 + $0x1e8] sm:$0xff]
      %v3327 = vld [vmem:[#allocation2 + $0x200] sm:$0xff]
      %v3328 = vld [vmem:[#allocation2 + $0x208] sm:$0xff]
      %v3329 = vld [vmem:[#allocation2 + $0x220] sm:$0xff]
      %v3330 = vld [vmem:[#allocation2 + $0x228] sm:$0xff]
      %v3331 = vld [vmem:[#allocation2 + $0x240] sm:$0xff]
      %v3332 = vld [vmem:[#allocation2 + $0x248] sm:$0xff]
      %v3333 = vld [vmem:[#allocation2 + $0x260] sm:$0xff]
      %v3334 = vld [vmem:[#allocation2 + $0x268] sm:$0xff]
      %v3335 = vld [vmem:[#allocation2 + $0x280] sm:$0xff]
      %v3336 = vld [vmem:[#allocation2 + $0x288] sm:$0xff]
      %v3337 = vld [vmem:[#allocation2 + $0x2a0] sm:$0xff]
      %v3338 = vld [vmem:[#allocation2 + $0x2a8] sm:$0xff]
      %v3339 = vld [vmem:[#allocation2 + $0x2c0] sm:$0xff]
      %v3340 = vld [vmem:[#allocation2 + $0x2c8] sm:$0xff]
      %v3341 = vld [vmem:[#allocation2 + $0x2e0] sm:$0xff]
      %v3342 = vld [vmem:[#allocation2 + $0x2e8] sm:$0xff]
      %v3343 = vld [vmem:[#allocation2 + $0x300] sm:$0xff]
      %v3344 = vld [vmem:[#allocation2 + $0x308] sm:$0xff]
      %v3345 = vld [vmem:[#allocation2 + $0x320] sm:$0xff]
      %v3346 = vld [vmem:[#allocation2 + $0x328] sm:$0xff]
      %v3347 = vld [vmem:[#allocation2 + $0x340] sm:$0xff]
      %v3348 = vld [vmem:[#allocation2 + $0x348] sm:$0xff]
      %v3349 = vld [vmem:[#allocation2 + $0x360] sm:$0xff]
      %v3350 = vld [vmem:[#allocation2 + $0x368] sm:$0xff]
      %v3351 = vld [vmem:[#allocation2 + $0x380] sm:$0xff]
      %v3352 = vld [vmem:[#allocation2 + $0x388] sm:$0xff]
      %v3353 = vld [vmem:[#allocation2 + $0x3a0] sm:$0xff]
      %v3354 = vld [vmem:[#allocation2 + $0x3a8] sm:$0xff]
      %v3355 = vld [vmem:[#allocation2 + $0x3c0] sm:$0xff]
      %v3356 = vld [vmem:[#allocation2 + $0x3c8] sm:$0xff]
      %v3357 = vld [vmem:[#allocation2 + $0x3e0] sm:$0xff]
      %v3358 = vld [vmem:[#allocation2 + $0x3e8] sm:$0xff]
      %v3359 = vpack.c.bf16 %v3297, %v3295
      %v3360 = vpack.c.bf16 %v3298, %v3296
      %v3361 = vpack.c.bf16 %v3301, %v3299
      %v3362 = vpack.c.bf16 %v3302, %v3300
      %v3363 = vpack.c.bf16 %v3305, %v3303
      %v3364 = vpack.c.bf16 %v3306, %v3304
      %v3365 = vpack.c.bf16 %v3309, %v3307
      %v3366 = vpack.c.bf16 %v3310, %v3308
      %v3367 = vpack.c.bf16 %v3313, %v3311
      %v3368 = vpack.c.bf16 %v3314, %v3312
      %v3369 = vpack.c.bf16 %v3317, %v3315
      %v3370 = vpack.c.bf16 %v3318, %v3316
      %v3371 = vpack.c.bf16 %v3321, %v3319
      %v3372 = vpack.c.bf16 %v3322, %v3320
      %v3373 = vpack.c.bf16 %v3325, %v3323
      %v3374 = vpack.c.bf16 %v3326, %v3324
      %v3375 = vpack.c.bf16 %v3329, %v3327
      %v3376 = vpack.c.bf16 %v3330, %v3328
      %v3377 = vpack.c.bf16 %v3333, %v3331
      %v3378 = vpack.c.bf16 %v3334, %v3332
      %v3379 = vpack.c.bf16 %v3337, %v3335
      %v3380 = vpack.c.bf16 %v3338, %v3336
      %v3381 = vpack.c.bf16 %v3341, %v3339
      %v3382 = vpack.c.bf16 %v3342, %v3340
      %v3383 = vpack.c.bf16 %v3345, %v3343
      %v3384 = vpack.c.bf16 %v3346, %v3344
      %v3385 = vpack.c.bf16 %v3349, %v3347
      %v3386 = vpack.c.bf16 %v3350, %v3348
      %v3387 = vpack.c.bf16 %v3353, %v3351
      %v3388 = vpack.c.bf16 %v3354, %v3352
      %v3389 = vpack.c.bf16 %v3357, %v3355
      %v3390 = vpack.c.bf16 %v3358, %v3356
      %v3391 = vld [vmem:[%s3] sm:$0xff]
      %v3392 = vld [vmem:[%s3 + $0x8] sm:$0xff]
      %v3393 = vld [vmem:[%s3 + $0x10] sm:$0xff]
      %v3394 = vld [vmem:[%s3 + $0x18] sm:$0xff]
      %v3395 = vld [vmem:[%s3 + $0x20] sm:$0xff]
      %v3396 = vld [vmem:[%s3 + $0x28] sm:$0xff]
      %v3397 = vld [vmem:[%s3 + $0x30] sm:$0xff]
      %v3398 = vld [vmem:[%s3 + $0x38] sm:$0xff]
      %v3399 = vld [vmem:[%s3 + $0x40] sm:$0xff]
      %v3400 = vld [vmem:[%s3 + $0x48] sm:$0xff]
      %v3401 = vld [vmem:[%s3 + $0x50] sm:$0xff]
      %v3402 = vld [vmem:[%s3 + $0x58] sm:$0xff]
      %v3403 = vld [vmem:[%s3 + $0x60] sm:$0xff]
      %v3404 = vld [vmem:[%s3 + $0x68] sm:$0xff]
      %v3405 = vld [vmem:[%s3 + $0x70] sm:$0xff]
      %v3406 = vld [vmem:[%s3 + $0x78] sm:$0xff]
      %v3407 = vld [vmem:[%s3 + $0x80] sm:$0xff]
      %v3408 = vld [vmem:[%s3 + $0x88] sm:$0xff]
      %v3409 = vld [vmem:[%s3 + $0x90] sm:$0xff]
      %v3410 = vld [vmem:[%s3 + $0x98] sm:$0xff]
      %v3411 = vld [vmem:[%s3 + $0xa0] sm:$0xff]
      %v3412 = vld [vmem:[%s3 + $0xa8] sm:$0xff]
      %v3413 = vld [vmem:[%s3 + $0xb0] sm:$0xff]
      %v3414 = vld [vmem:[%s3 + $0xb8] sm:$0xff]
      %v3415 = vld [vmem:[%s3 + $0xc0] sm:$0xff]
      %v3416 = vld [vmem:[%s3 + $0xc8] sm:$0xff]
      %v3417 = vld [vmem:[%s3 + $0xd0] sm:$0xff]
      %v3418 = vld [vmem:[%s3 + $0xd8] sm:$0xff]
      %v3419 = vld [vmem:[%s3 + $0xe0] sm:$0xff]
      %v3420 = vld [vmem:[%s3 + $0xe8] sm:$0xff]
      %v3421 = vld [vmem:[%s3 + $0xf0] sm:$0xff]
      %v3422 = vld [vmem:[%s3 + $0xf8] sm:$0xff]
      %v3423 = vld [vmem:[#allocation2] sm:$0xfe]
      %v3424 = vld [vmem:[#allocation2 + $0x8] sm:$0xfe]
      %v3425 = vld [vmem:[#allocation2 + $0x10] sm:$0x1]
      %v3426 = vld [vmem:[#allocation2 + $0x18] sm:$0x1]
      %v3427 = vld [vmem:[#allocation2 + $0x20] sm:$0xfe]
      %v3428 = vld [vmem:[#allocation2 + $0x28] sm:$0xfe]
      %v3429 = vld [vmem:[#allocation2 + $0x30] sm:$0x1]
      %v3430 = vld [vmem:[#allocation2 + $0x38] sm:$0x1]
      %v3431 = vld [vmem:[#allocation2 + $0x40] sm:$0xfe]
      %v3432 = vld [vmem:[#allocation2 + $0x48] sm:$0xfe]
      %v3433 = vld [vmem:[#allocation2 + $0x50] sm:$0x1]
      %v3434 = vld [vmem:[#allocation2 + $0x58] sm:$0x1]
      %v3435 = vld [vmem:[#allocation2 + $0x60] sm:$0xfe]
      %v3436 = vld [vmem:[#allocation2 + $0x68] sm:$0xfe]
      %v3437 = vld [vmem:[#allocation2 + $0x70] sm:$0x1]
      %v3438 = vld [vmem:[#allocation2 + $0x78] sm:$0x1]
      %v3439 = vld [vmem:[#allocation2 + $0x80] sm:$0xfe]
      %v3440 = vld [vmem:[#allocation2 + $0x88] sm:$0xfe]
      %v3441 = vld [vmem:[#allocation2 + $0x90] sm:$0x1]
      %v3442 = vld [vmem:[#allocation2 + $0x98] sm:$0x1]
      %v3443 = vld [vmem:[#allocation2 + $0xa0] sm:$0xfe]
      %v3444 = vld [vmem:[#allocation2 + $0xa8] sm:$0xfe]
      %v3445 = vld [vmem:[#allocation2 + $0xb0] sm:$0x1]
      %v3446 = vld [vmem:[#allocation2 + $0xb8] sm:$0x1]
      %v3447 = vld [vmem:[#allocation2 + $0xc0] sm:$0xfe]
      %v3448 = vld [vmem:[#allocation2 + $0xc8] sm:$0xfe]
      %v3449 = vld [vmem:[#allocation2 + $0xd0] sm:$0x1]
      %v3450 = vld [vmem:[#allocation2 + $0xd8] sm:$0x1]
      %v3451 = vld [vmem:[#allocation2 + $0xe0] sm:$0xfe]
      %v3452 = vld [vmem:[#allocation2 + $0xe8] sm:$0xfe]
      %v3453 = vld [vmem:[#allocation2 + $0xf0] sm:$0x1]
      %v3454 = vld [vmem:[#allocation2 + $0xf8] sm:$0x1]
      %v3455 = vld [vmem:[#allocation2 + $0x100] sm:$0xfe]
      %v3456 = vld [vmem:[#allocation2 + $0x108] sm:$0xfe]
      %v3457 = vld [vmem:[#allocation2 + $0x110] sm:$0x1]
      %v3458 = vld [vmem:[#allocation2 + $0x118] sm:$0x1]
      %v3459 = vld [vmem:[#allocation2 + $0x120] sm:$0xfe]
      %v3460 = vld [vmem:[#allocation2 + $0x128] sm:$0xfe]
      %v3461 = vld [vmem:[#allocation2 + $0x130] sm:$0x1]
      %v3462 = vld [vmem:[#allocation2 + $0x138] sm:$0x1]
      %v3463 = vld [vmem:[#allocation2 + $0x140] sm:$0xfe]
      %v3464 = vld [vmem:[#allocation2 + $0x148] sm:$0xfe]
      %v3465 = vld [vmem:[#allocation2 + $0x150] sm:$0x1]
      %v3466 = vld [vmem:[#allocation2 + $0x158] sm:$0x1]
      %v3467 = vld [vmem:[#allocation2 + $0x160] sm:$0xfe]
      %v3468 = vld [vmem:[#allocation2 + $0x168] sm:$0xfe]
      %v3469 = vld [vmem:[#allocation2 + $0x170] sm:$0x1]
      %v3470 = vld [vmem:[#allocation2 + $0x178] sm:$0x1]
      %v3471 = vld [vmem:[#allocation2 + $0x180] sm:$0xfe]
      %v3472 = vld [vmem:[#allocation2 + $0x188] sm:$0xfe]
      %v3473 = vld [vmem:[#allocation2 + $0x190] sm:$0x1]
      %v3474 = vld [vmem:[#allocation2 + $0x198] sm:$0x1]
      %v3475 = vld [vmem:[#allocation2 + $0x1a0] sm:$0xfe]
      %v3476 = vld [vmem:[#allocation2 + $0x1a8] sm:$0xfe]
      %v3477 = vld [vmem:[#allocation2 + $0x1b0] sm:$0x1]
      %v3478 = vld [vmem:[#allocation2 + $0x1b8] sm:$0x1]
      %v3479 = vld [vmem:[#allocation2 + $0x1c0] sm:$0xfe]
      %v3480 = vld [vmem:[#allocation2 + $0x1c8] sm:$0xfe]
      %v3481 = vld [vmem:[#allocation2 + $0x1d0] sm:$0x1]
      %v3482 = vld [vmem:[#allocation2 + $0x1d8] sm:$0x1]
      %v3483 = vld [vmem:[#allocation2 + $0x1e0] sm:$0xfe]
      %v3484 = vld [vmem:[#allocation2 + $0x1e8] sm:$0xfe]
      %v3485 = vld [vmem:[#allocation2 + $0x1f0] sm:$0x1]
      %v3486 = vld [vmem:[#allocation2 + $0x1f8] sm:$0x1]
      %v3487 = vld [vmem:[#allocation2 + $0x200] sm:$0xfe]
      %v3488 = vld [vmem:[#allocation2 + $0x208] sm:$0xfe]
      %v3489 = vld [vmem:[#allocation2 + $0x210] sm:$0x1]
      %v3490 = vld [vmem:[#allocation2 + $0x218] sm:$0x1]
      %v3491 = vld [vmem:[#allocation2 + $0x220] sm:$0xfe]
      %v3492 = vld [vmem:[#allocation2 + $0x228] sm:$0xfe]
      %v3493 = vld [vmem:[#allocation2 + $0x230] sm:$0x1]
      %v3494 = vld [vmem:[#allocation2 + $0x238] sm:$0x1]
      %v3495 = vld [vmem:[#allocation2 + $0x240] sm:$0xfe]
      %v3496 = vld [vmem:[#allocation2 + $0x248] sm:$0xfe]
      %v3497 = vld [vmem:[#allocation2 + $0x250] sm:$0x1]
      %v3498 = vld [vmem:[#allocation2 + $0x258] sm:$0x1]
      %v3499 = vld [vmem:[#allocation2 + $0x260] sm:$0xfe]
      %v3500 = vld [vmem:[#allocation2 + $0x268] sm:$0xfe]
      %v3501 = vld [vmem:[#allocation2 + $0x270] sm:$0x1]
      %v3502 = vld [vmem:[#allocation2 + $0x278] sm:$0x1]
      %v3503 = vld [vmem:[#allocation2 + $0x280] sm:$0xfe]
      %v3504 = vld [vmem:[#allocation2 + $0x288] sm:$0xfe]
      %v3505 = vld [vmem:[#allocation2 + $0x290] sm:$0x1]
      %v3506 = vld [vmem:[#allocation2 + $0x298] sm:$0x1]
      %v3507 = vld [vmem:[#allocation2 + $0x2a0] sm:$0xfe]
      %v3508 = vld [vmem:[#allocation2 + $0x2a8] sm:$0xfe]
      %v3509 = vld [vmem:[#allocation2 + $0x2b0] sm:$0x1]
      %v3510 = vld [vmem:[#allocation2 + $0x2b8] sm:$0x1]
      %v3511 = vld [vmem:[#allocation2 + $0x2c0] sm:$0xfe]
      %v3512 = vld [vmem:[#allocation2 + $0x2c8] sm:$0xfe]
      %v3513 = vld [vmem:[#allocation2 + $0x2d0] sm:$0x1]
      %v3514 = vld [vmem:[#allocation2 + $0x2d8] sm:$0x1]
      %v3515 = vld [vmem:[#allocation2 + $0x2e0] sm:$0xfe]
      %v3516 = vld [vmem:[#allocation2 + $0x2e8] sm:$0xfe]
      %v3517 = vld [vmem:[#allocation2 + $0x2f0] sm:$0x1]
      %v3518 = vld [vmem:[#allocation2 + $0x2f8] sm:$0x1]
      %v3519 = vld [vmem:[#allocation2 + $0x300] sm:$0xfe]
      %v3520 = vld [vmem:[#allocation2 + $0x308] sm:$0xfe]
      %v3521 = vld [vmem:[#allocation2 + $0x310] sm:$0x1]
      %v3522 = vld [vmem:[#allocation2 + $0x318] sm:$0x1]
      %v3523 = vld [vmem:[#allocation2 + $0x320] sm:$0xfe]
      %v3524 = vld [vmem:[#allocation2 + $0x328] sm:$0xfe]
      %v3525 = vld [vmem:[#allocation2 + $0x330] sm:$0x1]
      %v3526 = vld [vmem:[#allocation2 + $0x338] sm:$0x1]
      %v3527 = vld [vmem:[#allocation2 + $0x340] sm:$0xfe]
      %v3528 = vld [vmem:[#allocation2 + $0x348] sm:$0xfe]
      %v3529 = vld [vmem:[#allocation2 + $0x350] sm:$0x1]
      %v3530 = vld [vmem:[#allocation2 + $0x358] sm:$0x1]
      %v3531 = vld [vmem:[#allocation2 + $0x360] sm:$0xfe]
      %v3532 = vld [vmem:[#allocation2 + $0x368] sm:$0xfe]
      %v3533 = vld [vmem:[#allocation2 + $0x370] sm:$0x1]
      %v3534 = vld [vmem:[#allocation2 + $0x378] sm:$0x1]
      %v3535 = vld [vmem:[#allocation2 + $0x380] sm:$0xfe]
      %v3536 = vld [vmem:[#allocation2 + $0x388] sm:$0xfe]
      %v3537 = vld [vmem:[#allocation2 + $0x390] sm:$0x1]
      %v3538 = vld [vmem:[#allocation2 + $0x398] sm:$0x1]
      %v3539 = vld [vmem:[#allocation2 + $0x3a0] sm:$0xfe]
      %v3540 = vld [vmem:[#allocation2 + $0x3a8] sm:$0xfe]
      %v3541 = vld [vmem:[#allocation2 + $0x3b0] sm:$0x1]
      %v3542 = vld [vmem:[#allocation2 + $0x3b8] sm:$0x1]
      %v3543 = vld [vmem:[#allocation2 + $0x3c0] sm:$0xfe]
      %v3544 = vld [vmem:[#allocation2 + $0x3c8] sm:$0xfe]
      %v3545 = vld [vmem:[#allocation2 + $0x3d0] sm:$0x1]
      %v3546 = vld [vmem:[#allocation2 + $0x3d8] sm:$0x1]
      %v3547 = vld [vmem:[#allocation2 + $0x3e0] sm:$0xfe]
      %v3548 = vld [vmem:[#allocation2 + $0x3e8] sm:$0xfe]
      %v3549 = vld [vmem:[#allocation2 + $0x3f0] sm:$0x1]
      %v3550 = vld [vmem:[#allocation2 + $0x3f8] sm:$0x1]
      %v3679 = vrot.slane %v3423, 1
      %v3680 = vrot.slane %v3425, 1
      %v3681 = vsel %vm617, %v3679, %v3680
      %v3682 = vrot.slane %v3424, 1
      %v3683 = vrot.slane %v3426, 1
      %v3684 = vsel %vm617, %v3682, %v3683
      %v3685 = vrot.slane %v3427, 1
      %v3686 = vrot.slane %v3429, 1
      %v3687 = vsel %vm617, %v3685, %v3686
      %v3688 = vrot.slane %v3428, 1
      %v3689 = vrot.slane %v3430, 1
      %v3690 = vsel %vm617, %v3688, %v3689
      %v3691 = vrot.slane %v3431, 1
      %v3692 = vrot.slane %v3433, 1
      %v3693 = vsel %vm617, %v3691, %v3692
      %v3694 = vrot.slane %v3432, 1
      %v3695 = vrot.slane %v3434, 1
      %v3696 = vsel %vm617, %v3694, %v3695
      %v3697 = vrot.slane %v3435, 1
      %v3698 = vrot.slane %v3437, 1
      %v3699 = vsel %vm617, %v3697, %v3698
      %v3700 = vrot.slane %v3436, 1
      %v3701 = vrot.slane %v3438, 1
      %v3702 = vsel %vm617, %v3700, %v3701
      %v3703 = vrot.slane %v3439, 1
      %v3704 = vrot.slane %v3441, 1
      %v3705 = vsel %vm617, %v3703, %v3704
      %v3706 = vrot.slane %v3440, 1
      %v3707 = vrot.slane %v3442, 1
      %v3708 = vsel %vm617, %v3706, %v3707
      %v3709 = vrot.slane %v3443, 1
      %v3710 = vrot.slane %v3445, 1
      %v3711 = vsel %vm617, %v3709, %v3710
      %v3712 = vrot.slane %v3444, 1
      %v3713 = vrot.slane %v3446, 1
      %v3714 = vsel %vm617, %v3712, %v3713
      %v3715 = vrot.slane %v3447, 1
      %v3716 = vrot.slane %v3449, 1
      %v3717 = vsel %vm617, %v3715, %v3716
      %v3718 = vrot.slane %v3448, 1
      %v3719 = vrot.slane %v3450, 1
      %v3720 = vsel %vm617, %v3718, %v3719
      %v3721 = vrot.slane %v3451, 1
      %v3722 = vrot.slane %v3453, 1
      %v3723 = vsel %vm617, %v3721, %v3722
      %v3724 = vrot.slane %v3452, 1
      %v3725 = vrot.slane %v3454, 1
      %v3726 = vsel %vm617, %v3724, %v3725
      %v3727 = vrot.slane %v3455, 1
      %v3728 = vrot.slane %v3457, 1
      %v3729 = vsel %vm617, %v3727, %v3728
      %v3730 = vrot.slane %v3456, 1
      %v3731 = vrot.slane %v3458, 1
      %v3732 = vsel %vm617, %v3730, %v3731
      %v3733 = vrot.slane %v3459, 1
      %v3734 = vrot.slane %v3461, 1
      %v3735 = vsel %vm617, %v3733, %v3734
      %v3736 = vrot.slane %v3460, 1
      %v3737 = vrot.slane %v3462, 1
      %v3738 = vsel %vm617, %v3736, %v3737
      %v3739 = vrot.slane %v3463, 1
      %v3740 = vrot.slane %v3465, 1
      %v3741 = vsel %vm617, %v3739, %v3740
      %v3742 = vrot.slane %v3464, 1
      %v3743 = vrot.slane %v3466, 1
      %v3744 = vsel %vm617, %v3742, %v3743
      %v3745 = vrot.slane %v3467, 1
      %v3746 = vrot.slane %v3469, 1
      %v3747 = vsel %vm617, %v3745, %v3746
      %v3748 = vrot.slane %v3468, 1
      %v3749 = vrot.slane %v3470, 1
      %v3750 = vsel %vm617, %v3748, %v3749
      %v3751 = vrot.slane %v3471, 1
      %v3752 = vrot.slane %v3473, 1
      %v3753 = vsel %vm617, %v3751, %v3752
      %v3754 = vrot.slane %v3472, 1
      %v3755 = vrot.slane %v3474, 1
      %v3756 = vsel %vm617, %v3754, %v3755
      %v3757 = vrot.slane %v3475, 1
      %v3758 = vrot.slane %v3477, 1
      %v3759 = vsel %vm617, %v3757, %v3758
      %v3760 = vrot.slane %v3476, 1
      %v3761 = vrot.slane %v3478, 1
      %v3762 = vsel %vm617, %v3760, %v3761
      %v3763 = vrot.slane %v3479, 1
      %v3764 = vrot.slane %v3481, 1
      %v3765 = vsel %vm617, %v3763, %v3764
      %v3766 = vrot.slane %v3480, 1
      %v3767 = vrot.slane %v3482, 1
      %v3768 = vsel %vm617, %v3766, %v3767
      %v3769 = vrot.slane %v3483, 1
      %v3770 = vrot.slane %v3485, 1
      %v3771 = vsel %vm617, %v3769, %v3770
      %v3772 = vrot.slane %v3484, 1
      %v3773 = vrot.slane %v3486, 1
      %v3774 = vsel %vm617, %v3772, %v3773
      %v3775 = vrot.slane %v3487, 1
      %v3776 = vrot.slane %v3489, 1
      %v3777 = vsel %vm617, %v3775, %v3776
      %v3778 = vrot.slane %v3488, 1
      %v3779 = vrot.slane %v3490, 1
      %v3780 = vsel %vm617, %v3778, %v3779
      %v3781 = vrot.slane %v3491, 1
      %v3782 = vrot.slane %v3493, 1
      %v3783 = vsel %vm617, %v3781, %v3782
      %v3784 = vrot.slane %v3492, 1
      %v3785 = vrot.slane %v3494, 1
      %v3786 = vsel %vm617, %v3784, %v3785
      %v3787 = vrot.slane %v3495, 1
      %v3788 = vrot.slane %v3497, 1
      %v3789 = vsel %vm617, %v3787, %v3788
      %v3790 = vrot.slane %v3496, 1
      %v3791 = vrot.slane %v3498, 1
      %v3792 = vsel %vm617, %v3790, %v3791
      %v3793 = vrot.slane %v3499, 1
      %v3794 = vrot.slane %v3501, 1
      %v3795 = vsel %vm617, %v3793, %v3794
      %v3796 = vrot.slane %v3500, 1
      %v3797 = vrot.slane %v3502, 1
      %v3798 = vsel %vm617, %v3796, %v3797
      %v3799 = vrot.slane %v3503, 1
      %v3800 = vrot.slane %v3505, 1
      %v3801 = vsel %vm617, %v3799, %v3800
      %v3802 = vrot.slane %v3504, 1
      %v3803 = vrot.slane %v3506, 1
      %v3804 = vsel %vm617, %v3802, %v3803
      %v3805 = vrot.slane %v3507, 1
      %v3806 = vrot.slane %v3509, 1
      %v3807 = vsel %vm617, %v3805, %v3806
      %v3808 = vrot.slane %v3508, 1
      %v3809 = vrot.slane %v3510, 1
      %v3810 = vsel %vm617, %v3808, %v3809
      %v3811 = vrot.slane %v3511, 1
      %v3812 = vrot.slane %v3513, 1
      %v3813 = vsel %vm617, %v3811, %v3812
      %v3814 = vrot.slane %v3512, 1
      %v3815 = vrot.slane %v3514, 1
      %v3816 = vsel %vm617, %v3814, %v3815
      %v3817 = vrot.slane %v3515, 1
      %v3818 = vrot.slane %v3517, 1
      %v3819 = vsel %vm617, %v3817, %v3818
      %v3820 = vrot.slane %v3516, 1
      %v3821 = vrot.slane %v3518, 1
      %v3822 = vsel %vm617, %v3820, %v3821
      %v3823 = vrot.slane %v3519, 1
      %v3824 = vrot.slane %v3521, 1
      %v3825 = vsel %vm617, %v3823, %v3824
      %v3826 = vrot.slane %v3520, 1
      %v3827 = vrot.slane %v3522, 1
      %v3828 = vsel %vm617, %v3826, %v3827
      %v3829 = vrot.slane %v3523, 1
      %v3830 = vrot.slane %v3525, 1
      %v3831 = vsel %vm617, %v3829, %v3830
      %v3832 = vrot.slane %v3524, 1
      %v3833 = vrot.slane %v3526, 1
      %v3834 = vsel %vm617, %v3832, %v3833
      %v3835 = vrot.slane %v3527, 1
      %v3836 = vrot.slane %v3529, 1
      %v3837 = vsel %vm617, %v3835, %v3836
      %v3838 = vrot.slane %v3528, 1
      %v3839 = vrot.slane %v3530, 1
      %v3840 = vsel %vm617, %v3838, %v3839
      %v3841 = vrot.slane %v3531, 1
      %v3842 = vrot.slane %v3533, 1
      %v3843 = vsel %vm617, %v3841, %v3842
      %v3844 = vrot.slane %v3532, 1
      %v3845 = vrot.slane %v3534, 1
      %v3846 = vsel %vm617, %v3844, %v3845
      %v3847 = vrot.slane %v3535, 1
      %v3848 = vrot.slane %v3537, 1
      %v3849 = vsel %vm617, %v3847, %v3848
      %v3850 = vrot.slane %v3536, 1
      %v3851 = vrot.slane %v3538, 1
      %v3852 = vsel %vm617, %v3850, %v3851
      %v3853 = vrot.slane %v3539, 1
      %v3854 = vrot.slane %v3541, 1
      %v3855 = vsel %vm617, %v3853, %v3854
      %v3856 = vrot.slane %v3540, 1
      %v3857 = vrot.slane %v3542, 1
      %v3858 = vsel %vm617, %v3856, %v3857
      %v3859 = vrot.slane %v3543, 1
      %v3860 = vrot.slane %v3545, 1
      %v3861 = vsel %vm617, %v3859, %v3860
      %v3862 = vrot.slane %v3544, 1
      %v3863 = vrot.slane %v3546, 1
      %v3864 = vsel %vm617, %v3862, %v3863
      %v3865 = vrot.slane %v3547, 1
      %v3866 = vrot.slane %v3549, 1
      %v3867 = vsel %vm617, %v3865, %v3866
      %v3868 = vrot.slane %v3548, 1
      %v3869 = vrot.slane %v3550, 1
      %v3870 = vsel %vm617, %v3868, %v3869
      %v3935 = vpack.c.bf16 %v3687, %v3681
      %v3936 = vpack.c.bf16 %v3690, %v3684
      %v3937 = vpack.c.bf16 %v3699, %v3693
      %v3938 = vpack.c.bf16 %v3702, %v3696
      %v3939 = vpack.c.bf16 %v3711, %v3705
      %v3940 = vpack.c.bf16 %v3714, %v3708
      %v3941 = vpack.c.bf16 %v3723, %v3717
      %v3942 = vpack.c.bf16 %v3726, %v3720
      %v3943 = vpack.c.bf16 %v3735, %v3729
      %v3944 = vpack.c.bf16 %v3738, %v3732
      %v3945 = vpack.c.bf16 %v3747, %v3741
      %v3946 = vpack.c.bf16 %v3750, %v3744
      %v3947 = vpack.c.bf16 %v3759, %v3753
      %v3948 = vpack.c.bf16 %v3762, %v3756
      %v3949 = vpack.c.bf16 %v3771, %v3765
      %v3950 = vpack.c.bf16 %v3774, %v3768
      %v3951 = vpack.c.bf16 %v3783, %v3777
      %v3952 = vpack.c.bf16 %v3786, %v3780
      %v3953 = vpack.c.bf16 %v3795, %v3789
      %v3954 = vpack.c.bf16 %v3798, %v3792
      %v3955 = vpack.c.bf16 %v3807, %v3801
      %v3956 = vpack.c.bf16 %v3810, %v3804
      %v3957 = vpack.c.bf16 %v3819, %v3813
      %v3958 = vpack.c.bf16 %v3822, %v3816
      %v3959 = vpack.c.bf16 %v3831, %v3825
      %v3960 = vpack.c.bf16 %v3834, %v3828
      %v3961 = vpack.c.bf16 %v3843, %v3837
      %v3962 = vpack.c.bf16 %v3846, %v3840
      %v3963 = vpack.c.bf16 %v3855, %v3849
      %v3964 = vpack.c.bf16 %v3858, %v3852
      %v3965 = vpack.c.bf16 %v3867, %v3861
      %v3966 = vpack.c.bf16 %v3870, %v3864
      %s3967 = scalar_lea.vmem %s3, 256
      %v3968 = vld [vmem:[%s3967] sm:$0xff]
      %v3969 = vld [vmem:[%s3967 + $0x8] sm:$0xff]
      %v3970 = vld [vmem:[%s3967 + $0x10] sm:$0xff]
      %v3971 = vld [vmem:[%s3967 + $0x18] sm:$0xff]
      %v3972 = vld [vmem:[%s3967 + $0x20] sm:$0xff]
      %v3973 = vld [vmem:[%s3967 + $0x28] sm:$0xff]
      %v3974 = vld [vmem:[%s3967 + $0x30] sm:$0xff]
      %v3975 = vld [vmem:[%s3967 + $0x38] sm:$0xff]
      %v3976 = vld [vmem:[%s3967 + $0x40] sm:$0xff]
      %v3977 = vld [vmem:[%s3967 + $0x48] sm:$0xff]
      %v3978 = vld [vmem:[%s3967 + $0x50] sm:$0xff]
      %v3979 = vld [vmem:[%s3967 + $0x58] sm:$0xff]
      %v3980 = vld [vmem:[%s3967 + $0x60] sm:$0xff]
      %v3981 = vld [vmem:[%s3967 + $0x68] sm:$0xff]
      %v3982 = vld [vmem:[%s3967 + $0x70] sm:$0xff]
      %v3983 = vld [vmem:[%s3967 + $0x78] sm:$0xff]
      %v3984 = vld [vmem:[%s3967 + $0x80] sm:$0xff]
      %v3985 = vld [vmem:[%s3967 + $0x88] sm:$0xff]
      %v3986 = vld [vmem:[%s3967 + $0x90] sm:$0xff]
      %v3987 = vld [vmem:[%s3967 + $0x98] sm:$0xff]
      %v3988 = vld [vmem:[%s3967 + $0xa0] sm:$0xff]
      %v3989 = vld [vmem:[%s3967 + $0xa8] sm:$0xff]
      %v3990 = vld [vmem:[%s3967 + $0xb0] sm:$0xff]
      %v3991 = vld [vmem:[%s3967 + $0xb8] sm:$0xff]
      %v3992 = vld [vmem:[%s3967 + $0xc0] sm:$0xff]
      %v3993 = vld [vmem:[%s3967 + $0xc8] sm:$0xff]
      %v3994 = vld [vmem:[%s3967 + $0xd0] sm:$0xff]
      %v3995 = vld [vmem:[%s3967 + $0xd8] sm:$0xff]
      %v3996 = vld [vmem:[%s3967 + $0xe0] sm:$0xff]
      %v3997 = vld [vmem:[%s3967 + $0xe8] sm:$0xff]
      %v3998 = vld [vmem:[%s3967 + $0xf0] sm:$0xff]
      %v3999 = vld [vmem:[%s3967 + $0xf8] sm:$0xff]
      %v4032 = vunpack.c.l.b16 %v3968
      %v4033 = vunpack.c.h.b16 %v3968
      %v4034 = vunpack.c.l.b16 %v3969
      %v4035 = vunpack.c.h.b16 %v3969
      %v4036 = vunpack.c.l.b16 %v3970
      %v4037 = vunpack.c.h.b16 %v3970
      %v4038 = vunpack.c.l.b16 %v3971
      %v4039 = vunpack.c.h.b16 %v3971
      %v4040 = vunpack.c.l.b16 %v3972
      %v4041 = vunpack.c.h.b16 %v3972
      %v4042 = vunpack.c.l.b16 %v3973
      %v4043 = vunpack.c.h.b16 %v3973
      %v4044 = vunpack.c.l.b16 %v3974
      %v4045 = vunpack.c.h.b16 %v3974
      %v4046 = vunpack.c.l.b16 %v3975
      %v4047 = vunpack.c.h.b16 %v3975
      %v4048 = vunpack.c.l.b16 %v3976
      %v4049 = vunpack.c.h.b16 %v3976
      %v4050 = vunpack.c.l.b16 %v3977
      %v4051 = vunpack.c.h.b16 %v3977
      %v4052 = vunpack.c.l.b16 %v3978
      %v4053 = vunpack.c.h.b16 %v3978
      %v4054 = vunpack.c.l.b16 %v3979
      %v4055 = vunpack.c.h.b16 %v3979
      %v4056 = vunpack.c.l.b16 %v3980
      %v4057 = vunpack.c.h.b16 %v3980
      %v4058 = vunpack.c.l.b16 %v3981
      %v4059 = vunpack.c.h.b16 %v3981
      %v4060 = vunpack.c.l.b16 %v3982
      %v4061 = vunpack.c.h.b16 %v3982
      %v4062 = vunpack.c.l.b16 %v3983
      %v4063 = vunpack.c.h.b16 %v3983
      %v4064 = vunpack.c.l.b16 %v3984
      %v4065 = vunpack.c.h.b16 %v3984
      %v4066 = vunpack.c.l.b16 %v3985
      %v4067 = vunpack.c.h.b16 %v3985
      %v4068 = vunpack.c.l.b16 %v3986
      %v4069 = vunpack.c.h.b16 %v3986
      %v4070 = vunpack.c.l.b16 %v3987
      %v4071 = vunpack.c.h.b16 %v3987
      %v4072 = vunpack.c.l.b16 %v3988
      %v4073 = vunpack.c.h.b16 %v3988
      %v4074 = vunpack.c.l.b16 %v3989
      %v4075 = vunpack.c.h.b16 %v3989
      %v4076 = vunpack.c.l.b16 %v3990
      %v4077 = vunpack.c.h.b16 %v3990
      %v4078 = vunpack.c.l.b16 %v3991
      %v4079 = vunpack.c.h.b16 %v3991
      %v4080 = vunpack.c.l.b16 %v3992
      %v4081 = vunpack.c.h.b16 %v3992
      %v4082 = vunpack.c.l.b16 %v3993
      %v4083 = vunpack.c.h.b16 %v3993
      %v4084 = vunpack.c.l.b16 %v3994
      %v4085 = vunpack.c.h.b16 %v3994
      %v4086 = vunpack.c.l.b16 %v3995
      %v4087 = vunpack.c.h.b16 %v3995
      %v4088 = vunpack.c.l.b16 %v3996
      %v4089 = vunpack.c.h.b16 %v3996
      %v4090 = vunpack.c.l.b16 %v3997
      %v4091 = vunpack.c.h.b16 %v3997
      %v4092 = vunpack.c.l.b16 %v3998
      %v4093 = vunpack.c.h.b16 %v3998
      %v4094 = vunpack.c.l.b16 %v3999
      %v4095 = vunpack.c.h.b16 %v3999
      %v4096 = vpack.c.b16 %v4034, %v4032
      %v4097 = vpack.c.b16 %v4035, %v4033
      %v4098 = vpack.c.b16 %v4038, %v4036
      %v4099 = vpack.c.b16 %v4039, %v4037
      %v4100 = vpack.c.b16 %v4042, %v4040
      %v4101 = vpack.c.b16 %v4043, %v4041
      %v4102 = vpack.c.b16 %v4046, %v4044
      %v4103 = vpack.c.b16 %v4047, %v4045
      %v4104 = vpack.c.b16 %v4050, %v4048
      %v4105 = vpack.c.b16 %v4051, %v4049
      %v4106 = vpack.c.b16 %v4054, %v4052
      %v4107 = vpack.c.b16 %v4055, %v4053
      %v4108 = vpack.c.b16 %v4058, %v4056
      %v4109 = vpack.c.b16 %v4059, %v4057
      %v4110 = vpack.c.b16 %v4062, %v4060
      %v4111 = vpack.c.b16 %v4063, %v4061
      %v4112 = vpack.c.b16 %v4066, %v4064
      %v4113 = vpack.c.b16 %v4067, %v4065
      %v4114 = vpack.c.b16 %v4070, %v4068
      %v4115 = vpack.c.b16 %v4071, %v4069
      %v4116 = vpack.c.b16 %v4074, %v4072
      %v4117 = vpack.c.b16 %v4075, %v4073
      %v4118 = vpack.c.b16 %v4078, %v4076
      %v4119 = vpack.c.b16 %v4079, %v4077
      %v4120 = vpack.c.b16 %v4082, %v4080
      %v4121 = vpack.c.b16 %v4083, %v4081
      %v4122 = vpack.c.b16 %v4086, %v4084
      %v4123 = vpack.c.b16 %v4087, %v4085
      %v4124 = vpack.c.b16 %v4090, %v4088
      %v4125 = vpack.c.b16 %v4091, %v4089
      %v4126 = vpack.c.b16 %v4094, %v4092
      %v4127 = vpack.c.b16 %v4095, %v4093
      %4160 = vmatprep.subr.bf16.mxu0 %v4097
      %4161 = vmatpush1.bf16.msra.mxu0 %v4096
      %4162 = vmatprep.subr.bf16.mxu0 %v4099
      %4163 = vmatpush1.bf16.msra.mxu0 %v4098
      %4164 = vmatprep.subr.bf16.mxu0 %v4101
      %4165 = vmatpush1.bf16.msra.mxu0 %v4100
      %4166 = vmatprep.subr.bf16.mxu0 %v4103
      %4167 = vmatpush1.bf16.msra.mxu0 %v4102
      %4168 = vmatprep.subr.bf16.mxu0 %v4105
      %4169 = vmatpush1.bf16.msra.mxu0 %v4104
      %4170 = vmatprep.subr.bf16.mxu0 %v4107
      %4171 = vmatpush1.bf16.msra.mxu0 %v4106
      %4172 = vmatprep.subr.bf16.mxu0 %v4109
      %4173 = vmatpush1.bf16.msra.mxu0 %v4108
      %4174 = vmatprep.subr.bf16.mxu0 %v4111
      %4175 = vmatpush1.bf16.msra.mxu0 %v4110
      %4176 = vmatprep.subr.bf16.mxu0 %v4113
      %4177 = vmatpush1.bf16.msra.mxu0 %v4112
      %4178 = vmatprep.subr.bf16.mxu0 %v4115
      %4179 = vmatpush1.bf16.msra.mxu0 %v4114
      %4180 = vmatprep.subr.bf16.mxu0 %v4117
      %4181 = vmatpush1.bf16.msra.mxu0 %v4116
      %4182 = vmatprep.subr.bf16.mxu0 %v4119
      %4183 = vmatpush1.bf16.msra.mxu0 %v4118
      %4184 = vmatprep.subr.bf16.mxu0 %v4121
      %4185 = vmatpush1.bf16.msra.mxu0 %v4120
      %4186 = vmatprep.subr.bf16.mxu0 %v4123
      %4187 = vmatpush1.bf16.msra.mxu0 %v4122
      %4188 = vmatprep.subr.bf16.mxu0 %v4125
      %4189 = vmatpush1.bf16.msra.mxu0 %v4124
      %4190 = vmatprep.subr.bf16.mxu0 %v4127
      %4191 = vmatpush1.bf16.msra.mxu0 %v4126
      %4192 = vmatprep.mubr.bf16.mxu0 %v3936
      %4193 = vmatmul.mubr.bf16.gmra.mrb[0].mxu0 %v3935
      %v4194 = vpop.f32.mrb[0].mxu0
      %v4195 = vadd.f32 0.0, %v4194
      %v4196 = vpop.f32.mrb[0].mxu0
      %v4197 = vadd.f32 0.0, %v4196
      %v4198 = vpop.f32.mrb[0].mxu0
      %v4199 = vadd.f32 0.0, %v4198
      %v4200 = vpop.f32.mrb[0].mxu0
      %v4201 = vadd.f32 0.0, %v4200
      %4202 = vmatprep.mubr.bf16.mxu0 %v3938
      %4203 = vmatmul.mubr.bf16.gmra.mrb[0].mxu0 %v3937
      %v4204 = vpop.f32.mrb[0].mxu0
      %v4205 = vadd.f32 0.0, %v4204
      %v4206 = vpop.f32.mrb[0].mxu0
      %v4207 = vadd.f32 0.0, %v4206
      %v4208 = vpop.f32.mrb[0].mxu0
      %v4209 = vadd.f32 0.0, %v4208
      %v4210 = vpop.f32.mrb[0].mxu0
      %v4211 = vadd.f32 0.0, %v4210
      %4212 = vmatprep.mubr.bf16.mxu0 %v3940
      %4213 = vmatmul.mubr.bf16.gmra.mrb[0].mxu0 %v3939
      %v4214 = vpop.f32.mrb[0].mxu0
      %v4215 = vadd.f32 0.0, %v4214
      %v4216 = vpop.f32.mrb[0].mxu0
      %v4217 = vadd.f32 0.0, %v4216
      %v4218 = vpop.f32.mrb[0].mxu0
      %v4219 = vadd.f32 0.0, %v4218
      %v4220 = vpop.f32.mrb[0].mxu0
      %v4221 = vadd.f32 0.0, %v4220
      %4222 = vmatprep.mubr.bf16.mxu0 %v3942
      %4223 = vmatmul.mubr.bf16.gmra.mrb[0].mxu0 %v3941
      %v4224 = vpop.f32.mrb[0].mxu0
      %v4225 = vadd.f32 0.0, %v4224
      %v4226 = vpop.f32.mrb[0].mxu0
      %v4227 = vadd.f32 0.0, %v4226
      %v4228 = vpop.f32.mrb[0].mxu0
      %v4229 = vadd.f32 0.0, %v4228
      %v4230 = vpop.f32.mrb[0].mxu0
      %v4231 = vadd.f32 0.0, %v4230
      %4232 = vmatprep.mubr.bf16.mxu0 %v3944
      %4233 = vmatmul.mubr.bf16.gmra.mrb[0].mxu0 %v3943
      %v4234 = vpop.f32.mrb[0].mxu0
      %v4235 = vadd.f32 0.0, %v4234
      %v4236 = vpop.f32.mrb[0].mxu0
      %v4237 = vadd.f32 0.0, %v4236
      %v4238 = vpop.f32.mrb[0].mxu0
      %v4239 = vadd.f32 0.0, %v4238
      %v4240 = vpop.f32.mrb[0].mxu0
      %v4241 = vadd.f32 0.0, %v4240
      %4242 = vmatprep.mubr.bf16.mxu0 %v3946
      %4243 = vmatmul.mubr.bf16.gmra.mrb[0].mxu0 %v3945
      %v4244 = vpop.f32.mrb[0].mxu0
      %v4245 = vadd.f32 0.0, %v4244
      %v4246 = vpop.f32.mrb[0].mxu0
      %v4247 = vadd.f32 0.0, %v4246
      %v4248 = vpop.f32.mrb[0].mxu0
      %v4249 = vadd.f32 0.0, %v4248
      %v4250 = vpop.f32.mrb[0].mxu0
      %v4251 = vadd.f32 0.0, %v4250
      %4252 = vmatprep.mubr.bf16.mxu0 %v3948
      %4253 = vmatmul.mubr.bf16.gmra.mrb[0].mxu0 %v3947
      %v4254 = vpop.f32.mrb[0].mxu0
      %v4255 = vadd.f32 0.0, %v4254
      %v4256 = vpop.f32.mrb[0].mxu0
      %v4257 = vadd.f32 0.0, %v4256
      %v4258 = vpop.f32.mrb[0].mxu0
      %v4259 = vadd.f32 0.0, %v4258
      %v4260 = vpop.f32.mrb[0].mxu0
      %v4261 = vadd.f32 0.0, %v4260
      %4262 = vmatprep.mubr.bf16.mxu0 %v3950
      %4263 = vmatmul.mubr.bf16.gmra.mrb[0].mxu0 %v3949
      %v4264 = vpop.f32.mrb[0].mxu0
      %v4265 = vadd.f32 0.0, %v4264
      %v4266 = vpop.f32.mrb[0].mxu0
      %v4267 = vadd.f32 0.0, %v4266
      %v4268 = vpop.f32.mrb[0].mxu0
      %v4269 = vadd.f32 0.0, %v4268
      %v4270 = vpop.f32.mrb[0].mxu0
      %v4271 = vadd.f32 0.0, %v4270
      %4272 = vmatprep.mubr.bf16.mxu0 %v3952
      %4273 = vmatmul.mubr.bf16.gmra.mrb[0].mxu0 %v3951
      %v4274 = vpop.f32.mrb[0].mxu0
      %v4275 = vadd.f32 0.0, %v4274
      %v4276 = vpop.f32.mrb[0].mxu0
      %v4277 = vadd.f32 0.0, %v4276
      %v4278 = vpop.f32.mrb[0].mxu0
      %v4279 = vadd.f32 0.0, %v4278
      %v4280 = vpop.f32.mrb[0].mxu0
      %v4281 = vadd.f32 0.0, %v4280
      %4282 = vmatprep.mubr.bf16.mxu0 %v3954
      %4283 = vmatmul.mubr.bf16.gmra.mrb[0].mxu0 %v3953
      %v4284 = vpop.f32.mrb[0].mxu0
      %v4285 = vadd.f32 0.0, %v4284
      %v4286 = vpop.f32.mrb[0].mxu0
      %v4287 = vadd.f32 0.0, %v4286
      %v4288 = vpop.f32.mrb[0].mxu0
      %v4289 = vadd.f32 0.0, %v4288
      %v4290 = vpop.f32.mrb[0].mxu0
      %v4291 = vadd.f32 0.0, %v4290
      %4292 = vmatprep.mubr.bf16.mxu0 %v3956
      %4293 = vmatmul.mubr.bf16.gmra.mrb[0].mxu0 %v3955
      %v4294 = vpop.f32.mrb[0].mxu0
      %v4295 = vadd.f32 0.0, %v4294
      %v4296 = vpop.f32.mrb[0].mxu0
      %v4297 = vadd.f32 0.0, %v4296
      %v4298 = vpop.f32.mrb[0].mxu0
      %v4299 = vadd.f32 0.0, %v4298
      %v4300 = vpop.f32.mrb[0].mxu0
      %v4301 = vadd.f32 0.0, %v4300
      %4302 = vmatprep.mubr.bf16.mxu0 %v3958
      %4303 = vmatmul.mubr.bf16.gmra.mrb[0].mxu0 %v3957
      %v4304 = vpop.f32.mrb[0].mxu0
      %v4305 = vadd.f32 0.0, %v4304
      %v4306 = vpop.f32.mrb[0].mxu0
      %v4307 = vadd.f32 0.0, %v4306
      %v4308 = vpop.f32.mrb[0].mxu0
      %v4309 = vadd.f32 0.0, %v4308
      %v4310 = vpop.f32.mrb[0].mxu0
      %v4311 = vadd.f32 0.0, %v4310
      %4312 = vmatprep.mubr.bf16.mxu0 %v3960
      %4313 = vmatmul.mubr.bf16.gmra.mrb[0].mxu0 %v3959
      %v4314 = vpop.f32.mrb[0].mxu0
      %v4315 = vadd.f32 0.0, %v4314
      %v4316 = vpop.f32.mrb[0].mxu0
      %v4317 = vadd.f32 0.0, %v4316
      %v4318 = vpop.f32.mrb[0].mxu0
      %v4319 = vadd.f32 0.0, %v4318
      %v4320 = vpop.f32.mrb[0].mxu0
      %v4321 = vadd.f32 0.0, %v4320
      %4322 = vmatprep.mubr.bf16.mxu0 %v3962
      %4323 = vmatmul.mubr.bf16.gmra.mrb[0].mxu0 %v3961
      %v4324 = vpop.f32.mrb[0].mxu0
      %v4325 = vadd.f32 0.0, %v4324
      %v4326 = vpop.f32.mrb[0].mxu0
      %v4327 = vadd.f32 0.0, %v4326
      %v4328 = vpop.f32.mrb[0].mxu0
      %v4329 = vadd.f32 0.0, %v4328
      %v4330 = vpop.f32.mrb[0].mxu0
      %v4331 = vadd.f32 0.0, %v4330
      %4332 = vmatprep.mubr.bf16.mxu0 %v3964
      %4333 = vmatmul.mubr.bf16.gmra.mrb[0].mxu0 %v3963
      %v4334 = vpop.f32.mrb[0].mxu0
      %v4335 = vadd.f32 0.0, %v4334
      %v4336 = vpop.f32.mrb[0].mxu0
      %v4337 = vadd.f32 0.0, %v4336
      %v4338 = vpop.f32.mrb[0].mxu0
      %v4339 = vadd.f32 0.0, %v4338
      %v4340 = vpop.f32.mrb[0].mxu0
      %v4341 = vadd.f32 0.0, %v4340
      %4342 = vmatprep.mubr.bf16.mxu0 %v3966
      %4343 = vmatmul.mubr.bf16.gmra.mrb[0].mxu0 %v3965
      %v4344 = vpop.f32.mrb[0].mxu0
      %v4345 = vadd.f32 0.0, %v4344
      %v4346 = vpop.f32.mrb[0].mxu0
      %v4347 = vadd.f32 0.0, %v4346
      %v4348 = vpop.f32.mrb[0].mxu0
      %v4349 = vadd.f32 0.0, %v4348
      %v4350 = vpop.f32.mrb[0].mxu0
      %v4351 = vadd.f32 0.0, %v4350
      %4352 = vdwg.mxu0
      %v4385 = vunpack.c.l.b16 %v3391
      %v4386 = vunpack.c.h.b16 %v3391
      %v4387 = vunpack.c.l.b16 %v3392
      %v4388 = vunpack.c.h.b16 %v3392
      %v4389 = vunpack.c.l.b16 %v3393
      %v4390 = vunpack.c.h.b16 %v3393
      %v4391 = vunpack.c.l.b16 %v3394
      %v4392 = vunpack.c.h.b16 %v3394
      %v4393 = vunpack.c.l.b16 %v3395
      %v4394 = vunpack.c.h.b16 %v3395
      %v4395 = vunpack.c.l.b16 %v3396
      %v4396 = vunpack.c.h.b16 %v3396
      %v4397 = vunpack.c.l.b16 %v3397
      %v4398 = vunpack.c.h.b16 %v3397
      %v4399 = vunpack.c.l.b16 %v3398
      %v4400 = vunpack.c.h.b16 %v3398
      %v4401 = vunpack.c.l.b16 %v3399
      %v4402 = vunpack.c.h.b16 %v3399
      %v4403 = vunpack.c.l.b16 %v3400
      %v4404 = vunpack.c.h.b16 %v3400
      %v4405 = vunpack.c.l.b16 %v3401
      %v4406 = vunpack.c.h.b16 %v3401
      %v4407 = vunpack.c.l.b16 %v3402
      %v4408 = vunpack.c.h.b16 %v3402
      %v4409 = vunpack.c.l.b16 %v3403
      %v4410 = vunpack.c.h.b16 %v3403
      %v4411 = vunpack.c.l.b16 %v3404
      %v4412 = vunpack.c.h.b16 %v3404
      %v4413 = vunpack.c.l.b16 %v3405
      %v4414 = vunpack.c.h.b16 %v3405
      %v4415 = vunpack.c.l.b16 %v3406
      %v4416 = vunpack.c.h.b16 %v3406
      %v4417 = vunpack.c.l.b16 %v3407
      %v4418 = vunpack.c.h.b16 %v3407
      %v4419 = vunpack.c.l.b16 %v3408
      %v4420 = vunpack.c.h.b16 %v3408
      %v4421 = vunpack.c.l.b16 %v3409
      %v4422 = vunpack.c.h.b16 %v3409
      %v4423 = vunpack.c.l.b16 %v3410
      %v4424 = vunpack.c.h.b16 %v3410
      %v4425 = vunpack.c.l.b16 %v3411
      %v4426 = vunpack.c.h.b16 %v3411
      %v4427 = vunpack.c.l.b16 %v3412
      %v4428 = vunpack.c.h.b16 %v3412
      %v4429 = vunpack.c.l.b16 %v3413
      %v4430 = vunpack.c.h.b16 %v3413
      %v4431 = vunpack.c.l.b16 %v3414
      %v4432 = vunpack.c.h.b16 %v3414
      %v4433 = vunpack.c.l.b16 %v3415
      %v4434 = vunpack.c.h.b16 %v3415
      %v4435 = vunpack.c.l.b16 %v3416
      %v4436 = vunpack.c.h.b16 %v3416
      %v4437 = vunpack.c.l.b16 %v3417
      %v4438 = vunpack.c.h.b16 %v3417
      %v4439 = vunpack.c.l.b16 %v3418
      %v4440 = vunpack.c.h.b16 %v3418
      %v4441 = vunpack.c.l.b16 %v3419
      %v4442 = vunpack.c.h.b16 %v3419
      %v4443 = vunpack.c.l.b16 %v3420
      %v4444 = vunpack.c.h.b16 %v3420
      %v4445 = vunpack.c.l.b16 %v3421
      %v4446 = vunpack.c.h.b16 %v3421
      %v4447 = vunpack.c.l.b16 %v3422
      %v4448 = vunpack.c.h.b16 %v3422
      %v4449 = vpack.c.b16 %v4387, %v4385
      %v4450 = vpack.c.b16 %v4388, %v4386
      %v4451 = vpack.c.b16 %v4391, %v4389
      %v4452 = vpack.c.b16 %v4392, %v4390
      %v4453 = vpack.c.b16 %v4395, %v4393
      %v4454 = vpack.c.b16 %v4396, %v4394
      %v4455 = vpack.c.b16 %v4399, %v4397
      %v4456 = vpack.c.b16 %v4400, %v4398
      %v4457 = vpack.c.b16 %v4403, %v4401
      %v4458 = vpack.c.b16 %v4404, %v4402
      %v4459 = vpack.c.b16 %v4407, %v4405
      %v4460 = vpack.c.b16 %v4408, %v4406
      %v4461 = vpack.c.b16 %v4411, %v4409
      %v4462 = vpack.c.b16 %v4412, %v4410
      %v4463 = vpack.c.b16 %v4415, %v4413
      %v4464 = vpack.c.b16 %v4416, %v4414
      %v4465 = vpack.c.b16 %v4419, %v4417
      %v4466 = vpack.c.b16 %v4420, %v4418
      %v4467 = vpack.c.b16 %v4423, %v4421
      %v4468 = vpack.c.b16 %v4424, %v4422
      %v4469 = vpack.c.b16 %v4427, %v4425
      %v4470 = vpack.c.b16 %v4428, %v4426
      %v4471 = vpack.c.b16 %v4431, %v4429
      %v4472 = vpack.c.b16 %v4432, %v4430
      %v4473 = vpack.c.b16 %v4435, %v4433
      %v4474 = vpack.c.b16 %v4436, %v4434
      %v4475 = vpack.c.b16 %v4439, %v4437
      %v4476 = vpack.c.b16 %v4440, %v4438
      %v4477 = vpack.c.b16 %v4443, %v4441
      %v4478 = vpack.c.b16 %v4444, %v4442
      %v4479 = vpack.c.b16 %v4447, %v4445
      %v4480 = vpack.c.b16 %v4448, %v4446
      %4513 = vmatprep.subr.bf16.mxu0 %v4450
      %4514 = vmatpush1.bf16.msra.mxu0 %v4449
      %4515 = vmatprep.subr.bf16.mxu0 %v4452
      %4516 = vmatpush1.bf16.msra.mxu0 %v4451
      %4517 = vmatprep.subr.bf16.mxu0 %v4454
      %4518 = vmatpush1.bf16.msra.mxu0 %v4453
      %4519 = vmatprep.subr.bf16.mxu0 %v4456
      %4520 = vmatpush1.bf16.msra.mxu0 %v4455
      %4521 = vmatprep.subr.bf16.mxu0 %v4458
      %4522 = vmatpush1.bf16.msra.mxu0 %v4457
      %4523 = vmatprep.subr.bf16.mxu0 %v4460
      %4524 = vmatpush1.bf16.msra.mxu0 %v4459
      %4525 = vmatprep.subr.bf16.mxu0 %v4462
      %4526 = vmatpush1.bf16.msra.mxu0 %v4461
      %4527 = vmatprep.subr.bf16.mxu0 %v4464
      %4528 = vmatpush1.bf16.msra.mxu0 %v4463
      %4529 = vmatprep.subr.bf16.mxu0 %v4466
      %4530 = vmatpush1.bf16.msra.mxu0 %v4465
      %4531 = vmatprep.subr.bf16.mxu0 %v4468
      %4532 = vmatpush1.bf16.msra.mxu0 %v4467
      %4533 = vmatprep.subr.bf16.mxu0 %v4470
      %4534 = vmatpush1.bf16.msra.mxu0 %v4469
      %4535 = vmatprep.subr.bf16.mxu0 %v4472
      %4536 = vmatpush1.bf16.msra.mxu0 %v4471
      %4537 = vmatprep.subr.bf16.mxu0 %v4474
      %4538 = vmatpush1.bf16.msra.mxu0 %v4473
      %4539 = vmatprep.subr.bf16.mxu0 %v4476
      %4540 = vmatpush1.bf16.msra.mxu0 %v4475
      %4541 = vmatprep.subr.bf16.mxu0 %v4478
      %4542 = vmatpush1.bf16.msra.mxu0 %v4477
      %4543 = vmatprep.subr.bf16.mxu0 %v4480
      %4544 = vmatpush1.bf16.msra.mxu0 %v4479
      %4545 = vmatprep.mubr.bf16.mxu0 %v3360
      %4546 = vmatmul.mubr.bf16.gmra.mrb[0].mxu0 %v3359
      %v4547 = vpop.f32.mrb[0].mxu0
      %v4548 = vadd.f32 %v4195, %v4547
      %v4549 = vpop.f32.mrb[0].mxu0
      %v4550 = vadd.f32 %v4197, %v4549
      %v4551 = vpop.f32.mrb[0].mxu0
      %v4552 = vadd.f32 %v4199, %v4551
      %v4553 = vpop.f32.mrb[0].mxu0
      %v4554 = vadd.f32 %v4201, %v4553
      %4555 = vmatprep.mubr.bf16.mxu0 %v3362
      %4556 = vmatmul.mubr.bf16.gmra.mrb[0].mxu0 %v3361
      %v4557 = vpop.f32.mrb[0].mxu0
      %v4558 = vadd.f32 %v4205, %v4557
      %v4559 = vpop.f32.mrb[0].mxu0
      %v4560 = vadd.f32 %v4207, %v4559
      %v4561 = vpop.f32.mrb[0].mxu0
      %v4562 = vadd.f32 %v4209, %v4561
      %v4563 = vpop.f32.mrb[0].mxu0
      %v4564 = vadd.f32 %v4211, %v4563
      %4565 = vmatprep.mubr.bf16.mxu0 %v3364
      %4566 = vmatmul.mubr.bf16.gmra.mrb[0].mxu0 %v3363
      %v4567 = vpop.f32.mrb[0].mxu0
      %v4568 = vadd.f32 %v4215, %v4567
      %v4569 = vpop.f32.mrb[0].mxu0
      %v4570 = vadd.f32 %v4217, %v4569
      %v4571 = vpop.f32.mrb[0].mxu0
      %v4572 = vadd.f32 %v4219, %v4571
      %v4573 = vpop.f32.mrb[0].mxu0
      %v4574 = vadd.f32 %v4221, %v4573
      %4575 = vmatprep.mubr.bf16.mxu0 %v3366
      %4576 = vmatmul.mubr.bf16.gmra.mrb[0].mxu0 %v3365
      %v4577 = vpop.f32.mrb[0].mxu0
      %v4578 = vadd.f32 %v4225, %v4577
      %v4579 = vpop.f32.mrb[0].mxu0
      %v4580 = vadd.f32 %v4227, %v4579
      %v4581 = vpop.f32.mrb[0].mxu0
      %v4582 = vadd.f32 %v4229, %v4581
      %v4583 = vpop.f32.mrb[0].mxu0
      %v4584 = vadd.f32 %v4231, %v4583
      %4585 = vmatprep.mubr.bf16.mxu0 %v3368
      %4586 = vmatmul.mubr.bf16.gmra.mrb[0].mxu0 %v3367
      %v4587 = vpop.f32.mrb[0].mxu0
      %v4588 = vadd.f32 %v4235, %v4587
      %v4589 = vpop.f32.mrb[0].mxu0
      %v4590 = vadd.f32 %v4237, %v4589
      %v4591 = vpop.f32.mrb[0].mxu0
      %v4592 = vadd.f32 %v4239, %v4591
      %v4593 = vpop.f32.mrb[0].mxu0
      %v4594 = vadd.f32 %v4241, %v4593
      %4595 = vmatprep.mubr.bf16.mxu0 %v3370
      %4596 = vmatmul.mubr.bf16.gmra.mrb[0].mxu0 %v3369
      %v4597 = vpop.f32.mrb[0].mxu0
      %v4598 = vadd.f32 %v4245, %v4597
      %v4599 = vpop.f32.mrb[0].mxu0
      %v4600 = vadd.f32 %v4247, %v4599
      %v4601 = vpop.f32.mrb[0].mxu0
      %v4602 = vadd.f32 %v4249, %v4601
      %v4603 = vpop.f32.mrb[0].mxu0
      %v4604 = vadd.f32 %v4251, %v4603
      %4605 = vmatprep.mubr.bf16.mxu0 %v3372
      %4606 = vmatmul.mubr.bf16.gmra.mrb[0].mxu0 %v3371
      %v4607 = vpop.f32.mrb[0].mxu0
      %v4608 = vadd.f32 %v4255, %v4607
      %v4609 = vpop.f32.mrb[0].mxu0
      %v4610 = vadd.f32 %v4257, %v4609
      %v4611 = vpop.f32.mrb[0].mxu0
      %v4612 = vadd.f32 %v4259, %v4611
      %v4613 = vpop.f32.mrb[0].mxu0
      %v4614 = vadd.f32 %v4261, %v4613
      %4615 = vmatprep.mubr.bf16.mxu0 %v3374
      %4616 = vmatmul.mubr.bf16.gmra.mrb[0].mxu0 %v3373
      %v4617 = vpop.f32.mrb[0].mxu0
      %v4618 = vadd.f32 %v4265, %v4617
      %v4619 = vpop.f32.mrb[0].mxu0
      %v4620 = vadd.f32 %v4267, %v4619
      %v4621 = vpop.f32.mrb[0].mxu0
      %v4622 = vadd.f32 %v4269, %v4621
      %v4623 = vpop.f32.mrb[0].mxu0
      %v4624 = vadd.f32 %v4271, %v4623
      %4625 = vmatprep.mubr.bf16.mxu0 %v3376
      %4626 = vmatmul.mubr.bf16.gmra.mrb[0].mxu0 %v3375
      %v4627 = vpop.f32.mrb[0].mxu0
      %v4628 = vadd.f32 %v4275, %v4627
      %v4629 = vpop.f32.mrb[0].mxu0
      %v4630 = vadd.f32 %v4277, %v4629
      %v4631 = vpop.f32.mrb[0].mxu0
      %v4632 = vadd.f32 %v4279, %v4631
      %v4633 = vpop.f32.mrb[0].mxu0
      %v4634 = vadd.f32 %v4281, %v4633
      %4635 = vmatprep.mubr.bf16.mxu0 %v3378
      %4636 = vmatmul.mubr.bf16.gmra.mrb[0].mxu0 %v3377
      %v4637 = vpop.f32.mrb[0].mxu0
      %v4638 = vadd.f32 %v4285, %v4637
      %v4639 = vpop.f32.mrb[0].mxu0
      %v4640 = vadd.f32 %v4287, %v4639
      %v4641 = vpop.f32.mrb[0].mxu0
      %v4642 = vadd.f32 %v4289, %v4641
      %v4643 = vpop.f32.mrb[0].mxu0
      %v4644 = vadd.f32 %v4291, %v4643
      %4645 = vmatprep.mubr.bf16.mxu0 %v3380
      %4646 = vmatmul.mubr.bf16.gmra.mrb[0].mxu0 %v3379
      %v4647 = vpop.f32.mrb[0].mxu0
      %v4648 = vadd.f32 %v4295, %v4647
      %v4649 = vpop.f32.mrb[0].mxu0
      %v4650 = vadd.f32 %v4297, %v4649
      %v4651 = vpop.f32.mrb[0].mxu0
      %v4652 = vadd.f32 %v4299, %v4651
      %v4653 = vpop.f32.mrb[0].mxu0
      %v4654 = vadd.f32 %v4301, %v4653
      %4655 = vmatprep.mubr.bf16.mxu0 %v3382
      %4656 = vmatmul.mubr.bf16.gmra.mrb[0].mxu0 %v3381
      %v4657 = vpop.f32.mrb[0].mxu0
      %v4658 = vadd.f32 %v4305, %v4657
      %v4659 = vpop.f32.mrb[0].mxu0
      %v4660 = vadd.f32 %v4307, %v4659
      %v4661 = vpop.f32.mrb[0].mxu0
      %v4662 = vadd.f32 %v4309, %v4661
      %v4663 = vpop.f32.mrb[0].mxu0
      %v4664 = vadd.f32 %v4311, %v4663
      %4665 = vmatprep.mubr.bf16.mxu0 %v3384
      %4666 = vmatmul.mubr.bf16.gmra.mrb[0].mxu0 %v3383
      %v4667 = vpop.f32.mrb[0].mxu0
      %v4668 = vadd.f32 %v4315, %v4667
      %v4669 = vpop.f32.mrb[0].mxu0
      %v4670 = vadd.f32 %v4317, %v4669
      %v4671 = vpop.f32.mrb[0].mxu0
      %v4672 = vadd.f32 %v4319, %v4671
      %v4673 = vpop.f32.mrb[0].mxu0
      %v4674 = vadd.f32 %v4321, %v4673
      %4675 = vmatprep.mubr.bf16.mxu0 %v3386
      %4676 = vmatmul.mubr.bf16.gmra.mrb[0].mxu0 %v3385
      %v4677 = vpop.f32.mrb[0].mxu0
      %v4678 = vadd.f32 %v4325, %v4677
      %v4679 = vpop.f32.mrb[0].mxu0
      %v4680 = vadd.f32 %v4327, %v4679
      %v4681 = vpop.f32.mrb[0].mxu0
      %v4682 = vadd.f32 %v4329, %v4681
      %v4683 = vpop.f32.mrb[0].mxu0
      %v4684 = vadd.f32 %v4331, %v4683
      %4685 = vmatprep.mubr.bf16.mxu0 %v3388
      %4686 = vmatmul.mubr.bf16.gmra.mrb[0].mxu0 %v3387
      %v4687 = vpop.f32.mrb[0].mxu0
      %v4688 = vadd.f32 %v4335, %v4687
      %v4689 = vpop.f32.mrb[0].mxu0
      %v4690 = vadd.f32 %v4337, %v4689
      %v4691 = vpop.f32.mrb[0].mxu0
      %v4692 = vadd.f32 %v4339, %v4691
      %v4693 = vpop.f32.mrb[0].mxu0
      %v4694 = vadd.f32 %v4341, %v4693
      %4695 = vmatprep.mubr.bf16.mxu0 %v3390
      %4696 = vmatmul.mubr.bf16.gmra.mrb[0].mxu0 %v3389
      %v4697 = vpop.f32.mrb[0].mxu0
      %v4698 = vadd.f32 %v4345, %v4697
      %v4699 = vpop.f32.mrb[0].mxu0
      %v4700 = vadd.f32 %v4347, %v4699
      %v4701 = vpop.f32.mrb[0].mxu0
      %v4702 = vadd.f32 %v4349, %v4701
      %v4703 = vpop.f32.mrb[0].mxu0
      %v4704 = vadd.f32 %v4351, %v4703
      %4705 = vdwg.mxu0
      %v4706 = vld [vmem:[#allocation2] sm:$0xfc]
      %v4707 = vld [vmem:[#allocation2 + $0x8] sm:$0xfc]
      %v4708 = vld [vmem:[#allocation2 + $0x10] sm:$0x3]
      %v4709 = vld [vmem:[#allocation2 + $0x18] sm:$0x3]
      %v4710 = vld [vmem:[#allocation2 + $0x20] sm:$0xfc]
      %v4711 = vld [vmem:[#allocation2 + $0x28] sm:$0xfc]
      %v4712 = vld [vmem:[#allocation2 + $0x30] sm:$0x3]
      %v4713 = vld [vmem:[#allocation2 + $0x38] sm:$0x3]
      %v4714 = vld [vmem:[#allocation2 + $0x40] sm:$0xfc]
      %v4715 = vld [vmem:[#allocation2 + $0x48] sm:$0xfc]
      %v4716 = vld [vmem:[#allocation2 + $0x50] sm:$0x3]
      %v4717 = vld [vmem:[#allocation2 + $0x58] sm:$0x3]
      %v4718 = vld [vmem:[#allocation2 + $0x60] sm:$0xfc]
      %v4719 = vld [vmem:[#allocation2 + $0x68] sm:$0xfc]
      %v4720 = vld [vmem:[#allocation2 + $0x70] sm:$0x3]
      %v4721 = vld [vmem:[#allocation2 + $0x78] sm:$0x3]
      %v4722 = vld [vmem:[#allocation2 + $0x80] sm:$0xfc]
      %v4723 = vld [vmem:[#allocation2 + $0x88] sm:$0xfc]
      %v4724 = vld [vmem:[#allocation2 + $0x90] sm:$0x3]
      %v4725 = vld [vmem:[#allocation2 + $0x98] sm:$0x3]
      %v4726 = vld [vmem:[#allocation2 + $0xa0] sm:$0xfc]
      %v4727 = vld [vmem:[#allocation2 + $0xa8] sm:$0xfc]
      %v4728 = vld [vmem:[#allocation2 + $0xb0] sm:$0x3]
      %v4729 = vld [vmem:[#allocation2 + $0xb8] sm:$0x3]
      %v4730 = vld [vmem:[#allocation2 + $0xc0] sm:$0xfc]
      %v4731 = vld [vmem:[#allocation2 + $0xc8] sm:$0xfc]
      %v4732 = vld [vmem:[#allocation2 + $0xd0] sm:$0x3]
      %v4733 = vld [vmem:[#allocation2 + $0xd8] sm:$0x3]
      %v4734 = vld [vmem:[#allocation2 + $0xe0] sm:$0xfc]
      %v4735 = vld [vmem:[#allocation2 + $0xe8] sm:$0xfc]
      %v4736 = vld [vmem:[#allocation2 + $0xf0] sm:$0x3]
      %v4737 = vld [vmem:[#allocation2 + $0xf8] sm:$0x3]
      %v4738 = vld [vmem:[#allocation2 + $0x100] sm:$0xfc]
      %v4739 = vld [vmem:[#allocation2 + $0x108] sm:$0xfc]
      %v4740 = vld [vmem:[#allocation2 + $0x110] sm:$0x3]
      %v4741 = vld [vmem:[#allocation2 + $0x118] sm:$0x3]
      %v4742 = vld [vmem:[#allocation2 + $0x120] sm:$0xfc]
      %v4743 = vld [vmem:[#allocation2 + $0x128] sm:$0xfc]
      %v4744 = vld [vmem:[#allocation2 + $0x130] sm:$0x3]
      %v4745 = vld [vmem:[#allocation2 + $0x138] sm:$0x3]
      %v4746 = vld [vmem:[#allocation2 + $0x140] sm:$0xfc]
      %v4747 = vld [vmem:[#allocation2 + $0x148] sm:$0xfc]
      %v4748 = vld [vmem:[#allocation2 + $0x150] sm:$0x3]
      %v4749 = vld [vmem:[#allocation2 + $0x158] sm:$0x3]
      %v4750 = vld [vmem:[#allocation2 + $0x160] sm:$0xfc]
      %v4751 = vld [vmem:[#allocation2 + $0x168] sm:$0xfc]
      %v4752 = vld [vmem:[#allocation2 + $0x170] sm:$0x3]
      %v4753 = vld [vmem:[#allocation2 + $0x178] sm:$0x3]
      %v4754 = vld [vmem:[#allocation2 + $0x180] sm:$0xfc]
      %v4755 = vld [vmem:[#allocation2 + $0x188] sm:$0xfc]
      %v4756 = vld [vmem:[#allocation2 + $0x190] sm:$0x3]
      %v4757 = vld [vmem:[#allocation2 + $0x198] sm:$0x3]
      %v4758 = vld [vmem:[#allocation2 + $0x1a0] sm:$0xfc]
      %v4759 = vld [vmem:[#allocation2 + $0x1a8] sm:$0xfc]
      %v4760 = vld [vmem:[#allocation2 + $0x1b0] sm:$0x3]
      %v4761 = vld [vmem:[#allocation2 + $0x1b8] sm:$0x3]
      %v4762 = vld [vmem:[#allocation2 + $0x1c0] sm:$0xfc]
      %v4763 = vld [vmem:[#allocation2 + $0x1c8] sm:$0xfc]
      %v4764 = vld [vmem:[#allocation2 + $0x1d0] sm:$0x3]
      %v4765 = vld [vmem:[#allocation2 + $0x1d8] sm:$0x3]
      %v4766 = vld [vmem:[#allocation2 + $0x1e0] sm:$0xfc]
      %v4767 = vld [vmem:[#allocation2 + $0x1e8] sm:$0xfc]
      %v4768 = vld [vmem:[#allocation2 + $0x1f0] sm:$0x3]
      %v4769 = vld [vmem:[#allocation2 + $0x1f8] sm:$0x3]
      %v4770 = vld [vmem:[#allocation2 + $0x200] sm:$0xfc]
      %v4771 = vld [vmem:[#allocation2 + $0x208] sm:$0xfc]
      %v4772 = vld [vmem:[#allocation2 + $0x210] sm:$0x3]
      %v4773 = vld [vmem:[#allocation2 + $0x218] sm:$0x3]
      %v4774 = vld [vmem:[#allocation2 + $0x220] sm:$0xfc]
      %v4775 = vld [vmem:[#allocation2 + $0x228] sm:$0xfc]
      %v4776 = vld [vmem:[#allocation2 + $0x230] sm:$0x3]
      %v4777 = vld [vmem:[#allocation2 + $0x238] sm:$0x3]
      %v4778 = vld [vmem:[#allocation2 + $0x240] sm:$0xfc]
      %v4779 = vld [vmem:[#allocation2 + $0x248] sm:$0xfc]
      %v4780 = vld [vmem:[#allocation2 + $0x250] sm:$0x3]
      %v4781 = vld [vmem:[#allocation2 + $0x258] sm:$0x3]
      %v4782 = vld [vmem:[#allocation2 + $0x260] sm:$0xfc]
      %v4783 = vld [vmem:[#allocation2 + $0x268] sm:$0xfc]
      %v4784 = vld [vmem:[#allocation2 + $0x270] sm:$0x3]
      %v4785 = vld [vmem:[#allocation2 + $0x278] sm:$0x3]
      %v4786 = vld [vmem:[#allocation2 + $0x280] sm:$0xfc]
      %v4787 = vld [vmem:[#allocation2 + $0x288] sm:$0xfc]
      %v4788 = vld [vmem:[#allocation2 + $0x290] sm:$0x3]
      %v4789 = vld [vmem:[#allocation2 + $0x298] sm:$0x3]
      %v4790 = vld [vmem:[#allocation2 + $0x2a0] sm:$0xfc]
      %v4791 = vld [vmem:[#allocation2 + $0x2a8] sm:$0xfc]
      %v4792 = vld [vmem:[#allocation2 + $0x2b0] sm:$0x3]
      %v4793 = vld [vmem:[#allocation2 + $0x2b8] sm:$0x3]
      %v4794 = vld [vmem:[#allocation2 + $0x2c0] sm:$0xfc]
      %v4795 = vld [vmem:[#allocation2 + $0x2c8] sm:$0xfc]
      %v4796 = vld [vmem:[#allocation2 + $0x2d0] sm:$0x3]
      %v4797 = vld [vmem:[#allocation2 + $0x2d8] sm:$0x3]
      %v4798 = vld [vmem:[#allocation2 + $0x2e0] sm:$0xfc]
      %v4799 = vld [vmem:[#allocation2 + $0x2e8] sm:$0xfc]
      %v4800 = vld [vmem:[#allocation2 + $0x2f0] sm:$0x3]
      %v4801 = vld [vmem:[#allocation2 + $0x2f8] sm:$0x3]
      %v4802 = vld [vmem:[#allocation2 + $0x300] sm:$0xfc]
      %v4803 = vld [vmem:[#allocation2 + $0x308] sm:$0xfc]
      %v4804 = vld [vmem:[#allocation2 + $0x310] sm:$0x3]
      %v4805 = vld [vmem:[#allocation2 + $0x318] sm:$0x3]
      %v4806 = vld [vmem:[#allocation2 + $0x320] sm:$0xfc]
      %v4807 = vld [vmem:[#allocation2 + $0x328] sm:$0xfc]
      %v4808 = vld [vmem:[#allocation2 + $0x330] sm:$0x3]
      %v4809 = vld [vmem:[#allocation2 + $0x338] sm:$0x3]
      %v4810 = vld [vmem:[#allocation2 + $0x340] sm:$0xfc]
      %v4811 = vld [vmem:[#allocation2 + $0x348] sm:$0xfc]
      %v4812 = vld [vmem:[#allocation2 + $0x350] sm:$0x3]
      %v4813 = vld [vmem:[#allocation2 + $0x358] sm:$0x3]
      %v4814 = vld [vmem:[#allocation2 + $0x360] sm:$0xfc]
      %v4815 = vld [vmem:[#allocation2 + $0x368] sm:$0xfc]
      %v4816 = vld [vmem:[#allocation2 + $0x370] sm:$0x3]
      %v4817 = vld [vmem:[#allocation2 + $0x378] sm:$0x3]
      %v4818 = vld [vmem:[#allocation2 + $0x380] sm:$0xfc]
      %v4819 = vld [vmem:[#allocation2 + $0x388] sm:$0xfc]
      %v4820 = vld [vmem:[#allocation2 + $0x390] sm:$0x3]
      %v4821 = vld [vmem:[#allocation2 + $0x398] sm:$0x3]
      %v4822 = vld [vmem:[#allocation2 + $0x3a0] sm:$0xfc]
      %v4823 = vld [vmem:[#allocation2 + $0x3a8] sm:$0xfc]
      %v4824 = vld [vmem:[#allocation2 + $0x3b0] sm:$0x3]
      %v4825 = vld [vmem:[#allocation2 + $0x3b8] sm:$0x3]
      %v4826 = vld [vmem:[#allocation2 + $0x3c0] sm:$0xfc]
      %v4827 = vld [vmem:[#allocation2 + $0x3c8] sm:$0xfc]
      %v4828 = vld [vmem:[#allocation2 + $0x3d0] sm:$0x3]
      %v4829 = vld [vmem:[#allocation2 + $0x3d8] sm:$0x3]
      %v4830 = vld [vmem:[#allocation2 + $0x3e0] sm:$0xfc]
      %v4831 = vld [vmem:[#allocation2 + $0x3e8] sm:$0xfc]
      %v4832 = vld [vmem:[#allocation2 + $0x3f0] sm:$0x3]
      %v4833 = vld [vmem:[#allocation2 + $0x3f8] sm:$0x3]
      %v4962 = vrot.slane %v4706, 2
      %v4963 = vrot.slane %v4708, 2
      %v4964 = vsel %vm1901, %v4962, %v4963
      %v4965 = vrot.slane %v4707, 2
      %v4966 = vrot.slane %v4709, 2
      %v4967 = vsel %vm1901, %v4965, %v4966
      %v4968 = vrot.slane %v4710, 2
      %v4969 = vrot.slane %v4712, 2
      %v4970 = vsel %vm1901, %v4968, %v4969
      %v4971 = vrot.slane %v4711, 2
      %v4972 = vrot.slane %v4713, 2
      %v4973 = vsel %vm1901, %v4971, %v4972
      %v4974 = vrot.slane %v4714, 2
      %v4975 = vrot.slane %v4716, 2
      %v4976 = vsel %vm1901, %v4974, %v4975
      %v4977 = vrot.slane %v4715, 2
      %v4978 = vrot.slane %v4717, 2
      %v4979 = vsel %vm1901, %v4977, %v4978
      %v4980 = vrot.slane %v4718, 2
      %v4981 = vrot.slane %v4720, 2
      %v4982 = vsel %vm1901, %v4980, %v4981
      %v4983 = vrot.slane %v4719, 2
      %v4984 = vrot.slane %v4721, 2
      %v4985 = vsel %vm1901, %v4983, %v4984
      %v4986 = vrot.slane %v4722, 2
      %v4987 = vrot.slane %v4724, 2
      %v4988 = vsel %vm1901, %v4986, %v4987
      %v4989 = vrot.slane %v4723, 2
      %v4990 = vrot.slane %v4725, 2
      %v4991 = vsel %vm1901, %v4989, %v4990
      %v4992 = vrot.slane %v4726, 2
      %v4993 = vrot.slane %v4728, 2
      %v4994 = vsel %vm1901, %v4992, %v4993
      %v4995 = vrot.slane %v4727, 2
      %v4996 = vrot.slane %v4729, 2
      %v4997 = vsel %vm1901, %v4995, %v4996
      %v4998 = vrot.slane %v4730, 2
      %v4999 = vrot.slane %v4732, 2
      %v5000 = vsel %vm1901, %v4998, %v4999
      %v5001 = vrot.slane %v4731, 2
      %v5002 = vrot.slane %v4733, 2
      %v5003 = vsel %vm1901, %v5001, %v5002
      %v5004 = vrot.slane %v4734, 2
      %v5005 = vrot.slane %v4736, 2
      %v5006 = vsel %vm1901, %v5004, %v5005
      %v5007 = vrot.slane %v4735, 2
      %v5008 = vrot.slane %v4737, 2
      %v5009 = vsel %vm1901, %v5007, %v5008
      %v5010 = vrot.slane %v4738, 2
      %v5011 = vrot.slane %v4740, 2
      %v5012 = vsel %vm1901, %v5010, %v5011
      %v5013 = vrot.slane %v4739, 2
      %v5014 = vrot.slane %v4741, 2
      %v5015 = vsel %vm1901, %v5013, %v5014
      %v5016 = vrot.slane %v4742, 2
      %v5017 = vrot.slane %v4744, 2
      %v5018 = vsel %vm1901, %v5016, %v5017
      %v5019 = vrot.slane %v4743, 2
      %v5020 = vrot.slane %v4745, 2
      %v5021 = vsel %vm1901, %v5019, %v5020
      %v5022 = vrot.slane %v4746, 2
      %v5023 = vrot.slane %v4748, 2
      %v5024 = vsel %vm1901, %v5022, %v5023
      %v5025 = vrot.slane %v4747, 2
      %v5026 = vrot.slane %v4749, 2
      %v5027 = vsel %vm1901, %v5025, %v5026
      %v5028 = vrot.slane %v4750, 2
      %v5029 = vrot.slane %v4752, 2
      %v5030 = vsel %vm1901, %v5028, %v5029
      %v5031 = vrot.slane %v4751, 2
      %v5032 = vrot.slane %v4753, 2
      %v5033 = vsel %vm1901, %v5031, %v5032
      %v5034 = vrot.slane %v4754, 2
      %v5035 = vrot.slane %v4756, 2
      %v5036 = vsel %vm1901, %v5034, %v5035
      %v5037 = vrot.slane %v4755, 2
      %v5038 = vrot.slane %v4757, 2
      %v5039 = vsel %vm1901, %v5037, %v5038
      %v5040 = vrot.slane %v4758, 2
      %v5041 = vrot.slane %v4760, 2
      %v5042 = vsel %vm1901, %v5040, %v5041
      %v5043 = vrot.slane %v4759, 2
      %v5044 = vrot.slane %v4761, 2
      %v5045 = vsel %vm1901, %v5043, %v5044
      %v5046 = vrot.slane %v4762, 2
      %v5047 = vrot.slane %v4764, 2
      %v5048 = vsel %vm1901, %v5046, %v5047
      %v5049 = vrot.slane %v4763, 2
      %v5050 = vrot.slane %v4765, 2
      %v5051 = vsel %vm1901, %v5049, %v5050
      %v5052 = vrot.slane %v4766, 2
      %v5053 = vrot.slane %v4768, 2
      %v5054 = vsel %vm1901, %v5052, %v5053
      %v5055 = vrot.slane %v4767, 2
      %v5056 = vrot.slane %v4769, 2
      %v5057 = vsel %vm1901, %v5055, %v5056
      %v5058 = vrot.slane %v4770, 2
      %v5059 = vrot.slane %v4772, 2
      %v5060 = vsel %vm1901, %v5058, %v5059
      %v5061 = vrot.slane %v4771, 2
      %v5062 = vrot.slane %v4773, 2
      %v5063 = vsel %vm1901, %v5061, %v5062
      %v5064 = vrot.slane %v4774, 2
      %v5065 = vrot.slane %v4776, 2
      %v5066 = vsel %vm1901, %v5064, %v5065
      %v5067 = vrot.slane %v4775, 2
      %v5068 = vrot.slane %v4777, 2
      %v5069 = vsel %vm1901, %v5067, %v5068
      %v5070 = vrot.slane %v4778, 2
      %v5071 = vrot.slane %v4780, 2
      %v5072 = vsel %vm1901, %v5070, %v5071
      %v5073 = vrot.slane %v4779, 2
      %v5074 = vrot.slane %v4781, 2
      %v5075 = vsel %vm1901, %v5073, %v5074
      %v5076 = vrot.slane %v4782, 2
      %v5077 = vrot.slane %v4784, 2
      %v5078 = vsel %vm1901, %v5076, %v5077
      %v5079 = vrot.slane %v4783, 2
      %v5080 = vrot.slane %v4785, 2
      %v5081 = vsel %vm1901, %v5079, %v5080
      %v5082 = vrot.slane %v4786, 2
      %v5083 = vrot.slane %v4788, 2
      %v5084 = vsel %vm1901, %v5082, %v5083
      %v5085 = vrot.slane %v4787, 2
      %v5086 = vrot.slane %v4789, 2
      %v5087 = vsel %vm1901, %v5085, %v5086
      %v5088 = vrot.slane %v4790, 2
      %v5089 = vrot.slane %v4792, 2
      %v5090 = vsel %vm1901, %v5088, %v5089
      %v5091 = vrot.slane %v4791, 2
      %v5092 = vrot.slane %v4793, 2
      %v5093 = vsel %vm1901, %v5091, %v5092
      %v5094 = vrot.slane %v4794, 2
      %v5095 = vrot.slane %v4796, 2
      %v5096 = vsel %vm1901, %v5094, %v5095
      %v5097 = vrot.slane %v4795, 2
      %v5098 = vrot.slane %v4797, 2
      %v5099 = vsel %vm1901, %v5097, %v5098
      %v5100 = vrot.slane %v4798, 2
      %v5101 = vrot.slane %v4800, 2
      %v5102 = vsel %vm1901, %v5100, %v5101
      %v5103 = vrot.slane %v4799, 2
      %v5104 = vrot.slane %v4801, 2
      %v5105 = vsel %vm1901, %v5103, %v5104
      %v5106 = vrot.slane %v4802, 2
      %v5107 = vrot.slane %v4804, 2
      %v5108 = vsel %vm1901, %v5106, %v5107
      %v5109 = vrot.slane %v4803, 2
      %v5110 = vrot.slane %v4805, 2
      %v5111 = vsel %vm1901, %v5109, %v5110
      %v5112 = vrot.slane %v4806, 2
      %v5113 = vrot.slane %v4808, 2
      %v5114 = vsel %vm1901, %v5112, %v5113
      %v5115 = vrot.slane %v4807, 2
      %v5116 = vrot.slane %v4809, 2
      %v5117 = vsel %vm1901, %v5115, %v5116
      %v5118 = vrot.slane %v4810, 2
      %v5119 = vrot.slane %v4812, 2
      %v5120 = vsel %vm1901, %v5118, %v5119
      %v5121 = vrot.slane %v4811, 2
      %v5122 = vrot.slane %v4813, 2
      %v5123 = vsel %vm1901, %v5121, %v5122
      %v5124 = vrot.slane %v4814, 2
      %v5125 = vrot.slane %v4816, 2
      %v5126 = vsel %vm1901, %v5124, %v5125
      %v5127 = vrot.slane %v4815, 2
      %v5128 = vrot.slane %v4817, 2
      %v5129 = vsel %vm1901, %v5127, %v5128
      %v5130 = vrot.slane %v4818, 2
      %v5131 = vrot.slane %v4820, 2
      %v5132 = vsel %vm1901, %v5130, %v5131
      %v5133 = vrot.slane %v4819, 2
      %v5134 = vrot.slane %v4821, 2
      %v5135 = vsel %vm1901, %v5133, %v5134
      %v5136 = vrot.slane %v4822, 2
      %v5137 = vrot.slane %v4824, 2
      %v5138 = vsel %vm1901, %v5136, %v5137
      %v5139 = vrot.slane %v4823, 2
      %v5140 = vrot.slane %v4825, 2
      %v5141 = vsel %vm1901, %v5139, %v5140
      %v5142 = vrot.slane %v4826, 2
      %v5143 = vrot.slane %v4828, 2
      %v5144 = vsel %vm1901, %v5142, %v5143
      %v5145 = vrot.slane %v4827, 2
      %v5146 = vrot.slane %v4829, 2
      %v5147 = vsel %vm1901, %v5145, %v5146
      %v5148 = vrot.slane %v4830, 2
      %v5149 = vrot.slane %v4832, 2
      %v5150 = vsel %vm1901, %v5148, %v5149
      %v5151 = vrot.slane %v4831, 2
      %v5152 = vrot.slane %v4833, 2
      %v5153 = vsel %vm1901, %v5151, %v5152
      %v5218 = vpack.c.bf16 %v4970, %v4964
      %v5219 = vpack.c.bf16 %v4973, %v4967
      %v5220 = vpack.c.bf16 %v4982, %v4976
      %v5221 = vpack.c.bf16 %v4985, %v4979
      %v5222 = vpack.c.bf16 %v4994, %v4988
      %v5223 = vpack.c.bf16 %v4997, %v4991
      %v5224 = vpack.c.bf16 %v5006, %v5000
      %v5225 = vpack.c.bf16 %v5009, %v5003
      %v5226 = vpack.c.bf16 %v5018, %v5012
      %v5227 = vpack.c.bf16 %v5021, %v5015
      %v5228 = vpack.c.bf16 %v5030, %v5024
      %v5229 = vpack.c.bf16 %v5033, %v5027
      %v5230 = vpack.c.bf16 %v5042, %v5036
      %v5231 = vpack.c.bf16 %v5045, %v5039
      %v5232 = vpack.c.bf16 %v5054, %v5048
      %v5233 = vpack.c.bf16 %v5057, %v5051
      %v5234 = vpack.c.bf16 %v5066, %v5060
      %v5235 = vpack.c.bf16 %v5069, %v5063
      %v5236 = vpack.c.bf16 %v5078, %v5072
      %v5237 = vpack.c.bf16 %v5081, %v5075
      %v5238 = vpack.c.bf16 %v5090, %v5084
      %v5239 = vpack.c.bf16 %v5093, %v5087
      %v5240 = vpack.c.bf16 %v5102, %v5096
      %v5241 = vpack.c.bf16 %v5105, %v5099
      %v5242 = vpack.c.bf16 %v5114, %v5108
      %v5243 = vpack.c.bf16 %v5117, %v5111
      %v5244 = vpack.c.bf16 %v5126, %v5120
      %v5245 = vpack.c.bf16 %v5129, %v5123
      %v5246 = vpack.c.bf16 %v5138, %v5132
      %v5247 = vpack.c.bf16 %v5141, %v5135
      %v5248 = vpack.c.bf16 %v5150, %v5144
      %v5249 = vpack.c.bf16 %v5153, %v5147
      %s5250 = scalar_lea.vmem %s3, 512
      %v5251 = vld [vmem:[%s5250] sm:$0xff]
      %v5252 = vld [vmem:[%s5250 + $0x8] sm:$0xff]
      %v5253 = vld [vmem:[%s5250 + $0x10] sm:$0xff]
      %v5254 = vld [vmem:[%s5250 + $0x18] sm:$0xff]
      %v5255 = vld [vmem:[%s5250 + $0x20] sm:$0xff]
      %v5256 = vld [vmem:[%s5250 + $0x28] sm:$0xff]
      %v5257 = vld [vmem:[%s5250 + $0x30] sm:$0xff]
      %v5258 = vld [vmem:[%s5250 + $0x38] sm:$0xff]
      %v5259 = vld [vmem:[%s5250 + $0x40] sm:$0xff]
      %v5260 = vld [vmem:[%s5250 + $0x48] sm:$0xff]
      %v5261 = vld [vmem:[%s5250 + $0x50] sm:$0xff]
      %v5262 = vld [vmem:[%s5250 + $0x58] sm:$0xff]
      %v5263 = vld [vmem:[%s5250 + $0x60] sm:$0xff]
      %v5264 = vld [vmem:[%s5250 + $0x68] sm:$0xff]
      %v5265 = vld [vmem:[%s5250 + $0x70] sm:$0xff]
      %v5266 = vld [vmem:[%s5250 + $0x78] sm:$0xff]
      %v5267 = vld [vmem:[%s5250 + $0x80] sm:$0xff]
      %v5268 = vld [vmem:[%s5250 + $0x88] sm:$0xff]
      %v5269 = vld [vmem:[%s5250 + $0x90] sm:$0xff]
      %v5270 = vld [vmem:[%s5250 + $0x98] sm:$0xff]
      %v5271 = vld [vmem:[%s5250 + $0xa0] sm:$0xff]
      %v5272 = vld [vmem:[%s5250 + $0xa8] sm:$0xff]
      %v5273 = vld [vmem:[%s5250 + $0xb0] sm:$0xff]
      %v5274 = vld [vmem:[%s5250 + $0xb8] sm:$0xff]
      %v5275 = vld [vmem:[%s5250 + $0xc0] sm:$0xff]
      %v5276 = vld [vmem:[%s5250 + $0xc8] sm:$0xff]
      %v5277 = vld [vmem:[%s5250 + $0xd0] sm:$0xff]
      %v5278 = vld [vmem:[%s5250 + $0xd8] sm:$0xff]
      %v5279 = vld [vmem:[%s5250 + $0xe0] sm:$0xff]
      %v5280 = vld [vmem:[%s5250 + $0xe8] sm:$0xff]
      %v5281 = vld [vmem:[%s5250 + $0xf0] sm:$0xff]
      %v5282 = vld [vmem:[%s5250 + $0xf8] sm:$0xff]
      %v5315 = vunpack.c.l.b16 %v5251
      %v5316 = vunpack.c.h.b16 %v5251
      %v5317 = vunpack.c.l.b16 %v5252
      %v5318 = vunpack.c.h.b16 %v5252
      %v5319 = vunpack.c.l.b16 %v5253
      %v5320 = vunpack.c.h.b16 %v5253
      %v5321 = vunpack.c.l.b16 %v5254
      %v5322 = vunpack.c.h.b16 %v5254
      %v5323 = vunpack.c.l.b16 %v5255
      %v5324 = vunpack.c.h.b16 %v5255
      %v5325 = vunpack.c.l.b16 %v5256
      %v5326 = vunpack.c.h.b16 %v5256
      %v5327 = vunpack.c.l.b16 %v5257
      %v5328 = vunpack.c.h.b16 %v5257
      %v5329 = vunpack.c.l.b16 %v5258
      %v5330 = vunpack.c.h.b16 %v5258
      %v5331 = vunpack.c.l.b16 %v5259
      %v5332 = vunpack.c.h.b16 %v5259
      %v5333 = vunpack.c.l.b16 %v5260
      %v5334 = vunpack.c.h.b16 %v5260
      %v5335 = vunpack.c.l.b16 %v5261
      %v5336 = vunpack.c.h.b16 %v5261
      %v5337 = vunpack.c.l.b16 %v5262
      %v5338 = vunpack.c.h.b16 %v5262
      %v5339 = vunpack.c.l.b16 %v5263
      %v5340 = vunpack.c.h.b16 %v5263
      %v5341 = vunpack.c.l.b16 %v5264
      %v5342 = vunpack.c.h.b16 %v5264
      %v5343 = vunpack.c.l.b16 %v5265
      %v5344 = vunpack.c.h.b16 %v5265
      %v5345 = vunpack.c.l.b16 %v5266
      %v5346 = vunpack.c.h.b16 %v5266
      %v5347 = vunpack.c.l.b16 %v5267
      %v5348 = vunpack.c.h.b16 %v5267
      %v5349 = vunpack.c.l.b16 %v5268
      %v5350 = vunpack.c.h.b16 %v5268
      %v5351 = vunpack.c.l.b16 %v5269
      %v5352 = vunpack.c.h.b16 %v5269
      %v5353 = vunpack.c.l.b16 %v5270
      %v5354 = vunpack.c.h.b16 %v5270
      %v5355 = vunpack.c.l.b16 %v5271
      %v5356 = vunpack.c.h.b16 %v5271
      %v5357 = vunpack.c.l.b16 %v5272
      %v5358 = vunpack.c.h.b16 %v5272
      %v5359 = vunpack.c.l.b16 %v5273
      %v5360 = vunpack.c.h.b16 %v5273
      %v5361 = vunpack.c.l.b16 %v5274
      %v5362 = vunpack.c.h.b16 %v5274
      %v5363 = vunpack.c.l.b16 %v5275
      %v5364 = vunpack.c.h.b16 %v5275
      %v5365 = vunpack.c.l.b16 %v5276
      %v5366 = vunpack.c.h.b16 %v5276
      %v5367 = vunpack.c.l.b16 %v5277
      %v5368 = vunpack.c.h.b16 %v5277
      %v5369 = vunpack.c.l.b16 %v5278
      %v5370 = vunpack.c.h.b16 %v5278
      %v5371 = vunpack.c.l.b16 %v5279
      %v5372 = vunpack.c.h.b16 %v5279
      %v5373 = vunpack.c.l.b16 %v5280
      %v5374 = vunpack.c.h.b16 %v5280
      %v5375 = vunpack.c.l.b16 %v5281
      %v5376 = vunpack.c.h.b16 %v5281
      %v5377 = vunpack.c.l.b16 %v5282
      %v5378 = vunpack.c.h.b16 %v5282
      %v5379 = vpack.c.b16 %v5317, %v5315
      %v5380 = vpack.c.b16 %v5318, %v5316
      %v5381 = vpack.c.b16 %v5321, %v5319
      %v5382 = vpack.c.b16 %v5322, %v5320
      %v5383 = vpack.c.b16 %v5325, %v5323
      %v5384 = vpack.c.b16 %v5326, %v5324
      %v5385 = vpack.c.b16 %v5329, %v5327
      %v5386 = vpack.c.b16 %v5330, %v5328
      %v5387 = vpack.c.b16 %v5333, %v5331
      %v5388 = vpack.c.b16 %v5334, %v5332
      %v5389 = vpack.c.b16 %v5337, %v5335
      %v5390 = vpack.c.b16 %v5338, %v5336
      %v5391 = vpack.c.b16 %v5341, %v5339
      %v5392 = vpack.c.b16 %v5342, %v5340
      %v5393 = vpack.c.b16 %v5345, %v5343
      %v5394 = vpack.c.b16 %v5346, %v5344
      %v5395 = vpack.c.b16 %v5349, %v5347
      %v5396 = vpack.c.b16 %v5350, %v5348
      %v5397 = vpack.c.b16 %v5353, %v5351
      %v5398 = vpack.c.b16 %v5354, %v5352
      %v5399 = vpack.c.b16 %v5357, %v5355
      %v5400 = vpack.c.b16 %v5358, %v5356
      %v5401 = vpack.c.b16 %v5361, %v5359
      %v5402 = vpack.c.b16 %v5362, %v5360
      %v5403 = vpack.c.b16 %v5365, %v5363
      %v5404 = vpack.c.b16 %v5366, %v5364
      %v5405 = vpack.c.b16 %v5369, %v5367
      %v5406 = vpack.c.b16 %v5370, %v5368
      %v5407 = vpack.c.b16 %v5373, %v5371
      %v5408 = vpack.c.b16 %v5374, %v5372
      %v5409 = vpack.c.b16 %v5377, %v5375
      %v5410 = vpack.c.b16 %v5378, %v5376
      %5443 = vmatprep.subr.bf16.mxu0 %v5380
      %5444 = vmatpush1.bf16.msra.mxu0 %v5379
      %5445 = vmatprep.subr.bf16.mxu0 %v5382
      %5446 = vmatpush1.bf16.msra.mxu0 %v5381
      %5447 = vmatprep.subr.bf16.mxu0 %v5384
      %5448 = vmatpush1.bf16.msra.mxu0 %v5383
      %5449 = vmatprep.subr.bf16.mxu0 %v5386
      %5450 = vmatpush1.bf16.msra.mxu0 %v5385
      %5451 = vmatprep.subr.bf16.mxu0 %v5388
      %5452 = vmatpush1.bf16.msra.mxu0 %v5387
      %5453 = vmatprep.subr.bf16.mxu0 %v5390
      %5454 = vmatpush1.bf16.msra.mxu0 %v5389
      %5455 = vmatprep.subr.bf16.mxu0 %v5392
      %5456 = vmatpush1.bf16.msra.mxu0 %v5391
      %5457 = vmatprep.subr.bf16.mxu0 %v5394
      %5458 = vmatpush1.bf16.msra.mxu0 %v5393
      %5459 = vmatprep.subr.bf16.mxu0 %v5396
      %5460 = vmatpush1.bf16.msra.mxu0 %v5395
      %5461 = vmatprep.subr.bf16.mxu0 %v5398
      %5462 = vmatpush1.bf16.msra.mxu0 %v5397
      %5463 = vmatprep.subr.bf16.mxu0 %v5400
      %5464 = vmatpush1.bf16.msra.mxu0 %v5399
      %5465 = vmatprep.subr.bf16.mxu0 %v5402
      %5466 = vmatpush1.bf16.msra.mxu0 %v5401
      %5467 = vmatprep.subr.bf16.mxu0 %v5404
      %5468 = vmatpush1.bf16.msra.mxu0 %v5403
      %5469 = vmatprep.subr.bf16.mxu0 %v5406
      %5470 = vmatpush1.bf16.msra.mxu0 %v5405
      %5471 = vmatprep.subr.bf16.mxu0 %v5408
      %5472 = vmatpush1.bf16.msra.mxu0 %v5407
      %5473 = vmatprep.subr.bf16.mxu0 %v5410
      %5474 = vmatpush1.bf16.msra.mxu0 %v5409
      %5475 = vmatprep.mubr.bf16.mxu0 %v5219
      %5476 = vmatmul.mubr.bf16.gmra.mrb[0].mxu0 %v5218
      %v5477 = vpop.f32.mrb[0].mxu0
      %v5478 = vadd.f32 0.0, %v5477
      %v5479 = vpop.f32.mrb[0].mxu0
      %v5480 = vadd.f32 0.0, %v5479
      %v5481 = vpop.f32.mrb[0].mxu0
      %v5482 = vadd.f32 0.0, %v5481
      %v5483 = vpop.f32.mrb[0].mxu0
      %v5484 = vadd.f32 0.0, %v5483
      %5485 = vmatprep.mubr.bf16.mxu0 %v5221
      %5486 = vmatmul.mubr.bf16.gmra.mrb[0].mxu0 %v5220
      %v5487 = vpop.f32.mrb[0].mxu0
      %v5488 = vadd.f32 0.0, %v5487
      %v5489 = vpop.f32.mrb[0].mxu0
      %v5490 = vadd.f32 0.0, %v5489
      %v5491 = vpop.f32.mrb[0].mxu0
      %v5492 = vadd.f32 0.0, %v5491
      %v5493 = vpop.f32.mrb[0].mxu0
      %v5494 = vadd.f32 0.0, %v5493
      %5495 = vmatprep.mubr.bf16.mxu0 %v5223
      %5496 = vmatmul.mubr.bf16.gmra.mrb[0].mxu0 %v5222
      %v5497 = vpop.f32.mrb[0].mxu0
      %v5498 = vadd.f32 0.0, %v5497
      %v5499 = vpop.f32.mrb[0].mxu0
      %v5500 = vadd.f32 0.0, %v5499
      %v5501 = vpop.f32.mrb[0].mxu0
      %v5502 = vadd.f32 0.0, %v5501
      %v5503 = vpop.f32.mrb[0].mxu0
      %v5504 = vadd.f32 0.0, %v5503
      %5505 = vmatprep.mubr.bf16.mxu0 %v5225
      %5506 = vmatmul.mubr.bf16.gmra.mrb[0].mxu0 %v5224
      %v5507 = vpop.f32.mrb[0].mxu0
      %v5508 = vadd.f32 0.0, %v5507
      %v5509 = vpop.f32.mrb[0].mxu0
      %v5510 = vadd.f32 0.0, %v5509
      %v5511 = vpop.f32.mrb[0].mxu0
      %v5512 = vadd.f32 0.0, %v5511
      %v5513 = vpop.f32.mrb[0].mxu0
      %v5514 = vadd.f32 0.0, %v5513
      %5515 = vmatprep.mubr.bf16.mxu0 %v5227
      %5516 = vmatmul.mubr.bf16.gmra.mrb[0].mxu0 %v5226
      %v5517 = vpop.f32.mrb[0].mxu0
      %v5518 = vadd.f32 0.0, %v5517
      %v5519 = vpop.f32.mrb[0].mxu0
      %v5520 = vadd.f32 0.0, %v5519
      %v5521 = vpop.f32.mrb[0].mxu0
      %v5522 = vadd.f32 0.0, %v5521
      %v5523 = vpop.f32.mrb[0].mxu0
      %v5524 = vadd.f32 0.0, %v5523
      %5525 = vmatprep.mubr.bf16.mxu0 %v5229
      %5526 = vmatmul.mubr.bf16.gmra.mrb[0].mxu0 %v5228
      %v5527 = vpop.f32.mrb[0].mxu0
      %v5528 = vadd.f32 0.0, %v5527
      %v5529 = vpop.f32.mrb[0].mxu0
      %v5530 = vadd.f32 0.0, %v5529
      %v5531 = vpop.f32.mrb[0].mxu0
      %v5532 = vadd.f32 0.0, %v5531
      %v5533 = vpop.f32.mrb[0].mxu0
      %v5534 = vadd.f32 0.0, %v5533
      %5535 = vmatprep.mubr.bf16.mxu0 %v5231
      %5536 = vmatmul.mubr.bf16.gmra.mrb[0].mxu0 %v5230
      %v5537 = vpop.f32.mrb[0].mxu0
      %v5538 = vadd.f32 0.0, %v5537
      %v5539 = vpop.f32.mrb[0].mxu0
      %v5540 = vadd.f32 0.0, %v5539
      %v5541 = vpop.f32.mrb[0].mxu0
      %v5542 = vadd.f32 0.0, %v5541
      %v5543 = vpop.f32.mrb[0].mxu0
      %v5544 = vadd.f32 0.0, %v5543
      %5545 = vmatprep.mubr.bf16.mxu0 %v5233
      %5546 = vmatmul.mubr.bf16.gmra.mrb[0].mxu0 %v5232
      %v5547 = vpop.f32.mrb[0].mxu0
      %v5548 = vadd.f32 0.0, %v5547
      %v5549 = vpop.f32.mrb[0].mxu0
      %v5550 = vadd.f32 0.0, %v5549
      %v5551 = vpop.f32.mrb[0].mxu0
      %v5552 = vadd.f32 0.0, %v5551
      %v5553 = vpop.f32.mrb[0].mxu0
      %v5554 = vadd.f32 0.0, %v5553
      %5555 = vmatprep.mubr.bf16.mxu0 %v5235
      %5556 = vmatmul.mubr.bf16.gmra.mrb[0].mxu0 %v5234
      %v5557 = vpop.f32.mrb[0].mxu0
      %v5558 = vadd.f32 0.0, %v5557
      %v5559 = vpop.f32.mrb[0].mxu0
      %v5560 = vadd.f32 0.0, %v5559
      %v5561 = vpop.f32.mrb[0].mxu0
      %v5562 = vadd.f32 0.0, %v5561
      %v5563 = vpop.f32.mrb[0].mxu0
      %v5564 = vadd.f32 0.0, %v5563
      %5565 = vmatprep.mubr.bf16.mxu0 %v5237
      %5566 = vmatmul.mubr.bf16.gmra.mrb[0].mxu0 %v5236
      %v5567 = vpop.f32.mrb[0].mxu0
      %v5568 = vadd.f32 0.0, %v5567
      %v5569 = vpop.f32.mrb[0].mxu0
      %v5570 = vadd.f32 0.0, %v5569
      %v5571 = vpop.f32.mrb[0].mxu0
      %v5572 = vadd.f32 0.0, %v5571
      %v5573 = vpop.f32.mrb[0].mxu0
      %v5574 = vadd.f32 0.0, %v5573
      %5575 = vmatprep.mubr.bf16.mxu0 %v5239
      %5576 = vmatmul.mubr.bf16.gmra.mrb[0].mxu0 %v5238
      %v5577 = vpop.f32.mrb[0].mxu0
      %v5578 = vadd.f32 0.0, %v5577
      %v5579 = vpop.f32.mrb[0].mxu0
      %v5580 = vadd.f32 0.0, %v5579
      %v5581 = vpop.f32.mrb[0].mxu0
      %v5582 = vadd.f32 0.0, %v5581
      %v5583 = vpop.f32.mrb[0].mxu0
      %v5584 = vadd.f32 0.0, %v5583
      %5585 = vmatprep.mubr.bf16.mxu0 %v5241
      %5586 = vmatmul.mubr.bf16.gmra.mrb[0].mxu0 %v5240
      %v5587 = vpop.f32.mrb[0].mxu0
      %v5588 = vadd.f32 0.0, %v5587
      %v5589 = vpop.f32.mrb[0].mxu0
      %v5590 = vadd.f32 0.0, %v5589
      %v5591 = vpop.f32.mrb[0].mxu0
      %v5592 = vadd.f32 0.0, %v5591
      %v5593 = vpop.f32.mrb[0].mxu0
      %v5594 = vadd.f32 0.0, %v5593
      %5595 = vmatprep.mubr.bf16.mxu0 %v5243
      %5596 = vmatmul.mubr.bf16.gmra.mrb[0].mxu0 %v5242
      %v5597 = vpop.f32.mrb[0].mxu0
      %v5598 = vadd.f32 0.0, %v5597
      %v5599 = vpop.f32.mrb[0].mxu0
      %v5600 = vadd.f32 0.0, %v5599
      %v5601 = vpop.f32.mrb[0].mxu0
      %v5602 = vadd.f32 0.0, %v5601
      %v5603 = vpop.f32.mrb[0].mxu0
      %v5604 = vadd.f32 0.0, %v5603
      %5605 = vmatprep.mubr.bf16.mxu0 %v5245
      %5606 = vmatmul.mubr.bf16.gmra.mrb[0].mxu0 %v5244
      %v5607 = vpop.f32.mrb[0].mxu0
      %v5608 = vadd.f32 0.0, %v5607
      %v5609 = vpop.f32.mrb[0].mxu0
      %v5610 = vadd.f32 0.0, %v5609
      %v5611 = vpop.f32.mrb[0].mxu0
      %v5612 = vadd.f32 0.0, %v5611
      %v5613 = vpop.f32.mrb[0].mxu0
      %v5614 = vadd.f32 0.0, %v5613
      %5615 = vmatprep.mubr.bf16.mxu0 %v5247
      %5616 = vmatmul.mubr.bf16.gmra.mrb[0].mxu0 %v5246
      %v5617 = vpop.f32.mrb[0].mxu0
      %v5618 = vadd.f32 0.0, %v5617
      %v5619 = vpop.f32.mrb[0].mxu0
      %v5620 = vadd.f32 0.0, %v5619
      %v5621 = vpop.f32.mrb[0].mxu0
      %v5622 = vadd.f32 0.0, %v5621
      %v5623 = vpop.f32.mrb[0].mxu0
      %v5624 = vadd.f32 0.0, %v5623
      %5625 = vmatprep.mubr.bf16.mxu0 %v5249
      %5626 = vmatmul.mubr.bf16.gmra.mrb[0].mxu0 %v5248
      %v5627 = vpop.f32.mrb[0].mxu0
      %v5628 = vadd.f32 0.0, %v5627
      %v5629 = vpop.f32.mrb[0].mxu0
      %v5630 = vadd.f32 0.0, %v5629
      %v5631 = vpop.f32.mrb[0].mxu0
      %v5632 = vadd.f32 0.0, %v5631
      %v5633 = vpop.f32.mrb[0].mxu0
      %v5634 = vadd.f32 0.0, %v5633
      %5635 = vdwg.mxu0
      %v5636 = vadd.f32 %v4548, %v5478
      %v5637 = vadd.f32 %v4550, %v5480
      %v5638 = vadd.f32 %v4552, %v5482
      %v5639 = vadd.f32 %v4554, %v5484
      %v5640 = vadd.f32 %v4558, %v5488
      %v5641 = vadd.f32 %v4560, %v5490
      %v5642 = vadd.f32 %v4562, %v5492
      %v5643 = vadd.f32 %v4564, %v5494
      %v5644 = vadd.f32 %v4568, %v5498
      %v5645 = vadd.f32 %v4570, %v5500
      %v5646 = vadd.f32 %v4572, %v5502
      %v5647 = vadd.f32 %v4574, %v5504
      %v5648 = vadd.f32 %v4578, %v5508
      %v5649 = vadd.f32 %v4580, %v5510
      %v5650 = vadd.f32 %v4582, %v5512
      %v5651 = vadd.f32 %v4584, %v5514
      %v5652 = vadd.f32 %v4588, %v5518
      %v5653 = vadd.f32 %v4590, %v5520
      %v5654 = vadd.f32 %v4592, %v5522
      %v5655 = vadd.f32 %v4594, %v5524
      %v5656 = vadd.f32 %v4598, %v5528
      %v5657 = vadd.f32 %v4600, %v5530
      %v5658 = vadd.f32 %v4602, %v5532
      %v5659 = vadd.f32 %v4604, %v5534
      %v5660 = vadd.f32 %v4608, %v5538
      %v5661 = vadd.f32 %v4610, %v5540
      %v5662 = vadd.f32 %v4612, %v5542
      %v5663 = vadd.f32 %v4614, %v5544
      %v5664 = vadd.f32 %v4618, %v5548
      %v5665 = vadd.f32 %v4620, %v5550
      %v5666 = vadd.f32 %v4622, %v5552
      %v5667 = vadd.f32 %v4624, %v5554
      %v5668 = vadd.f32 %v4628, %v5558
      %v5669 = vadd.f32 %v4630, %v5560
      %v5670 = vadd.f32 %v4632, %v5562
      %v5671 = vadd.f32 %v4634, %v5564
      %v5672 = vadd.f32 %v4638, %v5568
      %v5673 = vadd.f32 %v4640, %v5570
      %v5674 = vadd.f32 %v4642, %v5572
      %v5675 = vadd.f32 %v4644, %v5574
      %v5676 = vadd.f32 %v4648, %v5578
      %v5677 = vadd.f32 %v4650, %v5580
      %v5678 = vadd.f32 %v4652, %v5582
      %v5679 = vadd.f32 %v4654, %v5584
      %v5680 = vadd.f32 %v4658, %v5588
      %v5681 = vadd.f32 %v4660, %v5590
      %v5682 = vadd.f32 %v4662, %v5592
      %v5683 = vadd.f32 %v4664, %v5594
      %v5684 = vadd.f32 %v4668, %v5598
      %v5685 = vadd.f32 %v4670, %v5600
      %v5686 = vadd.f32 %v4672, %v5602
      %v5687 = vadd.f32 %v4674, %v5604
      %v5688 = vadd.f32 %v4678, %v5608
      %v5689 = vadd.f32 %v4680, %v5610
      %v5690 = vadd.f32 %v4682, %v5612
      %v5691 = vadd.f32 %v4684, %v5614
      %v5692 = vadd.f32 %v4688, %v5618
      %v5693 = vadd.f32 %v4690, %v5620
      %v5694 = vadd.f32 %v4692, %v5622
      %v5695 = vadd.f32 %v4694, %v5624
      %v5696 = vadd.f32 %v4698, %v5628
      %v5697 = vadd.f32 %v4700, %v5630
      %v5698 = vadd.f32 %v4702, %v5632
      %v5699 = vadd.f32 %v4704, %v5634
      %v5700 = vld [vmem:[%s4] sm:$0x3]
      %v5702 = vlaneseq
      %v5703 = vshrl.u32 %v5702, 7
      %v5704 = vsub.s32 0, %v5703
      %v5705 = vrot.slane %v5700, %v5704
      %v5706 = vlaneseq
      %v5707 = vshrl.u32 %v5706, 7
      %v5708 = vsub.s32 1, %v5707
      %v5709 = vrot.slane %v5700, %v5708
      %v5712 = vadd.f32 %v5636, %v5705
      %v5713 = vadd.f32 %v5637, %v5709
      %v5714 = vadd.f32 %v5638, %v5705
      %v5715 = vadd.f32 %v5639, %v5709
      %v5716 = vadd.f32 %v5640, %v5705
      %v5717 = vadd.f32 %v5641, %v5709
      %v5718 = vadd.f32 %v5642, %v5705
      %v5719 = vadd.f32 %v5643, %v5709
      %v5720 = vadd.f32 %v5644, %v5705
      %v5721 = vadd.f32 %v5645, %v5709
      %v5722 = vadd.f32 %v5646, %v5705
      %v5723 = vadd.f32 %v5647, %v5709
      %v5724 = vadd.f32 %v5648, %v5705
      %v5725 = vadd.f32 %v5649, %v5709
      %v5726 = vadd.f32 %v5650, %v5705
      %v5727 = vadd.f32 %v5651, %v5709
      %v5728 = vadd.f32 %v5652, %v5705
      %v5729 = vadd.f32 %v5653, %v5709
      %v5730 = vadd.f32 %v5654, %v5705
      %v5731 = vadd.f32 %v5655, %v5709
      %v5732 = vadd.f32 %v5656, %v5705
      %v5733 = vadd.f32 %v5657, %v5709
      %v5734 = vadd.f32 %v5658, %v5705
      %v5735 = vadd.f32 %v5659, %v5709
      %v5736 = vadd.f32 %v5660, %v5705
      %v5737 = vadd.f32 %v5661, %v5709
      %v5738 = vadd.f32 %v5662, %v5705
      %v5739 = vadd.f32 %v5663, %v5709
      %v5740 = vadd.f32 %v5664, %v5705
      %v5741 = vadd.f32 %v5665, %v5709
      %v5742 = vadd.f32 %v5666, %v5705
      %v5743 = vadd.f32 %v5667, %v5709
      %v5744 = vadd.f32 %v5668, %v5705
      %v5745 = vadd.f32 %v5669, %v5709
      %v5746 = vadd.f32 %v5670, %v5705
      %v5747 = vadd.f32 %v5671, %v5709
      %v5748 = vadd.f32 %v5672, %v5705
      %v5749 = vadd.f32 %v5673, %v5709
      %v5750 = vadd.f32 %v5674, %v5705
      %v5751 = vadd.f32 %v5675, %v5709
      %v5752 = vadd.f32 %v5676, %v5705
      %v5753 = vadd.f32 %v5677, %v5709
      %v5754 = vadd.f32 %v5678, %v5705
      %v5755 = vadd.f32 %v5679, %v5709
      %v5756 = vadd.f32 %v5680, %v5705
      %v5757 = vadd.f32 %v5681, %v5709
      %v5758 = vadd.f32 %v5682, %v5705
      %v5759 = vadd.f32 %v5683, %v5709
      %v5760 = vadd.f32 %v5684, %v5705
      %v5761 = vadd.f32 %v5685, %v5709
      %v5762 = vadd.f32 %v5686, %v5705
      %v5763 = vadd.f32 %v5687, %v5709
      %v5764 = vadd.f32 %v5688, %v5705
      %v5765 = vadd.f32 %v5689, %v5709
      %v5766 = vadd.f32 %v5690, %v5705
      %v5767 = vadd.f32 %v5691, %v5709
      %v5768 = vadd.f32 %v5692, %v5705
      %v5769 = vadd.f32 %v5693, %v5709
      %v5770 = vadd.f32 %v5694, %v5705
      %v5771 = vadd.f32 %v5695, %v5709
      %v5772 = vadd.f32 %v5696, %v5705
      %v5773 = vadd.f32 %v5697, %v5709
      %v5774 = vadd.f32 %v5698, %v5705
      %v5775 = vadd.f32 %v5699, %v5709
      %v5776 = vld [vmem:[%s224] sm:$0xfe]
      %v5777 = vld [vmem:[%s224 + $0x8] sm:$0xfe]
      %v5778 = vld [vmem:[%s224 + $0x10] sm:$0x1]
      %v5779 = vld [vmem:[%s224 + $0x18] sm:$0x1]
      %v5780 = vld [vmem:[%s224 + $0x20] sm:$0xfe]
      %v5781 = vld [vmem:[%s224 + $0x28] sm:$0xfe]
      %v5782 = vld [vmem:[%s224 + $0x30] sm:$0x1]
      %v5783 = vld [vmem:[%s224 + $0x38] sm:$0x1]
      %v5784 = vld [vmem:[%s224 + $0x40] sm:$0xfe]
      %v5785 = vld [vmem:[%s224 + $0x48] sm:$0xfe]
      %v5786 = vld [vmem:[%s224 + $0x50] sm:$0x1]
      %v5787 = vld [vmem:[%s224 + $0x58] sm:$0x1]
      %v5788 = vld [vmem:[%s224 + $0x60] sm:$0xfe]
      %v5789 = vld [vmem:[%s224 + $0x68] sm:$0xfe]
      %v5790 = vld [vmem:[%s224 + $0x70] sm:$0x1]
      %v5791 = vld [vmem:[%s224 + $0x78] sm:$0x1]
      %v5792 = vld [vmem:[%s224 + $0x80] sm:$0xfe]
      %v5793 = vld [vmem:[%s224 + $0x88] sm:$0xfe]
      %v5794 = vld [vmem:[%s224 + $0x90] sm:$0x1]
      %v5795 = vld [vmem:[%s224 + $0x98] sm:$0x1]
      %v5796 = vld [vmem:[%s224 + $0xa0] sm:$0xfe]
      %v5797 = vld [vmem:[%s224 + $0xa8] sm:$0xfe]
      %v5798 = vld [vmem:[%s224 + $0xb0] sm:$0x1]
      %v5799 = vld [vmem:[%s224 + $0xb8] sm:$0x1]
      %v5800 = vld [vmem:[%s224 + $0xc0] sm:$0xfe]
      %v5801 = vld [vmem:[%s224 + $0xc8] sm:$0xfe]
      %v5802 = vld [vmem:[%s224 + $0xd0] sm:$0x1]
      %v5803 = vld [vmem:[%s224 + $0xd8] sm:$0x1]
      %v5804 = vld [vmem:[%s224 + $0xe0] sm:$0xfe]
      %v5805 = vld [vmem:[%s224 + $0xe8] sm:$0xfe]
      %v5806 = vld [vmem:[%s224 + $0xf0] sm:$0x1]
      %v5807 = vld [vmem:[%s224 + $0xf8] sm:$0x1]
      %v5808 = vld [vmem:[%s224 + $0x100] sm:$0xfe]
      %v5809 = vld [vmem:[%s224 + $0x108] sm:$0xfe]
      %v5810 = vld [vmem:[%s224 + $0x110] sm:$0x1]
      %v5811 = vld [vmem:[%s224 + $0x118] sm:$0x1]
      %v5812 = vld [vmem:[%s224 + $0x120] sm:$0xfe]
      %v5813 = vld [vmem:[%s224 + $0x128] sm:$0xfe]
      %v5814 = vld [vmem:[%s224 + $0x130] sm:$0x1]
      %v5815 = vld [vmem:[%s224 + $0x138] sm:$0x1]
      %v5816 = vld [vmem:[%s224 + $0x140] sm:$0xfe]
      %v5817 = vld [vmem:[%s224 + $0x148] sm:$0xfe]
      %v5818 = vld [vmem:[%s224 + $0x150] sm:$0x1]
      %v5819 = vld [vmem:[%s224 + $0x158] sm:$0x1]
      %v5820 = vld [vmem:[%s224 + $0x160] sm:$0xfe]
      %v5821 = vld [vmem:[%s224 + $0x168] sm:$0xfe]
      %v5822 = vld [vmem:[%s224 + $0x170] sm:$0x1]
      %v5823 = vld [vmem:[%s224 + $0x178] sm:$0x1]
      %v5824 = vld [vmem:[%s224 + $0x180] sm:$0xfe]
      %v5825 = vld [vmem:[%s224 + $0x188] sm:$0xfe]
      %v5826 = vld [vmem:[%s224 + $0x190] sm:$0x1]
      %v5827 = vld [vmem:[%s224 + $0x198] sm:$0x1]
      %v5828 = vld [vmem:[%s224 + $0x1a0] sm:$0xfe]
      %v5829 = vld [vmem:[%s224 + $0x1a8] sm:$0xfe]
      %v5830 = vld [vmem:[%s224 + $0x1b0] sm:$0x1]
      %v5831 = vld [vmem:[%s224 + $0x1b8] sm:$0x1]
      %v5832 = vld [vmem:[%s224 + $0x1c0] sm:$0xfe]
      %v5833 = vld [vmem:[%s224 + $0x1c8] sm:$0xfe]
      %v5834 = vld [vmem:[%s224 + $0x1d0] sm:$0x1]
      %v5835 = vld [vmem:[%s224 + $0x1d8] sm:$0x1]
      %v5836 = vld [vmem:[%s224 + $0x1e0] sm:$0xfe]
      %v5837 = vld [vmem:[%s224 + $0x1e8] sm:$0xfe]
      %v5838 = vld [vmem:[%s224 + $0x1f0] sm:$0x1]
      %v5839 = vld [vmem:[%s224 + $0x1f8] sm:$0x1]
      %v5840 = vld [vmem:[%s224 + $0x200] sm:$0xfe]
      %v5841 = vld [vmem:[%s224 + $0x208] sm:$0xfe]
      %v5842 = vld [vmem:[%s224 + $0x210] sm:$0x1]
      %v5843 = vld [vmem:[%s224 + $0x218] sm:$0x1]
      %v5844 = vld [vmem:[%s224 + $0x220] sm:$0xfe]
      %v5845 = vld [vmem:[%s224 + $0x228] sm:$0xfe]
      %v5846 = vld [vmem:[%s224 + $0x230] sm:$0x1]
      %v5847 = vld [vmem:[%s224 + $0x238] sm:$0x1]
      %v5848 = vld [vmem:[%s224 + $0x240] sm:$0xfe]
      %v5849 = vld [vmem:[%s224 + $0x248] sm:$0xfe]
      %v5850 = vld [vmem:[%s224 + $0x250] sm:$0x1]
      %v5851 = vld [vmem:[%s224 + $0x258] sm:$0x1]
      %v5852 = vld [vmem:[%s224 + $0x260] sm:$0xfe]
      %v5853 = vld [vmem:[%s224 + $0x268] sm:$0xfe]
      %v5854 = vld [vmem:[%s224 + $0x270] sm:$0x1]
      %v5855 = vld [vmem:[%s224 + $0x278] sm:$0x1]
      %v5856 = vld [vmem:[%s224 + $0x280] sm:$0xfe]
      %v5857 = vld [vmem:[%s224 + $0x288] sm:$0xfe]
      %v5858 = vld [vmem:[%s224 + $0x290] sm:$0x1]
      %v5859 = vld [vmem:[%s224 + $0x298] sm:$0x1]
      %v5860 = vld [vmem:[%s224 + $0x2a0] sm:$0xfe]
      %v5861 = vld [vmem:[%s224 + $0x2a8] sm:$0xfe]
      %v5862 = vld [vmem:[%s224 + $0x2b0] sm:$0x1]
      %v5863 = vld [vmem:[%s224 + $0x2b8] sm:$0x1]
      %v5864 = vld [vmem:[%s224 + $0x2c0] sm:$0xfe]
      %v5865 = vld [vmem:[%s224 + $0x2c8] sm:$0xfe]
      %v5866 = vld [vmem:[%s224 + $0x2d0] sm:$0x1]
      %v5867 = vld [vmem:[%s224 + $0x2d8] sm:$0x1]
      %v5868 = vld [vmem:[%s224 + $0x2e0] sm:$0xfe]
      %v5869 = vld [vmem:[%s224 + $0x2e8] sm:$0xfe]
      %v5870 = vld [vmem:[%s224 + $0x2f0] sm:$0x1]
      %v5871 = vld [vmem:[%s224 + $0x2f8] sm:$0x1]
      %v5872 = vld [vmem:[%s224 + $0x300] sm:$0xfe]
      %v5873 = vld [vmem:[%s224 + $0x308] sm:$0xfe]
      %v5874 = vld [vmem:[%s224 + $0x310] sm:$0x1]
      %v5875 = vld [vmem:[%s224 + $0x318] sm:$0x1]
      %v5876 = vld [vmem:[%s224 + $0x320] sm:$0xfe]
      %v5877 = vld [vmem:[%s224 + $0x328] sm:$0xfe]
      %v5878 = vld [vmem:[%s224 + $0x330] sm:$0x1]
      %v5879 = vld [vmem:[%s224 + $0x338] sm:$0x1]
      %v5880 = vld [vmem:[%s224 + $0x340] sm:$0xfe]
      %v5881 = vld [vmem:[%s224 + $0x348] sm:$0xfe]
      %v5882 = vld [vmem:[%s224 + $0x350] sm:$0x1]
      %v5883 = vld [vmem:[%s224 + $0x358] sm:$0x1]
      %v5884 = vld [vmem:[%s224 + $0x360] sm:$0xfe]
      %v5885 = vld [vmem:[%s224 + $0x368] sm:$0xfe]
      %v5886 = vld [vmem:[%s224 + $0x370] sm:$0x1]
      %v5887 = vld [vmem:[%s224 + $0x378] sm:$0x1]
      %v5888 = vld [vmem:[%s224 + $0x380] sm:$0xfe]
      %v5889 = vld [vmem:[%s224 + $0x388] sm:$0xfe]
      %v5890 = vld [vmem:[%s224 + $0x390] sm:$0x1]
      %v5891 = vld [vmem:[%s224 + $0x398] sm:$0x1]
      %v5892 = vld [vmem:[%s224 + $0x3a0] sm:$0xfe]
      %v5893 = vld [vmem:[%s224 + $0x3a8] sm:$0xfe]
      %v5894 = vld [vmem:[%s224 + $0x3b0] sm:$0x1]
      %v5895 = vld [vmem:[%s224 + $0x3b8] sm:$0x1]
      %v5896 = vld [vmem:[%s224 + $0x3c0] sm:$0xfe]
      %v5897 = vld [vmem:[%s224 + $0x3c8] sm:$0xfe]
      %v5898 = vld [vmem:[%s224 + $0x3d0] sm:$0x1]
      %v5899 = vld [vmem:[%s224 + $0x3d8] sm:$0x1]
      %v5900 = vld [vmem:[%s224 + $0x3e0] sm:$0xfe]
      %v5901 = vld [vmem:[%s224 + $0x3e8] sm:$0xfe]
      %v5902 = vld [vmem:[%s224 + $0x3f0] sm:$0x1]
      %v5903 = vld [vmem:[%s224 + $0x3f8] sm:$0x1]
      %v6032 = vrot.slane %v5776, 1
      %v6033 = vrot.slane %v5778, 1
      %v6034 = vsel %vm617, %v6032, %v6033
      %v6035 = vrot.slane %v5777, 1
      %v6036 = vrot.slane %v5779, 1
      %v6037 = vsel %vm617, %v6035, %v6036
      %v6038 = vrot.slane %v5780, 1
      %v6039 = vrot.slane %v5782, 1
      %v6040 = vsel %vm617, %v6038, %v6039
      %v6041 = vrot.slane %v5781, 1
      %v6042 = vrot.slane %v5783, 1
      %v6043 = vsel %vm617, %v6041, %v6042
      %v6044 = vrot.slane %v5784, 1
      %v6045 = vrot.slane %v5786, 1
      %v6046 = vsel %vm617, %v6044, %v6045
      %v6047 = vrot.slane %v5785, 1
      %v6048 = vrot.slane %v5787, 1
      %v6049 = vsel %vm617, %v6047, %v6048
      %v6050 = vrot.slane %v5788, 1
      %v6051 = vrot.slane %v5790, 1
      %v6052 = vsel %vm617, %v6050, %v6051
      %v6053 = vrot.slane %v5789, 1
      %v6054 = vrot.slane %v5791, 1
      %v6055 = vsel %vm617, %v6053, %v6054
      %v6056 = vrot.slane %v5792, 1
      %v6057 = vrot.slane %v5794, 1
      %v6058 = vsel %vm617, %v6056, %v6057
      %v6059 = vrot.slane %v5793, 1
      %v6060 = vrot.slane %v5795, 1
      %v6061 = vsel %vm617, %v6059, %v6060
      %v6062 = vrot.slane %v5796, 1
      %v6063 = vrot.slane %v5798, 1
      %v6064 = vsel %vm617, %v6062, %v6063
      %v6065 = vrot.slane %v5797, 1
      %v6066 = vrot.slane %v5799, 1
      %v6067 = vsel %vm617, %v6065, %v6066
      %v6068 = vrot.slane %v5800, 1
      %v6069 = vrot.slane %v5802, 1
      %v6070 = vsel %vm617, %v6068, %v6069
      %v6071 = vrot.slane %v5801, 1
      %v6072 = vrot.slane %v5803, 1
      %v6073 = vsel %vm617, %v6071, %v6072
      %v6074 = vrot.slane %v5804, 1
      %v6075 = vrot.slane %v5806, 1
      %v6076 = vsel %vm617, %v6074, %v6075
      %v6077 = vrot.slane %v5805, 1
      %v6078 = vrot.slane %v5807, 1
      %v6079 = vsel %vm617, %v6077, %v6078
      %v6080 = vrot.slane %v5808, 1
      %v6081 = vrot.slane %v5810, 1
      %v6082 = vsel %vm617, %v6080, %v6081
      %v6083 = vrot.slane %v5809, 1
      %v6084 = vrot.slane %v5811, 1
      %v6085 = vsel %vm617, %v6083, %v6084
      %v6086 = vrot.slane %v5812, 1
      %v6087 = vrot.slane %v5814, 1
      %v6088 = vsel %vm617, %v6086, %v6087
      %v6089 = vrot.slane %v5813, 1
      %v6090 = vrot.slane %v5815, 1
      %v6091 = vsel %vm617, %v6089, %v6090
      %v6092 = vrot.slane %v5816, 1
      %v6093 = vrot.slane %v5818, 1
      %v6094 = vsel %vm617, %v6092, %v6093
      %v6095 = vrot.slane %v5817, 1
      %v6096 = vrot.slane %v5819, 1
      %v6097 = vsel %vm617, %v6095, %v6096
      %v6098 = vrot.slane %v5820, 1
      %v6099 = vrot.slane %v5822, 1
      %v6100 = vsel %vm617, %v6098, %v6099
      %v6101 = vrot.slane %v5821, 1
      %v6102 = vrot.slane %v5823, 1
      %v6103 = vsel %vm617, %v6101, %v6102
      %v6104 = vrot.slane %v5824, 1
      %v6105 = vrot.slane %v5826, 1
      %v6106 = vsel %vm617, %v6104, %v6105
      %v6107 = vrot.slane %v5825, 1
      %v6108 = vrot.slane %v5827, 1
      %v6109 = vsel %vm617, %v6107, %v6108
      %v6110 = vrot.slane %v5828, 1
      %v6111 = vrot.slane %v5830, 1
      %v6112 = vsel %vm617, %v6110, %v6111
      %v6113 = vrot.slane %v5829, 1
      %v6114 = vrot.slane %v5831, 1
      %v6115 = vsel %vm617, %v6113, %v6114
      %v6116 = vrot.slane %v5832, 1
      %v6117 = vrot.slane %v5834, 1
      %v6118 = vsel %vm617, %v6116, %v6117
      %v6119 = vrot.slane %v5833, 1
      %v6120 = vrot.slane %v5835, 1
      %v6121 = vsel %vm617, %v6119, %v6120
      %v6122 = vrot.slane %v5836, 1
      %v6123 = vrot.slane %v5838, 1
      %v6124 = vsel %vm617, %v6122, %v6123
      %v6125 = vrot.slane %v5837, 1
      %v6126 = vrot.slane %v5839, 1
      %v6127 = vsel %vm617, %v6125, %v6126
      %v6128 = vrot.slane %v5840, 1
      %v6129 = vrot.slane %v5842, 1
      %v6130 = vsel %vm617, %v6128, %v6129
      %v6131 = vrot.slane %v5841, 1
      %v6132 = vrot.slane %v5843, 1
      %v6133 = vsel %vm617, %v6131, %v6132
      %v6134 = vrot.slane %v5844, 1
      %v6135 = vrot.slane %v5846, 1
      %v6136 = vsel %vm617, %v6134, %v6135
      %v6137 = vrot.slane %v5845, 1
      %v6138 = vrot.slane %v5847, 1
      %v6139 = vsel %vm617, %v6137, %v6138
      %v6140 = vrot.slane %v5848, 1
      %v6141 = vrot.slane %v5850, 1
      %v6142 = vsel %vm617, %v6140, %v6141
      %v6143 = vrot.slane %v5849, 1
      %v6144 = vrot.slane %v5851, 1
      %v6145 = vsel %vm617, %v6143, %v6144
      %v6146 = vrot.slane %v5852, 1
      %v6147 = vrot.slane %v5854, 1
      %v6148 = vsel %vm617, %v6146, %v6147
      %v6149 = vrot.slane %v5853, 1
      %v6150 = vrot.slane %v5855, 1
      %v6151 = vsel %vm617, %v6149, %v6150
      %v6152 = vrot.slane %v5856, 1
      %v6153 = vrot.slane %v5858, 1
      %v6154 = vsel %vm617, %v6152, %v6153
      %v6155 = vrot.slane %v5857, 1
      %v6156 = vrot.slane %v5859, 1
      %v6157 = vsel %vm617, %v6155, %v6156
      %v6158 = vrot.slane %v5860, 1
      %v6159 = vrot.slane %v5862, 1
      %v6160 = vsel %vm617, %v6158, %v6159
      %v6161 = vrot.slane %v5861, 1
      %v6162 = vrot.slane %v5863, 1
      %v6163 = vsel %vm617, %v6161, %v6162
      %v6164 = vrot.slane %v5864, 1
      %v6165 = vrot.slane %v5866, 1
      %v6166 = vsel %vm617, %v6164, %v6165
      %v6167 = vrot.slane %v5865, 1
      %v6168 = vrot.slane %v5867, 1
      %v6169 = vsel %vm617, %v6167, %v6168
      %v6170 = vrot.slane %v5868, 1
      %v6171 = vrot.slane %v5870, 1
      %v6172 = vsel %vm617, %v6170, %v6171
      %v6173 = vrot.slane %v5869, 1
      %v6174 = vrot.slane %v5871, 1
      %v6175 = vsel %vm617, %v6173, %v6174
      %v6176 = vrot.slane %v5872, 1
      %v6177 = vrot.slane %v5874, 1
      %v6178 = vsel %vm617, %v6176, %v6177
      %v6179 = vrot.slane %v5873, 1
      %v6180 = vrot.slane %v5875, 1
      %v6181 = vsel %vm617, %v6179, %v6180
      %v6182 = vrot.slane %v5876, 1
      %v6183 = vrot.slane %v5878, 1
      %v6184 = vsel %vm617, %v6182, %v6183
      %v6185 = vrot.slane %v5877, 1
      %v6186 = vrot.slane %v5879, 1
      %v6187 = vsel %vm617, %v6185, %v6186
      %v6188 = vrot.slane %v5880, 1
      %v6189 = vrot.slane %v5882, 1
      %v6190 = vsel %vm617, %v6188, %v6189
      %v6191 = vrot.slane %v5881, 1
      %v6192 = vrot.slane %v5883, 1
      %v6193 = vsel %vm617, %v6191, %v6192
      %v6194 = vrot.slane %v5884, 1
      %v6195 = vrot.slane %v5886, 1
      %v6196 = vsel %vm617, %v6194, %v6195
      %v6197 = vrot.slane %v5885, 1
      %v6198 = vrot.slane %v5887, 1
      %v6199 = vsel %vm617, %v6197, %v6198
      %v6200 = vrot.slane %v5888, 1
      %v6201 = vrot.slane %v5890, 1
      %v6202 = vsel %vm617, %v6200, %v6201
      %v6203 = vrot.slane %v5889, 1
      %v6204 = vrot.slane %v5891, 1
      %v6205 = vsel %vm617, %v6203, %v6204
      %v6206 = vrot.slane %v5892, 1
      %v6207 = vrot.slane %v5894, 1
      %v6208 = vsel %vm617, %v6206, %v6207
      %v6209 = vrot.slane %v5893, 1
      %v6210 = vrot.slane %v5895, 1
      %v6211 = vsel %vm617, %v6209, %v6210
      %v6212 = vrot.slane %v5896, 1
      %v6213 = vrot.slane %v5898, 1
      %v6214 = vsel %vm617, %v6212, %v6213
      %v6215 = vrot.slane %v5897, 1
      %v6216 = vrot.slane %v5899, 1
      %v6217 = vsel %vm617, %v6215, %v6216
      %v6218 = vrot.slane %v5900, 1
      %v6219 = vrot.slane %v5902, 1
      %v6220 = vsel %vm617, %v6218, %v6219
      %v6221 = vrot.slane %v5901, 1
      %v6222 = vrot.slane %v5903, 1
      %v6223 = vsel %vm617, %v6221, %v6222
      %v6288 = vadd.f32 %v5712, %v6034
      %v6289 = vadd.f32 %v5713, %v6037
      %v6290 = vadd.f32 %v5714, %v6040
      %v6291 = vadd.f32 %v5715, %v6043
      %v6292 = vadd.f32 %v5716, %v6046
      %v6293 = vadd.f32 %v5717, %v6049
      %v6294 = vadd.f32 %v5718, %v6052
      %v6295 = vadd.f32 %v5719, %v6055
      %v6296 = vadd.f32 %v5720, %v6058
      %v6297 = vadd.f32 %v5721, %v6061
      %v6298 = vadd.f32 %v5722, %v6064
      %v6299 = vadd.f32 %v5723, %v6067
      %v6300 = vadd.f32 %v5724, %v6070
      %v6301 = vadd.f32 %v5725, %v6073
      %v6302 = vadd.f32 %v5726, %v6076
      %v6303 = vadd.f32 %v5727, %v6079
      %v6304 = vadd.f32 %v5728, %v6082
      %v6305 = vadd.f32 %v5729, %v6085
      %v6306 = vadd.f32 %v5730, %v6088
      %v6307 = vadd.f32 %v5731, %v6091
      %v6308 = vadd.f32 %v5732, %v6094
      %v6309 = vadd.f32 %v5733, %v6097
      %v6310 = vadd.f32 %v5734, %v6100
      %v6311 = vadd.f32 %v5735, %v6103
      %v6312 = vadd.f32 %v5736, %v6106
      %v6313 = vadd.f32 %v5737, %v6109
      %v6314 = vadd.f32 %v5738, %v6112
      %v6315 = vadd.f32 %v5739, %v6115
      %v6316 = vadd.f32 %v5740, %v6118
      %v6317 = vadd.f32 %v5741, %v6121
      %v6318 = vadd.f32 %v5742, %v6124
      %v6319 = vadd.f32 %v5743, %v6127
      %v6320 = vadd.f32 %v5744, %v6130
      %v6321 = vadd.f32 %v5745, %v6133
      %v6322 = vadd.f32 %v5746, %v6136
      %v6323 = vadd.f32 %v5747, %v6139
      %v6324 = vadd.f32 %v5748, %v6142
      %v6325 = vadd.f32 %v5749, %v6145
      %v6326 = vadd.f32 %v5750, %v6148
      %v6327 = vadd.f32 %v5751, %v6151
      %v6328 = vadd.f32 %v5752, %v6154
      %v6329 = vadd.f32 %v5753, %v6157
      %v6330 = vadd.f32 %v5754, %v6160
      %v6331 = vadd.f32 %v5755, %v6163
      %v6332 = vadd.f32 %v5756, %v6166
      %v6333 = vadd.f32 %v5757, %v6169
      %v6334 = vadd.f32 %v5758, %v6172
      %v6335 = vadd.f32 %v5759, %v6175
      %v6336 = vadd.f32 %v5760, %v6178
      %v6337 = vadd.f32 %v5761, %v6181
      %v6338 = vadd.f32 %v5762, %v6184
      %v6339 = vadd.f32 %v5763, %v6187
      %v6340 = vadd.f32 %v5764, %v6190
      %v6341 = vadd.f32 %v5765, %v6193
      %v6342 = vadd.f32 %v5766, %v6196
      %v6343 = vadd.f32 %v5767, %v6199
      %v6344 = vadd.f32 %v5768, %v6202
      %v6345 = vadd.f32 %v5769, %v6205
      %v6346 = vadd.f32 %v5770, %v6208
      %v6347 = vadd.f32 %v5771, %v6211
      %v6348 = vadd.f32 %v5772, %v6214
      %v6349 = vadd.f32 %v5773, %v6217
      %v6350 = vadd.f32 %v5774, %v6220
      %v6351 = vadd.f32 %v5775, %v6223
      %v6352 = vmax.f32 %v6288, 0.0
      %v6353 = vmax.f32 %v6289, 0.0
      %v6354 = vmax.f32 %v6290, 0.0
      %v6355 = vmax.f32 %v6291, 0.0
      %v6356 = vmax.f32 %v6292, 0.0
      %v6357 = vmax.f32 %v6293, 0.0
      %v6358 = vmax.f32 %v6294, 0.0
      %v6359 = vmax.f32 %v6295, 0.0
      %v6360 = vmax.f32 %v6296, 0.0
      %v6361 = vmax.f32 %v6297, 0.0
      %v6362 = vmax.f32 %v6298, 0.0
      %v6363 = vmax.f32 %v6299, 0.0
      %v6364 = vmax.f32 %v6300, 0.0
      %v6365 = vmax.f32 %v6301, 0.0
      %v6366 = vmax.f32 %v6302, 0.0
      %v6367 = vmax.f32 %v6303, 0.0
      %v6368 = vmax.f32 %v6304, 0.0
      %v6369 = vmax.f32 %v6305, 0.0
      %v6370 = vmax.f32 %v6306, 0.0
      %v6371 = vmax.f32 %v6307, 0.0
      %v6372 = vmax.f32 %v6308, 0.0
      %v6373 = vmax.f32 %v6309, 0.0
      %v6374 = vmax.f32 %v6310, 0.0
      %v6375 = vmax.f32 %v6311, 0.0
      %v6376 = vmax.f32 %v6312, 0.0
      %v6377 = vmax.f32 %v6313, 0.0
      %v6378 = vmax.f32 %v6314, 0.0
      %v6379 = vmax.f32 %v6315, 0.0
      %v6380 = vmax.f32 %v6316, 0.0
      %v6381 = vmax.f32 %v6317, 0.0
      %v6382 = vmax.f32 %v6318, 0.0
      %v6383 = vmax.f32 %v6319, 0.0
      %v6384 = vmax.f32 %v6320, 0.0
      %v6385 = vmax.f32 %v6321, 0.0
      %v6386 = vmax.f32 %v6322, 0.0
      %v6387 = vmax.f32 %v6323, 0.0
      %v6388 = vmax.f32 %v6324, 0.0
      %v6389 = vmax.f32 %v6325, 0.0
      %v6390 = vmax.f32 %v6326, 0.0
      %v6391 = vmax.f32 %v6327, 0.0
      %v6392 = vmax.f32 %v6328, 0.0
      %v6393 = vmax.f32 %v6329, 0.0
      %v6394 = vmax.f32 %v6330, 0.0
      %v6395 = vmax.f32 %v6331, 0.0
      %v6396 = vmax.f32 %v6332, 0.0
      %v6397 = vmax.f32 %v6333, 0.0
      %v6398 = vmax.f32 %v6334, 0.0
      %v6399 = vmax.f32 %v6335, 0.0
      %v6400 = vmax.f32 %v6336, 0.0
      %v6401 = vmax.f32 %v6337, 0.0
      %v6402 = vmax.f32 %v6338, 0.0
      %v6403 = vmax.f32 %v6339, 0.0
      %v6404 = vmax.f32 %v6340, 0.0
      %v6405 = vmax.f32 %v6341, 0.0
      %v6406 = vmax.f32 %v6342, 0.0
      %v6407 = vmax.f32 %v6343, 0.0
      %v6408 = vmax.f32 %v6344, 0.0
      %v6409 = vmax.f32 %v6345, 0.0
      %v6410 = vmax.f32 %v6346, 0.0
      %v6411 = vmax.f32 %v6347, 0.0
      %v6412 = vmax.f32 %v6348, 0.0
      %v6413 = vmax.f32 %v6349, 0.0
      %v6414 = vmax.f32 %v6350, 0.0
      %v6415 = vmax.f32 %v6351, 0.0
      %6416 = vst [vmem:[%s231] sm:$0xff] %v6352
      %6417 = vst [vmem:[%s231 + $0x8] sm:$0xff] %v6353
      %6418 = vst [vmem:[%s231 + $0x10] sm:$0xff] %v6354
      %6419 = vst [vmem:[%s231 + $0x18] sm:$0xff] %v6355
      %6420 = vst [vmem:[%s231 + $0x20] sm:$0xff] %v6356
      %6421 = vst [vmem:[%s231 + $0x28] sm:$0xff] %v6357
      %6422 = vst [vmem:[%s231 + $0x30] sm:$0xff] %v6358
      %6423 = vst [vmem:[%s231 + $0x38] sm:$0xff] %v6359
      %6424 = vst [vmem:[%s231 + $0x40] sm:$0xff] %v6360
      %6425 = vst [vmem:[%s231 + $0x48] sm:$0xff] %v6361
      %6426 = vst [vmem:[%s231 + $0x50] sm:$0xff] %v6362
      %6427 = vst [vmem:[%s231 + $0x58] sm:$0xff] %v6363
      %6428 = vst [vmem:[%s231 + $0x60] sm:$0xff] %v6364
      %6429 = vst [vmem:[%s231 + $0x68] sm:$0xff] %v6365
      %6430 = vst [vmem:[%s231 + $0x70] sm:$0xff] %v6366
      %6431 = vst [vmem:[%s231 + $0x78] sm:$0xff] %v6367
      %6432 = vst [vmem:[%s231 + $0x80] sm:$0xff] %v6368
      %6433 = vst [vmem:[%s231 + $0x88] sm:$0xff] %v6369
      %6434 = vst [vmem:[%s231 + $0x90] sm:$0xff] %v6370
      %6435 = vst [vmem:[%s231 + $0x98] sm:$0xff] %v6371
      %6436 = vst [vmem:[%s231 + $0xa0] sm:$0xff] %v6372
      %6437 = vst [vmem:[%s231 + $0xa8] sm:$0xff] %v6373
      %6438 = vst [vmem:[%s231 + $0xb0] sm:$0xff] %v6374
      %6439 = vst [vmem:[%s231 + $0xb8] sm:$0xff] %v6375
      %6440 = vst [vmem:[%s231 + $0xc0] sm:$0xff] %v6376
      %6441 = vst [vmem:[%s231 + $0xc8] sm:$0xff] %v6377
      %6442 = vst [vmem:[%s231 + $0xd0] sm:$0xff] %v6378
      %6443 = vst [vmem:[%s231 + $0xd8] sm:$0xff] %v6379
      %6444 = vst [vmem:[%s231 + $0xe0] sm:$0xff] %v6380
      %6445 = vst [vmem:[%s231 + $0xe8] sm:$0xff] %v6381
      %6446 = vst [vmem:[%s231 + $0xf0] sm:$0xff] %v6382
      %6447 = vst [vmem:[%s231 + $0xf8] sm:$0xff] %v6383
      %6448 = vst [vmem:[%s231 + $0x100] sm:$0xff] %v6384
      %6449 = vst [vmem:[%s231 + $0x108] sm:$0xff] %v6385
      %6450 = vst [vmem:[%s231 + $0x110] sm:$0xff] %v6386
      %6451 = vst [vmem:[%s231 + $0x118] sm:$0xff] %v6387
      %6452 = vst [vmem:[%s231 + $0x120] sm:$0xff] %v6388
      %6453 = vst [vmem:[%s231 + $0x128] sm:$0xff] %v6389
      %6454 = vst [vmem:[%s231 + $0x130] sm:$0xff] %v6390
      %6455 = vst [vmem:[%s231 + $0x138] sm:$0xff] %v6391
      %6456 = vst [vmem:[%s231 + $0x140] sm:$0xff] %v6392
      %6457 = vst [vmem:[%s231 + $0x148] sm:$0xff] %v6393
      %6458 = vst [vmem:[%s231 + $0x150] sm:$0xff] %v6394
      %6459 = vst [vmem:[%s231 + $0x158] sm:$0xff] %v6395
      %6460 = vst [vmem:[%s231 + $0x160] sm:$0xff] %v6396
      %6461 = vst [vmem:[%s231 + $0x168] sm:$0xff] %v6397
      %6462 = vst [vmem:[%s231 + $0x170] sm:$0xff] %v6398
      %6463 = vst [vmem:[%s231 + $0x178] sm:$0xff] %v6399
      %6464 = vst [vmem:[%s231 + $0x180] sm:$0xff] %v6400
      %6465 = vst [vmem:[%s231 + $0x188] sm:$0xff] %v6401
      %6466 = vst [vmem:[%s231 + $0x190] sm:$0xff] %v6402
      %6467 = vst [vmem:[%s231 + $0x198] sm:$0xff] %v6403
      %6468 = vst [vmem:[%s231 + $0x1a0] sm:$0xff] %v6404
      %6469 = vst [vmem:[%s231 + $0x1a8] sm:$0xff] %v6405
      %6470 = vst [vmem:[%s231 + $0x1b0] sm:$0xff] %v6406
      %6471 = vst [vmem:[%s231 + $0x1b8] sm:$0xff] %v6407
      %6472 = vst [vmem:[%s231 + $0x1c0] sm:$0xff] %v6408
      %6473 = vst [vmem:[%s231 + $0x1c8] sm:$0xff] %v6409
      %6474 = vst [vmem:[%s231 + $0x1d0] sm:$0xff] %v6410
      %6475 = vst [vmem:[%s231 + $0x1d8] sm:$0xff] %v6411
      %6476 = vst [vmem:[%s231 + $0x1e0] sm:$0xff] %v6412
      %6477 = vst [vmem:[%s231 + $0x1e8] sm:$0xff] %v6413
      %6478 = vst [vmem:[%s231 + $0x1f0] sm:$0xff] %v6414
      %6479 = vst [vmem:[%s231 + $0x1f8] sm:$0xff] %v6415
      %s6480 = smul.u32 32, %s16
      %p6481 = scmp.lt.s32.totalorder %s6480, 63
      %s6482 = scalar_select %p6481, %s6480, 63
      %s6483 = smul.addr %s6482, 2
      %s6484 = smul.addr %s6483, 8
      %s6485 = scalar_lea.vmem %s5, %s6484
      // Predicated region
      $region41: #{_lambda_.1} parent=39 // pred_check
        %p6486 = pneg %p144
      $region42: #{_lambda_.1} parent=39 // pred_check_branch
        %6488 = sbr.rel (%p6486) target = $region44
      $region43: #{_lambda_.1} parent=39 // pred_region
        %s6489 = smul.u32 32, %s16
      $region44: #{_lambda_.1} parent=39 // pred_fallthru
        _
    $region40: #{_lambda_.1} parent=5 // pred_fallthru
      _
    %p6490 = scmp.le.s32.totalorder 2, %s11
    // Predicated region
    $region45: #{_lambda_.1} parent=5 // pred_check
      %p6491 = pneg %p6490
    $region46: #{_lambda_.1} parent=5 // pred_check_branch
      %6493 = sbr.rel (%p6491) target = $region48
    $region47: #{_lambda_.1} parent=5 // pred_region
      %s6494 = ssub.s32 %s11, 2
      // Predicated region
      $region49: #{_lambda_.1} parent=47 // pred_check
        %p6495 = pneg %p150
      $region50: #{_lambda_.1} parent=47 // pred_check_branch
        %6497 = sbr.rel (%p6495) target = $region52
      $region51: #{_lambda_.1} parent=47 // pred_region
        %s6498 = smul.u32 32, %s17
        %p6499 = scmp.lt.s32.totalorder %s6498, 63
        %s6500 = scalar_select %p6499, %s6498, 63
        %s6501 = smul.addr %s6500, 2
        %s6502 = smul.addr %s6501, 8
        %s6503 = scalar_lea.vmem %s5, %s6502
      $region52: #{_lambda_.1} parent=47 // pred_fallthru
        _
    $region48: #{_lambda_.1} parent=5 // pred_fallthru
      _
  $region6: #{_lambda_.1} parent=0 // loop_footer
    %s15 = sadd.s32 1, %s11
  $region7: #{_lambda_.1} parent=0 // loop_footer_branch
    %10 = sbr.rel target = $region3
  $region8: #{_lambda_.1} parent=0 // loop_exit
    _

</llo_original>
